<compile_context>
chip_gen: v5e
topology: v5e:2x2
jax: 0.10.0
libtpu: 0.0.40
codegen_flags: <defaults>
</compile_context>

<pallas_src>
import numpy as np
import jax
import jax.numpy as jnp
from jax.experimental import pallas as pl
from jax.experimental.pallas import tpu as pltpu

_MIB = 1024 * 1024


# --------------------------- interpolation matrices ---------------------------

def _up2_matrix(in_size: int) -> np.ndarray:
    """(2*in_size, in_size) matrix matching PyTorch nn.Upsample(scale_factor=2,
    mode='bilinear', align_corners=False) along one spatial axis."""
    out_size = 2 * in_size
    j = np.arange(out_size, dtype=np.float64)
    src = np.maximum((j + 0.5) / 2.0 - 0.5, 0.0)      # clamp negatives (PyTorch)
    i0 = np.floor(src).astype(np.int64)
    frac = src - i0
    i1 = np.minimum(i0 + 1, in_size - 1)
    rows = np.arange(out_size)
    m = np.zeros((out_size, in_size), np.float64)
    m[rows, i0] += 1.0 - frac
    m[rows, i1] += frac                                # i0 == i1 at right edge sums to 1
    return m


def _combined_mats(h: int, w: int):
    """Per-term combined matrices for the linear expansion
    out = sum_k A_k s_k B_k^T + s5.
    Returns [(A_k (16h, h<<k-1... ), B_k^T (w<<k-1, 16w)) for k = 1..4]."""
    uh = [_up2_matrix(h << j) for j in range(4)]       # (2h,h),(4h,2h),(8h,4h),(16h,8h)
    uw = [_up2_matrix(w << j) for j in range(4)]

    def chain(ms, start):                              # ms[3] @ ... @ ms[start]
        m = ms[start]
        for j in range(start + 1, 4):
            m = ms[j] @ m
        return m

    mats = []
    for k in range(4):
        a = chain(uh, k).astype(np.float32)            # (16h, h<<k)
        bt = chain(uw, k).T.astype(np.float32)         # (w<<k, 16w), pre-transposed
        mats.append((jnp.asarray(a), jnp.asarray(bt)))
    return mats


# --------------------------------- the kernel ---------------------------------

def _cascade_kernel(s1_ref, s2_ref, s3_ref, s4_ref, s5_ref,
                    a1_ref, b1t_ref, a2_ref, b2t_ref,
                    a3_ref, b3t_ref, a4_ref, b4t_ref,
                    out_ref):
    cb, h16, w16 = out_ref.shape

    def term(x_ref, a_ref, bt_ref):
        """One linear term A_k @ x[c] @ B_k^T for every channel of the block."""
        x = x_ref[...].astype(jnp.float32)             # (cb, hk, wk)
        hk, wk = x.shape[1], x.shape[2]
        a = a_ref[...]                                  # (16h, hk)
        bt = bt_ref[...]                                # (wk, 16w)
        # Height interpolation: channel-batched MXU matmul.  The broadcast of
        # A_k is transient and charged to the VMEM estimate in the wrapper.
        a_b = jnp.broadcast_to(a[None, :, :], (cb, h16, hk))
        v = jax.lax.dot_general(
            a_b, x, dimension_numbers=(((2,), (1,)), ((0,), (0,))),
            preferred_element_type=jnp.float32)         # (cb, 16h, wk)
        # Width interpolation: fold cb*16h into the MXU M dim.  The reshapes
        # are layout-preserving (16h is a multiple of 8 sublanes).
        u = jnp.dot(v.reshape(cb * h16, wk), bt,
                    preferred_element_type=jnp.float32)  # (cb*16h, 16w)
        return u.reshape(cb, h16, w16)

    acc = s5_ref[...].astype(jnp.float32)               # (cb, 16h, 16w)
    acc = acc + term(s1_ref, a1_ref, b1t_ref)
    acc = acc + term(s2_ref, a2_ref, b2t_ref)
    acc = acc + term(s3_ref, a3_ref, b3t_ref)
    acc = acc + term(s4_ref, a4_ref, b4t_ref)
    out_ref[...] = acc.astype(out_ref.dtype)


# ----------------------------- planning / wrapper -----------------------------

def _round_up(x: int, m: int) -> int:
    return ((x + m - 1) // m) * m


def _pb(sub: int, lane: int, itemsize: int = 4) -> int:
    """Bytes of one (sub, lane) tile after (8, 128) sublane/lane padding."""
    return _round_up(max(sub, 1), 8) * _round_up(max(lane, 1), 128) * itemsize


def _per_channel_vmem(h: int, w: int) -> int:
    """Worst-case VMEM bytes per channel of one grid step (f32, padded)."""
    h16, w16 = 16 * h, 16 * w
    per = 2 * sum(_pb(h << k, w << k) for k in range(5))   # s1..s5 tiles, double-buffered
    per += 2 * _pb(h16, w16)                               # output tile, double-buffered
    per += _pb(h16, w16)                                   # f32 accumulator
    per += _pb(h16, w16)                                   # per-term result before accumulate
    per += _pb(h16, 8 * h)                                 # broadcast A_4 replica (largest term)
    per += _pb(h16, 8 * w)                                 # height-pass intermediate (largest term)
    per += _pb(h16, w16)                                   # headroom: compiler temporaries/relayouts
    return per


def _fixed_vmem(h: int, w: int) -> int:
    """VMEM bytes that do not scale with the channel block (interp matrices)."""
    total = 0
    for k in range(4):
        total += 2 * _pb(16 * h, h << k)                   # A_k, double-buffered
        total += 2 * _pb(w << k, 16 * w)                   # B_k^T, double-buffered
    return total + 2 * _MIB                                # Mosaic internal scratch allowance


def _tpu_hw():
    """(vmem_capacity_bytes, tensorcores_per_chip) with safe fallbacks."""
    vmem = 128 * _MIB
    cores = 1
    try:
        info = pltpu.get_tpu_info()
        cap = getattr(info, "vmem_capacity_bytes", None)
        if cap:
            vmem = int(cap)
        for attr in ("num_cores", "num_tensorcores", "tensorcores_per_chip",
                     "cores_per_chip"):
            val = getattr(info, attr, None)
            if val:
                cores = int(val)
                break
    except Exception:
        pass
    # v7x-class chips expose 64 MiB VMEM per TensorCore and carry 2 TCs/chip.
    if vmem <= 64 * _MIB:
        cores = max(cores, 2)
    return vmem, cores


def _cdiv(a: int, b: int) -> int:
    return -(-a // b)


def _plan_channel_tiling(nc: int, h: int, w: int, budget: int, cores: int):
    """Pick (c_blk, steps, padded_nc) for the flattened (n*c) channel axis."""
    per = _per_channel_vmem(h, w)
    avail = max(budget - _fixed_vmem(h, w), per)
    max_cb = max(1, avail // per)
    if cores >= 2 and nc >= 2:
        # One step per TensorCore minimum; even, balanced step count so
        # megacore sharding of the single parallel grid axis splits evenly.
        steps = 2
        while _cdiv(nc, steps) > max_cb:
            steps += 2
    else:
        # Single TC (v5e/v6e): fewest steps that fit VMEM — 1 step if possible
        # (avoids the ~0.35 us/step fixed overhead dominating small problems).
        steps = _cdiv(nc, min(nc, max_cb))
    cb = _cdiv(nc, steps)                                  # balanced block size
    return cb, steps, cb * steps


def cascade_module(s1, s2, s3, s4, s5):
    """Equivalent of CascadeModule.forward (NCHW), as one fused Pallas kernel."""
    n, c, h, w = s1.shape
    for k, s in enumerate((s2, s3, s4, s5), start=1):
        assert s.shape == (n, c, h << k, w << k), (s.shape, k)
    h16, w16 = 16 * h, 16 * w
    nc = n * c

    vmem_cap, cores = _tpu_hw()
    budget = int(vmem_cap * 0.60)                          # channel-block sizing budget
    vmem_limit = max(min(int(vmem_cap * 0.80), vmem_cap - 16 * _MIB), 32 * _MIB)

    cb, steps, nc_pad = _plan_channel_tiling(nc, h, w, budget, cores)

    def flat(x):
        # Flatten (n, c) into one channel axis; zero-pad so c_blk need not
        # divide n*c (padded channels produce zeros that are sliced off).
        x = x.reshape((nc,) + x.shape[2:])
        if nc_pad != nc:
            x = jnp.pad(x, ((0, nc_pad - nc), (0, 0), (0, 0)))
        return x

    inputs = [flat(s) for s in (s1, s2, s3, s4, s5)]

    mats = _combined_mats(h, w)
    mat_args, mat_specs = [], []
    for a, bt in mats:
        for m in (a, bt):
            mat_args.append(m)
            # Constant index_map -> resident across grid steps, no re-DMA.
            mat_specs.append(pl.BlockSpec(m.shape, lambda i: (0, 0)))

    csl = lambda i: (i, 0, 0)
    in_specs = [pl.BlockSpec((cb, h << k, w << k), csl) for k in range(5)]
    out_spec = pl.BlockSpec((cb, h16, w16), csl)
    # TODO(synk): on v7x, if xprof shows exposed DMA at very small step counts,
    # add pipeline_mode=pl.Buffered(3) to the s5/out specs and charge the extra
    # buffers to _per_channel_vmem.

    out_flat = pl.pallas_call(
        _cascade_kernel,
        out_shape=jax.ShapeDtypeStruct((nc_pad, h16, w16), s5.dtype),
        grid=(steps,),
        in_specs=in_specs + mat_specs,
        out_specs=out_spec,
        compiler_params=pltpu.CompilerParams(
            dimension_semantics=("parallel",),
            vmem_limit_bytes=int(vmem_limit)),
    )(*inputs, *mat_args)

    return out_flat[:nc].reshape(n, c, h16, w16)


# ----------------------------- pure-JAX reference -----------------------------

def _upsample_add_ref(x, skip):
    _, _, hh, ww = x.shape
    uh = jnp.asarray(_up2_matrix(hh), jnp.float32)
    uw = jnp.asarray(_up2_matrix(ww), jnp.float32)
    y = jnp.einsum("ph,nchw->ncpw", uh, x, precision=jax.lax.Precision.HIGHEST)
    y = jnp.einsum("qw,ncpw->ncpq", uw, y, precision=jax.lax.Precision.HIGHEST)
    return y + skip


def _cascade_ref(s1, s2, s3, s4, s5):
    r = _upsample_add_ref(s1, s2)
    r = _upsample_add_ref(r, s3)
    r = _upsample_add_ref(r, s4)
    return _upsample_add_ref(r, s5)


if __name__ == "__main__":
    key = jax.random.PRNGKey(0)
    k1, k2, k3, k4, k5 = jax.random.split(key, 5)
    # Pyramid 8 -> 16 -> 32 -> 64 -> 128: final output last dim = 128 (lane-dense).
    N, C, H, W = 2, 4, 8, 8
    s1 = jax.random.normal(k1, (N, C, H, W), jnp.float32)
    s2 = jax.random.normal(k2, (N, C, 2 * H, 2 * W), jnp.float32)
    s3 = jax.random.normal(k3, (N, C, 4 * H, 4 * W), jnp.float32)
    s4 = jax.random.normal(k4, (N, C, 8 * H, 8 * W), jnp.float32)
    s5 = jax.random.normal(k5, (N, C, 16 * H, 16 * W), jnp.float32)

    out = jax.block_until_ready(cascade_module(s1, s2, s3, s4, s5))
    ref = jax.block_until_ready(_cascade_ref(s1, s2, s3, s4, s5))

    assert out.shape == s5.shape, out.shape
    max_err = float(jnp.max(jnp.abs(out - ref)))
    assert jnp.allclose(out, ref, atol=1e-4, rtol=1e-4), (
        "mismatch vs reference: max abs err = %e" % max_err)
    print("KERNEL_OK")
</pallas_src>

<mosaic_0001>
module attributes {stable_mosaic.version = 11 : i64} {
  func.func @_cascade_kernel(%arg0: i32, %arg1: memref<8x8x8xf32, #tpu.memory_space<vmem>>, %arg2: memref<8x16x16xf32, #tpu.memory_space<vmem>>, %arg3: memref<8x32x32xf32, #tpu.memory_space<vmem>>, %arg4: memref<8x64x64xf32, #tpu.memory_space<vmem>>, %arg5: memref<8x128x128xf32, #tpu.memory_space<vmem>>, %arg6: memref<128x8xf32, #tpu.memory_space<vmem>>, %arg7: memref<8x128xf32, #tpu.memory_space<vmem>>, %arg8: memref<128x16xf32, #tpu.memory_space<vmem>>, %arg9: memref<16x128xf32, #tpu.memory_space<vmem>>, %arg10: memref<128x32xf32, #tpu.memory_space<vmem>>, %arg11: memref<32x128xf32, #tpu.memory_space<vmem>>, %arg12: memref<128x64xf32, #tpu.memory_space<vmem>>, %arg13: memref<64x128xf32, #tpu.memory_space<vmem>>, %arg14: memref<8x128x128xf32, #tpu.memory_space<vmem>>) attributes {dimension_semantics = [#tpu.dimension_semantics<parallel>], iteration_bounds = array<i64: 1>, scalar_prefetch = 0 : i64, scratch_operands = 0 : i64, tpu.core_type = #tpu.core_type<tc>, window_params = [{transform_indices = @transform_0, window_bounds = array<i64: 8, 8, 8>}, {transform_indices = @transform_1, window_bounds = array<i64: 8, 16, 16>}, {transform_indices = @transform_2, window_bounds = array<i64: 8, 32, 32>}, {transform_indices = @transform_3, window_bounds = array<i64: 8, 64, 64>}, {transform_indices = @transform_4, window_bounds = array<i64: 8, 128, 128>}, {pipeline_mode = #tpu.pipeline_mode<synchronous>, transform_indices = @transform_5, window_bounds = array<i64: 128, 8>}, {pipeline_mode = #tpu.pipeline_mode<synchronous>, transform_indices = @transform_6, window_bounds = array<i64: 8, 128>}, {pipeline_mode = #tpu.pipeline_mode<synchronous>, transform_indices = @transform_7, window_bounds = array<i64: 128, 16>}, {pipeline_mode = #tpu.pipeline_mode<synchronous>, transform_indices = @transform_8, window_bounds = array<i64: 16, 128>}, {pipeline_mode = #tpu.pipeline_mode<synchronous>, transform_indices = @transform_9, window_bounds = array<i64: 128, 32>}, {pipeline_mode = #tpu.pipeline_mode<synchronous>, transform_indices = @transform_10, window_bounds = array<i64: 32, 128>}, {pipeline_mode = #tpu.pipeline_mode<synchronous>, transform_indices = @transform_11, window_bounds = array<i64: 128, 64>}, {pipeline_mode = #tpu.pipeline_mode<synchronous>, transform_indices = @transform_12, window_bounds = array<i64: 64, 128>}, {transform_indices = @transform_13, window_bounds = array<i64: 8, 128, 128>}]} {
    %c0 = arith.constant 0 : index
    %c0_0 = arith.constant 0 : index
    %c0_1 = arith.constant 0 : index
    %0 = vector.load %arg5[%c0, %c0_0, %c0_1] : memref<8x128x128xf32, #tpu.memory_space<vmem>>, vector<8x128x128xf32>
    %c0_2 = arith.constant 0 : index
    %c0_3 = arith.constant 0 : index
    %c0_4 = arith.constant 0 : index
    %1 = vector.load %arg1[%c0_2, %c0_3, %c0_4] : memref<8x8x8xf32, #tpu.memory_space<vmem>>, vector<8x8x8xf32>
    %c0_5 = arith.constant 0 : index
    %c0_6 = arith.constant 0 : index
    %2 = vector.load %arg6[%c0_5, %c0_6] : memref<128x8xf32, #tpu.memory_space<vmem>>, vector<128x8xf32>
    %c0_7 = arith.constant 0 : index
    %c0_8 = arith.constant 0 : index
    %3 = vector.load %arg7[%c0_7, %c0_8] : memref<8x128xf32, #tpu.memory_space<vmem>>, vector<8x128xf32>
    %4 = vector.shape_cast %2 : vector<128x8xf32> to vector<1x128x8xf32>
    %5 = vector.shape_cast %4 : vector<1x128x8xf32> to vector<1x128x8xf32>
    %6 = vector.broadcast %5 : vector<1x128x8xf32> to vector<8x128x8xf32>
    %cst = arith.constant dense<0.000000e+00> : vector<8x128x8xf32>
    %7 = tpu.matmul %6, %1, %cst {dimension_numbers = #tpu.dot_dimension_numbers<[2], [1], [1], [2], [0, 0, 0, 1, 1, 2], [0], [0]>} : vector<8x128x8xf32>, vector<8x8x8xf32>, vector<8x128x8xf32> -> vector<8x128x8xf32>
    %8 = vector.shape_cast %7 : vector<8x128x8xf32> to vector<1024x8xf32>
    %cst_9 = arith.constant dense<0.000000e+00> : vector<1024x128xf32>
    %9 = tpu.matmul %8, %3, %cst_9 {dimension_numbers = #tpu.dot_dimension_numbers<[1], [0], [0], [1], [0, 0, 1, 1], [], []>} : vector<1024x8xf32>, vector<8x128xf32>, vector<1024x128xf32> -> vector<1024x128xf32>
    %10 = vector.shape_cast %9 : vector<1024x128xf32> to vector<8x128x128xf32>
    %11 = arith.addf %0, %10 : vector<8x128x128xf32>
    %c0_10 = arith.constant 0 : index
    %c0_11 = arith.constant 0 : index
    %c0_12 = arith.constant 0 : index
    %12 = vector.load %arg2[%c0_10, %c0_11, %c0_12] : memref<8x16x16xf32, #tpu.memory_space<vmem>>, vector<8x16x16xf32>
    %c0_13 = arith.constant 0 : index
    %c0_14 = arith.constant 0 : index
    %13 = vector.load %arg8[%c0_13, %c0_14] : memref<128x16xf32, #tpu.memory_space<vmem>>, vector<128x16xf32>
    %c0_15 = arith.constant 0 : index
    %c0_16 = arith.constant 0 : index
    %14 = vector.load %arg9[%c0_15, %c0_16] : memref<16x128xf32, #tpu.memory_space<vmem>>, vector<16x128xf32>
    %15 = vector.shape_cast %13 : vector<128x16xf32> to vector<1x128x16xf32>
    %16 = vector.shape_cast %15 : vector<1x128x16xf32> to vector<1x128x16xf32>
    %17 = vector.broadcast %16 : vector<1x128x16xf32> to vector<8x128x16xf32>
    %cst_17 = arith.constant dense<0.000000e+00> : vector<8x128x16xf32>
    %18 = tpu.matmul %17, %12, %cst_17 {dimension_numbers = #tpu.dot_dimension_numbers<[2], [1], [1], [2], [0, 0, 0, 1, 1, 2], [0], [0]>} : vector<8x128x16xf32>, vector<8x16x16xf32>, vector<8x128x16xf32> -> vector<8x128x16xf32>
    %19 = vector.shape_cast %18 : vector<8x128x16xf32> to vector<1024x16xf32>
    %cst_18 = arith.constant dense<0.000000e+00> : vector<1024x128xf32>
    %20 = tpu.matmul %19, %14, %cst_18 {dimension_numbers = #tpu.dot_dimension_numbers<[1], [0], [0], [1], [0, 0, 1, 1], [], []>} : vector<1024x16xf32>, vector<16x128xf32>, vector<1024x128xf32> -> vector<1024x128xf32>
    %21 = vector.shape_cast %20 : vector<1024x128xf32> to vector<8x128x128xf32>
    %22 = arith.addf %11, %21 : vector<8x128x128xf32>
    %c0_19 = arith.constant 0 : index
    %c0_20 = arith.constant 0 : index
    %c0_21 = arith.constant 0 : index
    %23 = vector.load %arg3[%c0_19, %c0_20, %c0_21] : memref<8x32x32xf32, #tpu.memory_space<vmem>>, vector<8x32x32xf32>
    %c0_22 = arith.constant 0 : index
    %c0_23 = arith.constant 0 : index
    %24 = vector.load %arg10[%c0_22, %c0_23] : memref<128x32xf32, #tpu.memory_space<vmem>>, vector<128x32xf32>
    %c0_24 = arith.constant 0 : index
    %c0_25 = arith.constant 0 : index
    %25 = vector.load %arg11[%c0_24, %c0_25] : memref<32x128xf32, #tpu.memory_space<vmem>>, vector<32x128xf32>
    %26 = vector.shape_cast %24 : vector<128x32xf32> to vector<1x128x32xf32>
    %27 = vector.shape_cast %26 : vector<1x128x32xf32> to vector<1x128x32xf32>
    %28 = vector.broadcast %27 : vector<1x128x32xf32> to vector<8x128x32xf32>
    %cst_26 = arith.constant dense<0.000000e+00> : vector<8x128x32xf32>
    %29 = tpu.matmul %28, %23, %cst_26 {dimension_numbers = #tpu.dot_dimension_numbers<[2], [1], [1], [2], [0, 0, 0, 1, 1, 2], [0], [0]>} : vector<8x128x32xf32>, vector<8x32x32xf32>, vector<8x128x32xf32> -> vector<8x128x32xf32>
    %30 = vector.shape_cast %29 : vector<8x128x32xf32> to vector<1024x32xf32>
    %cst_27 = arith.constant dense<0.000000e+00> : vector<1024x128xf32>
    %31 = tpu.matmul %30, %25, %cst_27 {dimension_numbers = #tpu.dot_dimension_numbers<[1], [0], [0], [1], [0, 0, 1, 1], [], []>} : vector<1024x32xf32>, vector<32x128xf32>, vector<1024x128xf32> -> vector<1024x128xf32>
    %32 = vector.shape_cast %31 : vector<1024x128xf32> to vector<8x128x128xf32>
    %33 = arith.addf %22, %32 : vector<8x128x128xf32>
    %c0_28 = arith.constant 0 : index
    %c0_29 = arith.constant 0 : index
    %c0_30 = arith.constant 0 : index
    %34 = vector.load %arg4[%c0_28, %c0_29, %c0_30] : memref<8x64x64xf32, #tpu.memory_space<vmem>>, vector<8x64x64xf32>
    %c0_31 = arith.constant 0 : index
    %c0_32 = arith.constant 0 : index
    %35 = vector.load %arg12[%c0_31, %c0_32] : memref<128x64xf32, #tpu.memory_space<vmem>>, vector<128x64xf32>
    %c0_33 = arith.constant 0 : index
    %c0_34 = arith.constant 0 : index
    %36 = vector.load %arg13[%c0_33, %c0_34] : memref<64x128xf32, #tpu.memory_space<vmem>>, vector<64x128xf32>
    %37 = vector.shape_cast %35 : vector<128x64xf32> to vector<1x128x64xf32>
    %38 = vector.shape_cast %37 : vector<1x128x64xf32> to vector<1x128x64xf32>
    %39 = vector.broadcast %38 : vector<1x128x64xf32> to vector<8x128x64xf32>
    %cst_35 = arith.constant dense<0.000000e+00> : vector<8x128x64xf32>
    %40 = tpu.matmul %39, %34, %cst_35 {dimension_numbers = #tpu.dot_dimension_numbers<[2], [1], [1], [2], [0, 0, 0, 1, 1, 2], [0], [0]>} : vector<8x128x64xf32>, vector<8x64x64xf32>, vector<8x128x64xf32> -> vector<8x128x64xf32>
    %41 = vector.shape_cast %40 : vector<8x128x64xf32> to vector<1024x64xf32>
    %cst_36 = arith.constant dense<0.000000e+00> : vector<1024x128xf32>
    %42 = tpu.matmul %41, %36, %cst_36 {dimension_numbers = #tpu.dot_dimension_numbers<[1], [0], [0], [1], [0, 0, 1, 1], [], []>} : vector<1024x64xf32>, vector<64x128xf32>, vector<1024x128xf32> -> vector<1024x128xf32>
    %43 = vector.shape_cast %42 : vector<1024x128xf32> to vector<8x128x128xf32>
    %44 = arith.addf %33, %43 : vector<8x128x128xf32>
    %c0_37 = arith.constant 0 : index
    %c0_38 = arith.constant 0 : index
    %c0_39 = arith.constant 0 : index
    %45 = vector.load %arg14[%c0_37, %c0_38, %c0_39] : memref<8x128x128xf32, #tpu.memory_space<vmem>>, vector<8x128x128xf32>
    tpu.vector_store %arg14[%c0_37, %c0_38, %c0_39], %44 {strides = array<i32>} : memref<8x128x128xf32, #tpu.memory_space<vmem>>, vector<8x128x128xf32>,
    return
  }
  func.func @transform_0(%arg0: i32) -> (i32, i32, i32) {
    %c0_i32 = arith.constant 0 : i32
    %c0_i32_0 = arith.constant 0 : i32
    %c0_i32_1 = arith.constant 0 : i32
    return %arg0, %c0_i32, %c0_i32_0 : i32, i32, i32
  }
  func.func @transform_1(%arg0: i32) -> (i32, i32, i32) {
    %c0_i32 = arith.constant 0 : i32
    %c0_i32_0 = arith.constant 0 : i32
    %c0_i32_1 = arith.constant 0 : i32
    return %arg0, %c0_i32, %c0_i32_0 : i32, i32, i32
  }
  func.func @transform_2(%arg0: i32) -> (i32, i32, i32) {
    %c0_i32 = arith.constant 0 : i32
    %c0_i32_0 = arith.constant 0 : i32
    %c0_i32_1 = arith.constant 0 : i32
    return %arg0, %c0_i32, %c0_i32_0 : i32, i32, i32
  }
  func.func @transform_3(%arg0: i32) -> (i32, i32, i32) {
    %c0_i32 = arith.constant 0 : i32
    %c0_i32_0 = arith.constant 0 : i32
    %c0_i32_1 = arith.constant 0 : i32
    return %arg0, %c0_i32, %c0_i32_0 : i32, i32, i32
  }
  func.func @transform_4(%arg0: i32) -> (i32, i32, i32) {
    %c0_i32 = arith.constant 0 : i32
    %c0_i32_0 = arith.constant 0 : i32
    %c0_i32_1 = arith.constant 0 : i32
    return %arg0, %c0_i32, %c0_i32_0 : i32, i32, i32
  }
  func.func @transform_5(%arg0: i32) -> (i32, i32) {
    %c0_i32 = arith.constant 0 : i32
    %c0_i32_0 = arith.constant 0 : i32
    %c0_i32_1 = arith.constant 0 : i32
    return %c0_i32, %c0_i32_0 : i32, i32
  }
  func.func @transform_6(%arg0: i32) -> (i32, i32) {
    %c0_i32 = arith.constant 0 : i32
    %c0_i32_0 = arith.constant 0 : i32
    %c0_i32_1 = arith.constant 0 : i32
    return %c0_i32, %c0_i32_0 : i32, i32
  }
  func.func @transform_7(%arg0: i32) -> (i32, i32) {
    %c0_i32 = arith.constant 0 : i32
    %c0_i32_0 = arith.constant 0 : i32
    %c0_i32_1 = arith.constant 0 : i32
    return %c0_i32, %c0_i32_0 : i32, i32
  }
  func.func @transform_8(%arg0: i32) -> (i32, i32) {
    %c0_i32 = arith.constant 0 : i32
    %c0_i32_0 = arith.constant 0 : i32
    %c0_i32_1 = arith.constant 0 : i32
    return %c0_i32, %c0_i32_0 : i32, i32
  }
  func.func @transform_9(%arg0: i32) -> (i32, i32) {
    %c0_i32 = arith.constant 0 : i32
    %c0_i32_0 = arith.constant 0 : i32
    %c0_i32_1 = arith.constant 0 : i32
    return %c0_i32, %c0_i32_0 : i32, i32
  }
  func.func @transform_10(%arg0: i32) -> (i32, i32) {
    %c0_i32 = arith.constant 0 : i32
    %c0_i32_0 = arith.constant 0 : i32
    %c0_i32_1 = arith.constant 0 : i32
    return %c0_i32, %c0_i32_0 : i32, i32
  }
  func.func @transform_11(%arg0: i32) -> (i32, i32) {
    %c0_i32 = arith.constant 0 : i32
    %c0_i32_0 = arith.constant 0 : i32
    %c0_i32_1 = arith.constant 0 : i32
    return %c0_i32, %c0_i32_0 : i32, i32
  }
  func.func @transform_12(%arg0: i32) -> (i32, i32) {
    %c0_i32 = arith.constant 0 : i32
    %c0_i32_0 = arith.constant 0 : i32
    %c0_i32_1 = arith.constant 0 : i32
    return %c0_i32, %c0_i32_0 : i32, i32
  }
  func.func @transform_13(%arg0: i32) -> (i32, i32, i32) {
    %c0_i32 = arith.constant 0 : i32
    %c0_i32_0 = arith.constant 0 : i32
    %c0_i32_1 = arith.constant 0 : i32
    return %arg0, %c0_i32, %c0_i32_0 : i32, i32, i32
  }
}

</mosaic_0001>

<llo_original>
// kernel: tpu_custom_call.1
$region0: #{tpu_custom_call.1}
  #allocation0 [shape = 'u32[]', space=smem, size = 0x4, offset = 0x4, fixed_abs, tag = 'smem constant byte address 0x4 - core index']
  #allocation1 [shape = 'u32[72,128]{1,0:T(1,128)}', space=vmem, size = 0x9000, scoped, tag = 'internal scratch']
  %s0 = inlined_call_operand.vmem [shape: f32[8,8,8], index: 0, kind: input, shape index: {}]
  %s1 = inlined_call_operand.vmem [shape: f32[8,16,16], index: 1, kind: input, shape index: {}]
  %s2 = inlined_call_operand.vmem [shape: f32[8,32,32], index: 2, kind: input, shape index: {}]
  %s3 = inlined_call_operand.hbm [shape: f32[8,64,64], index: 3, kind: input, shape index: {}]
  %s4 = inlined_call_operand.hbm [shape: f32[8,128,128], index: 4, kind: input, shape index: {}]
  %s5 = inlined_call_operand.vmem [shape: f32[128,8], index: 5, kind: input, shape index: {}]
  %s6 = inlined_call_operand.vmem [shape: f32[8,128], index: 6, kind: input, shape index: {}]
  %s7 = inlined_call_operand.vmem [shape: f32[128,16], index: 7, kind: input, shape index: {}]
  %s8 = inlined_call_operand.hbm [shape: f32[16,128], index: 8, kind: input, shape index: {}]
  %s9 = inlined_call_operand.vmem [shape: f32[128,32], index: 9, kind: input, shape index: {}]
  %s10 = inlined_call_operand.hbm [shape: f32[32,128], index: 10, kind: input, shape index: {}]
  %s11 = inlined_call_operand.vmem [shape: f32[128,64], index: 11, kind: input, shape index: {}]
  %s12 = inlined_call_operand.vmem [shape: f32[64,128], index: 12, kind: input, shape index: {}]
  %s13 = inlined_call_operand.hbm [shape: f32[8,128,128], index: 13, kind: output, shape index: {}]
  %s14 = sld [smem:[#allocation0]]
  $region78: #{tpu_custom_call.1} parent=0
    _
  %s16 = ssub.s32 1, %s14
  %s17 = scalar_select 0, %s16, %s14
  $region1: #{tpu_custom_call.1} parent=0
    #allocation2 [shape = 'u8[262144]{0}', space=vmem, size = 0x40000, scoped, tag = 'input window, operand 3, single buffered']
    #allocation3 [shape = 's32[1]{0}', space=sflag, size = 0x4, scoped, tag = 'scoped memory for tpu_custom_call.1']
    #allocation4 [shape = 's32[1]{0}', space=sflag, size = 0x4, scoped, tag = 'scoped memory for tpu_custom_call.1']
    #allocation5 [shape = 'u8[524288]{0}', space=vmem, size = 0x80000, scoped, tag = 'input window, operand 4, single buffered']
    #allocation6 [shape = 's32[1]{0}', space=sflag, size = 0x4, scoped, tag = 'scoped memory for tpu_custom_call.1']
    #allocation7 [shape = 'u8[8192]{0}', space=vmem, size = 0x2000, scoped, tag = 'input window, operand 8, single buffered']
    #allocation8 [shape = 'u8[16384]{0}', space=vmem, size = 0x4000, scoped, tag = 'input window, operand 10, single buffered']
    #allocation9 [shape = 's32[1]{0}', space=sflag, size = 0x4, scoped, tag = 'scoped memory for tpu_custom_call.1']
    #allocation10 [shape = 'u8[524288]{0}', space=vmem, size = 0x80000, scoped, tag = 'output window, operand 0, single buffered']
    %18 = vsyncpa [#allocation3], 0
    %19 = vsyncpa [#allocation6], 0
    %20 = vsyncpa [#allocation9], 0
    %21 = vsyncpa [#allocation4], 0
    // Predicated region
    $region2: #{tpu_custom_call.1} parent=1 // pred_check
      _
    $region3: #{tpu_custom_call.1} parent=1 // pred_check_branch
      %23 = sbr.rel (0) target = $region5
    $region4: #{tpu_custom_call.1} parent=1 // pred_region
      _
    $region5: #{tpu_custom_call.1} parent=1 // pred_fallthru
      _
    // Predicated region
    $region6: #{tpu_custom_call.1} parent=1 // pred_check
      _
    $region7: #{tpu_custom_call.1} parent=1 // pred_check_branch
      %25 = sbr.rel (0) target = $region9
    $region8: #{tpu_custom_call.1} parent=1 // pred_region
      _
    $region9: #{tpu_custom_call.1} parent=1 // pred_fallthru
      _
    // Predicated region
    $region10: #{tpu_custom_call.1} parent=1 // pred_check
      _
    $region11: #{tpu_custom_call.1} parent=1 // pred_check_branch
      %27 = sbr.rel (0) target = $region13
    $region12: #{tpu_custom_call.1} parent=1 // pred_region
      _
    $region13: #{tpu_custom_call.1} parent=1 // pred_fallthru
      _
    // Predicated region
    $region14: #{tpu_custom_call.1} parent=1 // pred_check
      _
    $region15: #{tpu_custom_call.1} parent=1 // pred_check_branch
      %29 = sbr.rel (0) target = $region17
    $region16: #{tpu_custom_call.1} parent=1 // pred_region
      %31 = vsyncadd [#allocation3], 0
      %s32 = sshll.u32 %s3, 4
      %s33 = int_to_ptr.hbm [resolvable:$true] %s32
      %s34 = sshll.u32 [#allocation2], 4
      %s35 = int_to_ptr.vmem [resolvable:$true] %s34
      %40 = dma.hbm_to_vmem [thread:$0]  %s33, 8192, %s35, [#allocation3], 128, 128, 8
    $region17: #{tpu_custom_call.1} parent=1 // pred_fallthru
      _
    // Predicated region
    $region18: #{tpu_custom_call.1} parent=1 // pred_check
      _
    $region19: #{tpu_custom_call.1} parent=1 // pred_check_branch
      %42 = sbr.rel (0) target = $region21
    $region20: #{tpu_custom_call.1} parent=1 // pred_region
      %44 = vsyncadd [#allocation6], 0
      %s45 = sshll.u32 %s4, 4
      %s46 = int_to_ptr.hbm [resolvable:$true] %s45
      %s47 = sshll.u32 [#allocation5], 4
      %s48 = int_to_ptr.vmem [resolvable:$true] %s47
      %53 = dma.hbm_to_vmem [thread:$0]  %s46, 16384, %s48, [#allocation6], 128, 128, 8
    $region21: #{tpu_custom_call.1} parent=1 // pred_fallthru
      _
    // Predicated region
    $region22: #{tpu_custom_call.1} parent=1 // pred_check
      _
    $region23: #{tpu_custom_call.1} parent=1 // pred_check_branch
      %55 = sbr.rel (0) target = $region25
    $region24: #{tpu_custom_call.1} parent=1 // pred_region
      _
    $region25: #{tpu_custom_call.1} parent=1 // pred_fallthru
      _
    // Predicated region
    $region26: #{tpu_custom_call.1} parent=1 // pred_check
      _
    $region27: #{tpu_custom_call.1} parent=1 // pred_check_branch
      %57 = sbr.rel (0) target = $region29
    $region28: #{tpu_custom_call.1} parent=1 // pred_region
      _
    $region29: #{tpu_custom_call.1} parent=1 // pred_fallthru
      _
    // Predicated region
    $region30: #{tpu_custom_call.1} parent=1 // pred_check
      _
    $region31: #{tpu_custom_call.1} parent=1 // pred_check_branch
      %59 = sbr.rel (0) target = $region33
    $region32: #{tpu_custom_call.1} parent=1 // pred_region
      _
    $region33: #{tpu_custom_call.1} parent=1 // pred_fallthru
      _
    // Predicated region
    $region34: #{tpu_custom_call.1} parent=1 // pred_check
      _
    $region35: #{tpu_custom_call.1} parent=1 // pred_check_branch
      %61 = sbr.rel (0) target = $region37
    $region36: #{tpu_custom_call.1} parent=1 // pred_region
      %63 = vsyncadd [#allocation6], 0
      %s64 = sshll.u32 %s8, 4
      %s65 = int_to_ptr.hbm [resolvable:$true] %s64
      %s66 = sshll.u32 [#allocation7], 4
      %s67 = int_to_ptr.vmem [resolvable:$true] %s66
      %72 = dma.hbm_to_vmem [thread:$0]  %s65, 256, %s67, [#allocation6], 128, 128, 8
    $region37: #{tpu_custom_call.1} parent=1 // pred_fallthru
      _
    // Predicated region
    $region38: #{tpu_custom_call.1} parent=1 // pred_check
      _
    $region39: #{tpu_custom_call.1} parent=1 // pred_check_branch
      %74 = sbr.rel (0) target = $region41
    $region40: #{tpu_custom_call.1} parent=1 // pred_region
      _
    $region41: #{tpu_custom_call.1} parent=1 // pred_fallthru
      _
    // Predicated region
    $region42: #{tpu_custom_call.1} parent=1 // pred_check
      _
    $region43: #{tpu_custom_call.1} parent=1 // pred_check_branch
      %76 = sbr.rel (0) target = $region45
    $region44: #{tpu_custom_call.1} parent=1 // pred_region
      %78 = vsyncadd [#allocation9], 0
      %s79 = sshll.u32 %s10, 4
      %s80 = int_to_ptr.hbm [resolvable:$true] %s79
      %s81 = sshll.u32 [#allocation8], 4
      %s82 = int_to_ptr.vmem [resolvable:$true] %s81
      %87 = dma.hbm_to_vmem [thread:$0]  %s80, 512, %s82, [#allocation9], 128, 128, 8
    $region45: #{tpu_custom_call.1} parent=1 // pred_fallthru
      _
    // Predicated region
    $region46: #{tpu_custom_call.1} parent=1 // pred_check
      _
    $region47: #{tpu_custom_call.1} parent=1 // pred_check_branch
      %89 = sbr.rel (0) target = $region49
    $region48: #{tpu_custom_call.1} parent=1 // pred_region
      _
    $region49: #{tpu_custom_call.1} parent=1 // pred_fallthru
      _
    // Predicated region
    $region50: #{tpu_custom_call.1} parent=1 // pred_check
      _
    $region51: #{tpu_custom_call.1} parent=1 // pred_check_branch
      %91 = sbr.rel (0) target = $region53
    $region52: #{tpu_custom_call.1} parent=1 // pred_region
      _
    $region53: #{tpu_custom_call.1} parent=1 // pred_fallthru
      _
    // Predicated region
    $region54: #{tpu_custom_call.1} parent=1 // pred_check
      _
    $region55: #{tpu_custom_call.1} parent=1 // pred_check_branch
      %93 = sbr.rel (0) target = $region57
    $region56: #{tpu_custom_call.1} parent=1 // pred_region
      %95 = dma.done [#allocation3], 8192
    $region57: #{tpu_custom_call.1} parent=1 // pred_fallthru
      _
    // Predicated region
    $region58: #{tpu_custom_call.1} parent=1 // pred_check
      _
    $region59: #{tpu_custom_call.1} parent=1 // pred_check_branch
      %97 = sbr.rel (0) target = $region61
    $region60: #{tpu_custom_call.1} parent=1 // pred_region
      %99 = dma.done [#allocation6], 16384
    $region61: #{tpu_custom_call.1} parent=1 // pred_fallthru
      _
    // Predicated region
    $region62: #{tpu_custom_call.1} parent=1 // pred_check
      _
    $region63: #{tpu_custom_call.1} parent=1 // pred_check_branch
      %101 = sbr.rel (0) target = $region65
    $region64: #{tpu_custom_call.1} parent=1 // pred_region
      %103 = dma.done [#allocation6], 256
    $region65: #{tpu_custom_call.1} parent=1 // pred_fallthru
      _
    // Predicated region
    $region66: #{tpu_custom_call.1} parent=1 // pred_check
      _
    $region67: #{tpu_custom_call.1} parent=1 // pred_check_branch
      %105 = sbr.rel (0) target = $region69
    $region68: #{tpu_custom_call.1} parent=1 // pred_region
      %107 = dma.done [#allocation9], 512
    $region69: #{tpu_custom_call.1} parent=1 // pred_fallthru
      _
    %v108 = vld [vmem:[#allocation5] sm:$0xff]
    %v109 = vld [vmem:[#allocation5 + $0x8] sm:$0xff]
    %v110 = vld [vmem:[#allocation5 + $0x10] sm:$0xff]
    %v111 = vld [vmem:[#allocation5 + $0x18] sm:$0xff]
    %v112 = vld [vmem:[#allocation5 + $0x20] sm:$0xff]
    %v113 = vld [vmem:[#allocation5 + $0x28] sm:$0xff]
    %v114 = vld [vmem:[#allocation5 + $0x30] sm:$0xff]
    %v115 = vld [vmem:[#allocation5 + $0x38] sm:$0xff]
    %v116 = vld [vmem:[#allocation5 + $0x40] sm:$0xff]
    %v117 = vld [vmem:[#allocation5 + $0x48] sm:$0xff]
    %v118 = vld [vmem:[#allocation5 + $0x50] sm:$0xff]
    %v119 = vld [vmem:[#allocation5 + $0x58] sm:$0xff]
    %v120 = vld [vmem:[#allocation5 + $0x60] sm:$0xff]
    %v121 = vld [vmem:[#allocation5 + $0x68] sm:$0xff]
    %v122 = vld [vmem:[#allocation5 + $0x70] sm:$0xff]
    %v123 = vld [vmem:[#allocation5 + $0x78] sm:$0xff]
    %v124 = vld [vmem:[#allocation5 + $0x80] sm:$0xff]
    %v125 = vld [vmem:[#allocation5 + $0x88] sm:$0xff]
    %v126 = vld [vmem:[#allocation5 + $0x90] sm:$0xff]
    %v127 = vld [vmem:[#allocation5 + $0x98] sm:$0xff]
    %v128 = vld [vmem:[#allocation5 + $0xa0] sm:$0xff]
    %v129 = vld [vmem:[#allocation5 + $0xa8] sm:$0xff]
    %v130 = vld [vmem:[#allocation5 + $0xb0] sm:$0xff]
    %v131 = vld [vmem:[#allocation5 + $0xb8] sm:$0xff]
    %v132 = vld [vmem:[#allocation5 + $0xc0] sm:$0xff]
    %v133 = vld [vmem:[#allocation5 + $0xc8] sm:$0xff]
    %v134 = vld [vmem:[#allocation5 + $0xd0] sm:$0xff]
    %v135 = vld [vmem:[#allocation5 + $0xd8] sm:$0xff]
    %v136 = vld [vmem:[#allocation5 + $0xe0] sm:$0xff]
    %v137 = vld [vmem:[#allocation5 + $0xe8] sm:$0xff]
    %v138 = vld [vmem:[#allocation5 + $0xf0] sm:$0xff]
    %v139 = vld [vmem:[#allocation5 + $0xf8] sm:$0xff]
    %v140 = vld [vmem:[#allocation5 + $0x100] sm:$0xff]
    %v141 = vld [vmem:[#allocation5 + $0x108] sm:$0xff]
    %v142 = vld [vmem:[#allocation5 + $0x110] sm:$0xff]
    %v143 = vld [vmem:[#allocation5 + $0x118] sm:$0xff]
    %v144 = vld [vmem:[#allocation5 + $0x120] sm:$0xff]
    %v145 = vld [vmem:[#allocation5 + $0x128] sm:$0xff]
    %v146 = vld [vmem:[#allocation5 + $0x130] sm:$0xff]
    %v147 = vld [vmem:[#allocation5 + $0x138] sm:$0xff]
    %v148 = vld [vmem:[#allocation5 + $0x140] sm:$0xff]
    %v149 = vld [vmem:[#allocation5 + $0x148] sm:$0xff]
    %v150 = vld [vmem:[#allocation5 + $0x150] sm:$0xff]
    %v151 = vld [vmem:[#allocation5 + $0x158] sm:$0xff]
    %v152 = vld [vmem:[#allocation5 + $0x160] sm:$0xff]
    %v153 = vld [vmem:[#allocation5 + $0x168] sm:$0xff]
    %v154 = vld [vmem:[#allocation5 + $0x170] sm:$0xff]
    %v155 = vld [vmem:[#allocation5 + $0x178] sm:$0xff]
    %v156 = vld [vmem:[#allocation5 + $0x180] sm:$0xff]
    %v157 = vld [vmem:[#allocation5 + $0x188] sm:$0xff]
    %v158 = vld [vmem:[#allocation5 + $0x190] sm:$0xff]
    %v159 = vld [vmem:[#allocation5 + $0x198] sm:$0xff]
    %v160 = vld [vmem:[#allocation5 + $0x1a0] sm:$0xff]
    %v161 = vld [vmem:[#allocation5 + $0x1a8] sm:$0xff]
    %v162 = vld [vmem:[#allocation5 + $0x1b0] sm:$0xff]
    %v163 = vld [vmem:[#allocation5 + $0x1b8] sm:$0xff]
    %v164 = vld [vmem:[#allocation5 + $0x1c0] sm:$0xff]
    %v165 = vld [vmem:[#allocation5 + $0x1c8] sm:$0xff]
    %v166 = vld [vmem:[#allocation5 + $0x1d0] sm:$0xff]
    %v167 = vld [vmem:[#allocation5 + $0x1d8] sm:$0xff]
    %v168 = vld [vmem:[#allocation5 + $0x1e0] sm:$0xff]
    %v169 = vld [vmem:[#allocation5 + $0x1e8] sm:$0xff]
    %v170 = vld [vmem:[#allocation5 + $0x1f0] sm:$0xff]
    %v171 = vld [vmem:[#allocation5 + $0x1f8] sm:$0xff]
    %v172 = vld [vmem:[#allocation5 + $0x200] sm:$0xff]
    %v173 = vld [vmem:[#allocation5 + $0x208] sm:$0xff]
    %v174 = vld [vmem:[#allocation5 + $0x210] sm:$0xff]
    %v175 = vld [vmem:[#allocation5 + $0x218] sm:$0xff]
    %v176 = vld [vmem:[#allocation5 + $0x220] sm:$0xff]
    %v177 = vld [vmem:[#allocation5 + $0x228] sm:$0xff]
    %v178 = vld [vmem:[#allocation5 + $0x230] sm:$0xff]
    %v179 = vld [vmem:[#allocation5 + $0x238] sm:$0xff]
    %v180 = vld [vmem:[#allocation5 + $0x240] sm:$0xff]
    %v181 = vld [vmem:[#allocation5 + $0x248] sm:$0xff]
    %v182 = vld [vmem:[#allocation5 + $0x250] sm:$0xff]
    %v183 = vld [vmem:[#allocation5 + $0x258] sm:$0xff]
    %v184 = vld [vmem:[#allocation5 + $0x260] sm:$0xff]
    %v185 = vld [vmem:[#allocation5 + $0x268] sm:$0xff]
    %v186 = vld [vmem:[#allocation5 + $0x270] sm:$0xff]
    %v187 = vld [vmem:[#allocation5 + $0x278] sm:$0xff]
    %v188 = vld [vmem:[#allocation5 + $0x280] sm:$0xff]
    %v189 = vld [vmem:[#allocation5 + $0x288] sm:$0xff]
    %v190 = vld [vmem:[#allocation5 + $0x290] sm:$0xff]
    %v191 = vld [vmem:[#allocation5 + $0x298] sm:$0xff]
    %v192 = vld [vmem:[#allocation5 + $0x2a0] sm:$0xff]
    %v193 = vld [vmem:[#allocation5 + $0x2a8] sm:$0xff]
    %v194 = vld [vmem:[#allocation5 + $0x2b0] sm:$0xff]
    %v195 = vld [vmem:[#allocation5 + $0x2b8] sm:$0xff]
    %v196 = vld [vmem:[#allocation5 + $0x2c0] sm:$0xff]
    %v197 = vld [vmem:[#allocation5 + $0x2c8] sm:$0xff]
    %v198 = vld [vmem:[#allocation5 + $0x2d0] sm:$0xff]
    %v199 = vld [vmem:[#allocation5 + $0x2d8] sm:$0xff]
    %v200 = vld [vmem:[#allocation5 + $0x2e0] sm:$0xff]
    %v201 = vld [vmem:[#allocation5 + $0x2e8] sm:$0xff]
    %v202 = vld [vmem:[#allocation5 + $0x2f0] sm:$0xff]
    %v203 = vld [vmem:[#allocation5 + $0x2f8] sm:$0xff]
    %v204 = vld [vmem:[#allocation5 + $0x300] sm:$0xff]
    %v205 = vld [vmem:[#allocation5 + $0x308] sm:$0xff]
    %v206 = vld [vmem:[#allocation5 + $0x310] sm:$0xff]
    %v207 = vld [vmem:[#allocation5 + $0x318] sm:$0xff]
    %v208 = vld [vmem:[#allocation5 + $0x320] sm:$0xff]
    %v209 = vld [vmem:[#allocation5 + $0x328] sm:$0xff]
    %v210 = vld [vmem:[#allocation5 + $0x330] sm:$0xff]
    %v211 = vld [vmem:[#allocation5 + $0x338] sm:$0xff]
    %v212 = vld [vmem:[#allocation5 + $0x340] sm:$0xff]
    %v213 = vld [vmem:[#allocation5 + $0x348] sm:$0xff]
    %v214 = vld [vmem:[#allocation5 + $0x350] sm:$0xff]
    %v215 = vld [vmem:[#allocation5 + $0x358] sm:$0xff]
    %v216 = vld [vmem:[#allocation5 + $0x360] sm:$0xff]
    %v217 = vld [vmem:[#allocation5 + $0x368] sm:$0xff]
    %v218 = vld [vmem:[#allocation5 + $0x370] sm:$0xff]
    %v219 = vld [vmem:[#allocation5 + $0x378] sm:$0xff]
    %v220 = vld [vmem:[#allocation5 + $0x380] sm:$0xff]
    %v221 = vld [vmem:[#allocation5 + $0x388] sm:$0xff]
    %v222 = vld [vmem:[#allocation5 + $0x390] sm:$0xff]
    %v223 = vld [vmem:[#allocation5 + $0x398] sm:$0xff]
    %v224 = vld [vmem:[#allocation5 + $0x3a0] sm:$0xff]
    %v225 = vld [vmem:[#allocation5 + $0x3a8] sm:$0xff]
    %v226 = vld [vmem:[#allocation5 + $0x3b0] sm:$0xff]
    %v227 = vld [vmem:[#allocation5 + $0x3b8] sm:$0xff]
    %v228 = vld [vmem:[#allocation5 + $0x3c0] sm:$0xff]
    %v229 = vld [vmem:[#allocation5 + $0x3c8] sm:$0xff]
    %v230 = vld [vmem:[#allocation5 + $0x3d0] sm:$0xff]
    %v231 = vld [vmem:[#allocation5 + $0x3d8] sm:$0xff]
    %v232 = vld [vmem:[#allocation5 + $0x3e0] sm:$0xff]
    %v233 = vld [vmem:[#allocation5 + $0x3e8] sm:$0xff]
    %v234 = vld [vmem:[#allocation5 + $0x3f0] sm:$0xff]
    %v235 = vld [vmem:[#allocation5 + $0x3f8] sm:$0xff]
    %v236 = vld [vmem:[%s0] sm:$0xff]
    %v237 = vld [vmem:[%s0 + $0x8] sm:$0xff]
    %v238 = vld [vmem:[%s0 + $0x10] sm:$0xff]
    %v239 = vld [vmem:[%s0 + $0x18] sm:$0xff]
    %v240 = vld [vmem:[%s0 + $0x20] sm:$0xff]
    %v241 = vld [vmem:[%s0 + $0x28] sm:$0xff]
    %v242 = vld [vmem:[%s0 + $0x30] sm:$0xff]
    %v243 = vld [vmem:[%s0 + $0x38] sm:$0xff]
    %v244 = vld [vmem:[%s5] sm:$0xff]
    %v245 = vld [vmem:[%s5 + $0x8] sm:$0xff]
    %v246 = vld [vmem:[%s5 + $0x10] sm:$0xff]
    %v247 = vld [vmem:[%s5 + $0x18] sm:$0xff]
    %v248 = vld [vmem:[%s5 + $0x20] sm:$0xff]
    %v249 = vld [vmem:[%s5 + $0x28] sm:$0xff]
    %v250 = vld [vmem:[%s5 + $0x30] sm:$0xff]
    %v251 = vld [vmem:[%s5 + $0x38] sm:$0xff]
    %v252 = vld [vmem:[%s5 + $0x40] sm:$0xff]
    %v253 = vld [vmem:[%s5 + $0x48] sm:$0xff]
    %v254 = vld [vmem:[%s5 + $0x50] sm:$0xff]
    %v255 = vld [vmem:[%s5 + $0x58] sm:$0xff]
    %v256 = vld [vmem:[%s5 + $0x60] sm:$0xff]
    %v257 = vld [vmem:[%s5 + $0x68] sm:$0xff]
    %v258 = vld [vmem:[%s5 + $0x70] sm:$0xff]
    %v259 = vld [vmem:[%s5 + $0x78] sm:$0xff]
    %v260 = vld [vmem:[%s6] sm:$0xff]
    %vm261 = vcmask 64512
    %v263 = vsel %vm261, %v244, 0
    %v266 = vsel %vm261, %v245, 0
    %v269 = vsel %vm261, %v246, 0
    %v272 = vsel %vm261, %v247, 0
    %v275 = vsel %vm261, %v248, 0
    %v278 = vsel %vm261, %v249, 0
    %v281 = vsel %vm261, %v250, 0
    %v284 = vsel %vm261, %v251, 0
    %v287 = vsel %vm261, %v252, 0
    %v290 = vsel %vm261, %v253, 0
    %v293 = vsel %vm261, %v254, 0
    %v296 = vsel %vm261, %v255, 0
    %v299 = vsel %vm261, %v256, 0
    %v302 = vsel %vm261, %v257, 0
    %v305 = vsel %vm261, %v258, 0
    %v308 = vsel %vm261, %v259, 0
    %310 = vmatpush.msra.mxu0 0.0
    %311 = vmatpush.msra.mxu0 0.0
    %312 = vmatpush.msra.mxu0 0.0
    %313 = vmatpush.msra.mxu0 0.0
    %314 = vmatpush.msra.mxu0 0.0
    %315 = vmatpush.msra.mxu0 0.0
    %316 = vmatpush.msra.mxu0 0.0
    %317 = vmatpush.msra.mxu0 0.0
    %318 = vmatpush.msra.mxu0 0.0
    %319 = vmatpush.msra.mxu0 0.0
    %320 = vmatpush.msra.mxu0 0.0
    %321 = vmatpush.msra.mxu0 0.0
    %322 = vmatpush.msra.mxu0 0.0
    %323 = vmatpush.msra.mxu0 0.0
    %324 = vmatpush.msra.mxu0 0.0
    %325 = vmatpush.msra.mxu0 %v236
    %326 = vmatmul.f32.gmra.mxu0 %v263
    %v327 = vpop.f32.mrf.mxu0
    %v328 = vadd.f32 0.0, %v327
    %329 = vmatmul.f32.gmra.mxu0 %v266
    %v330 = vpop.f32.mrf.mxu0
    %v331 = vadd.f32 0.0, %v330
    %332 = vmatmul.f32.gmra.mxu0 %v269
    %v333 = vpop.f32.mrf.mxu0
    %v334 = vadd.f32 0.0, %v333
    %335 = vmatmul.f32.gmra.mxu0 %v272
    %v336 = vpop.f32.mrf.mxu0
    %v337 = vadd.f32 0.0, %v336
    %338 = vmatmul.f32.gmra.mxu0 %v275
    %v339 = vpop.f32.mrf.mxu0
    %v340 = vadd.f32 0.0, %v339
    %341 = vmatmul.f32.gmra.mxu0 %v278
    %v342 = vpop.f32.mrf.mxu0
    %v343 = vadd.f32 0.0, %v342
    %344 = vmatmul.f32.gmra.mxu0 %v281
    %v345 = vpop.f32.mrf.mxu0
    %v346 = vadd.f32 0.0, %v345
    %347 = vmatmul.f32.gmra.mxu0 %v284
    %v348 = vpop.f32.mrf.mxu0
    %v349 = vadd.f32 0.0, %v348
    %350 = vmatmul.f32.gmra.mxu0 %v287
    %v351 = vpop.f32.mrf.mxu0
    %v352 = vadd.f32 0.0, %v351
    %353 = vmatmul.f32.gmra.mxu0 %v290
    %v354 = vpop.f32.mrf.mxu0
    %v355 = vadd.f32 0.0, %v354
    %356 = vmatmul.f32.gmra.mxu0 %v293
    %v357 = vpop.f32.mrf.mxu0
    %v358 = vadd.f32 0.0, %v357
    %359 = vmatmul.f32.gmra.mxu0 %v296
    %v360 = vpop.f32.mrf.mxu0
    %v361 = vadd.f32 0.0, %v360
    %362 = vmatmul.f32.gmra.mxu0 %v299
    %v363 = vpop.f32.mrf.mxu0
    %v364 = vadd.f32 0.0, %v363
    %365 = vmatmul.f32.gmra.mxu0 %v302
    %v366 = vpop.f32.mrf.mxu0
    %v367 = vadd.f32 0.0, %v366
    %368 = vmatmul.f32.gmra.mxu0 %v305
    %v369 = vpop.f32.mrf.mxu0
    %v370 = vadd.f32 0.0, %v369
    %371 = vmatmul.f32.gmra.mxu0 %v308
    %v372 = vpop.f32.mrf.mxu0
    %v373 = vadd.f32 0.0, %v372
    %374 = vdwg.mxu0
    %375 = vmatpush.msra.mxu0 0.0
    %376 = vmatpush.msra.mxu0 0.0
    %377 = vmatpush.msra.mxu0 0.0
    %378 = vmatpush.msra.mxu0 0.0
    %379 = vmatpush.msra.mxu0 0.0
    %380 = vmatpush.msra.mxu0 0.0
    %381 = vmatpush.msra.mxu0 0.0
    %382 = vmatpush.msra.mxu0 0.0
    %383 = vmatpush.msra.mxu0 0.0
    %384 = vmatpush.msra.mxu0 0.0
    %385 = vmatpush.msra.mxu0 0.0
    %386 = vmatpush.msra.mxu0 0.0
    %387 = vmatpush.msra.mxu0 0.0
    %388 = vmatpush.msra.mxu0 0.0
    %389 = vmatpush.msra.mxu0 0.0
    %390 = vmatpush.msra.mxu0 %v237
    %391 = vmatmul.f32.gmra.mxu0 %v263
    %v392 = vpop.f32.mrf.mxu0
    %v393 = vadd.f32 0.0, %v392
    %394 = vmatmul.f32.gmra.mxu0 %v266
    %v395 = vpop.f32.mrf.mxu0
    %v396 = vadd.f32 0.0, %v395
    %397 = vmatmul.f32.gmra.mxu0 %v269
    %v398 = vpop.f32.mrf.mxu0
    %v399 = vadd.f32 0.0, %v398
    %400 = vmatmul.f32.gmra.mxu0 %v272
    %v401 = vpop.f32.mrf.mxu0
    %v402 = vadd.f32 0.0, %v401
    %403 = vmatmul.f32.gmra.mxu0 %v275
    %v404 = vpop.f32.mrf.mxu0
    %v405 = vadd.f32 0.0, %v404
    %406 = vmatmul.f32.gmra.mxu0 %v278
    %v407 = vpop.f32.mrf.mxu0
    %v408 = vadd.f32 0.0, %v407
    %409 = vmatmul.f32.gmra.mxu0 %v281
    %v410 = vpop.f32.mrf.mxu0
    %v411 = vadd.f32 0.0, %v410
    %412 = vmatmul.f32.gmra.mxu0 %v284
    %v413 = vpop.f32.mrf.mxu0
    %v414 = vadd.f32 0.0, %v413
    %415 = vmatmul.f32.gmra.mxu0 %v287
    %v416 = vpop.f32.mrf.mxu0
    %v417 = vadd.f32 0.0, %v416
    %418 = vmatmul.f32.gmra.mxu0 %v290
    %v419 = vpop.f32.mrf.mxu0
    %v420 = vadd.f32 0.0, %v419
    %421 = vmatmul.f32.gmra.mxu0 %v293
    %v422 = vpop.f32.mrf.mxu0
    %v423 = vadd.f32 0.0, %v422
    %424 = vmatmul.f32.gmra.mxu0 %v296
    %v425 = vpop.f32.mrf.mxu0
    %v426 = vadd.f32 0.0, %v425
    %427 = vmatmul.f32.gmra.mxu0 %v299
    %v428 = vpop.f32.mrf.mxu0
    %v429 = vadd.f32 0.0, %v428
    %430 = vmatmul.f32.gmra.mxu0 %v302
    %v431 = vpop.f32.mrf.mxu0
    %v432 = vadd.f32 0.0, %v431
    %433 = vmatmul.f32.gmra.mxu0 %v305
    %v434 = vpop.f32.mrf.mxu0
    %v435 = vadd.f32 0.0, %v434
    %436 = vmatmul.f32.gmra.mxu0 %v308
    %v437 = vpop.f32.mrf.mxu0
    %v438 = vadd.f32 0.0, %v437
    %439 = vdwg.mxu0
    %440 = vmatpush.msra.mxu0 0.0
    %441 = vmatpush.msra.mxu0 0.0
    %442 = vmatpush.msra.mxu0 0.0
    %443 = vmatpush.msra.mxu0 0.0
    %444 = vmatpush.msra.mxu0 0.0
    %445 = vmatpush.msra.mxu0 0.0
    %446 = vmatpush.msra.mxu0 0.0
    %447 = vmatpush.msra.mxu0 0.0
    %448 = vmatpush.msra.mxu0 0.0
    %449 = vmatpush.msra.mxu0 0.0
    %450 = vmatpush.msra.mxu0 0.0
    %451 = vmatpush.msra.mxu0 0.0
    %452 = vmatpush.msra.mxu0 0.0
    %453 = vmatpush.msra.mxu0 0.0
    %454 = vmatpush.msra.mxu0 0.0
    %455 = vmatpush.msra.mxu0 %v238
    %456 = vmatmul.f32.gmra.mxu0 %v263
    %v457 = vpop.f32.mrf.mxu0
    %v458 = vadd.f32 0.0, %v457
    %459 = vmatmul.f32.gmra.mxu0 %v266
    %v460 = vpop.f32.mrf.mxu0
    %v461 = vadd.f32 0.0, %v460
    %462 = vmatmul.f32.gmra.mxu0 %v269
    %v463 = vpop.f32.mrf.mxu0
    %v464 = vadd.f32 0.0, %v463
    %465 = vmatmul.f32.gmra.mxu0 %v272
    %v466 = vpop.f32.mrf.mxu0
    %v467 = vadd.f32 0.0, %v466
    %468 = vmatmul.f32.gmra.mxu0 %v275
    %v469 = vpop.f32.mrf.mxu0
    %v470 = vadd.f32 0.0, %v469
    %471 = vmatmul.f32.gmra.mxu0 %v278
    %v472 = vpop.f32.mrf.mxu0
    %v473 = vadd.f32 0.0, %v472
    %474 = vmatmul.f32.gmra.mxu0 %v281
    %v475 = vpop.f32.mrf.mxu0
    %v476 = vadd.f32 0.0, %v475
    %477 = vmatmul.f32.gmra.mxu0 %v284
    %v478 = vpop.f32.mrf.mxu0
    %v479 = vadd.f32 0.0, %v478
    %480 = vmatmul.f32.gmra.mxu0 %v287
    %v481 = vpop.f32.mrf.mxu0
    %v482 = vadd.f32 0.0, %v481
    %483 = vmatmul.f32.gmra.mxu0 %v290
    %v484 = vpop.f32.mrf.mxu0
    %v485 = vadd.f32 0.0, %v484
    %486 = vmatmul.f32.gmra.mxu0 %v293
    %v487 = vpop.f32.mrf.mxu0
    %v488 = vadd.f32 0.0, %v487
    %489 = vmatmul.f32.gmra.mxu0 %v296
    %v490 = vpop.f32.mrf.mxu0
    %v491 = vadd.f32 0.0, %v490
    %492 = vmatmul.f32.gmra.mxu0 %v299
    %v493 = vpop.f32.mrf.mxu0
    %v494 = vadd.f32 0.0, %v493
    %495 = vmatmul.f32.gmra.mxu0 %v302
    %v496 = vpop.f32.mrf.mxu0
    %v497 = vadd.f32 0.0, %v496
    %498 = vmatmul.f32.gmra.mxu0 %v305
    %v499 = vpop.f32.mrf.mxu0
    %v500 = vadd.f32 0.0, %v499
    %501 = vmatmul.f32.gmra.mxu0 %v308
    %v502 = vpop.f32.mrf.mxu0
    %v503 = vadd.f32 0.0, %v502
    %504 = vdwg.mxu0
    %505 = vmatpush.msra.mxu0 0.0
    %506 = vmatpush.msra.mxu0 0.0
    %507 = vmatpush.msra.mxu0 0.0
    %508 = vmatpush.msra.mxu0 0.0
    %509 = vmatpush.msra.mxu0 0.0
    %510 = vmatpush.msra.mxu0 0.0
    %511 = vmatpush.msra.mxu0 0.0
    %512 = vmatpush.msra.mxu0 0.0
    %513 = vmatpush.msra.mxu0 0.0
    %514 = vmatpush.msra.mxu0 0.0
    %515 = vmatpush.msra.mxu0 0.0
    %516 = vmatpush.msra.mxu0 0.0
    %517 = vmatpush.msra.mxu0 0.0
    %518 = vmatpush.msra.mxu0 0.0
    %519 = vmatpush.msra.mxu0 0.0
    %520 = vmatpush.msra.mxu0 %v239
    %521 = vmatmul.f32.gmra.mxu0 %v263
    %v522 = vpop.f32.mrf.mxu0
    %v523 = vadd.f32 0.0, %v522
    %524 = vmatmul.f32.gmra.mxu0 %v266
    %v525 = vpop.f32.mrf.mxu0
    %v526 = vadd.f32 0.0, %v525
    %527 = vmatmul.f32.gmra.mxu0 %v269
    %v528 = vpop.f32.mrf.mxu0
    %v529 = vadd.f32 0.0, %v528
    %530 = vmatmul.f32.gmra.mxu0 %v272
    %v531 = vpop.f32.mrf.mxu0
    %v532 = vadd.f32 0.0, %v531
    %533 = vmatmul.f32.gmra.mxu0 %v275
    %v534 = vpop.f32.mrf.mxu0
    %v535 = vadd.f32 0.0, %v534
    %536 = vmatmul.f32.gmra.mxu0 %v278
    %v537 = vpop.f32.mrf.mxu0
    %v538 = vadd.f32 0.0, %v537
    %539 = vmatmul.f32.gmra.mxu0 %v281
    %v540 = vpop.f32.mrf.mxu0
    %v541 = vadd.f32 0.0, %v540
    %542 = vmatmul.f32.gmra.mxu0 %v284
    %v543 = vpop.f32.mrf.mxu0
    %v544 = vadd.f32 0.0, %v543
    %545 = vmatmul.f32.gmra.mxu0 %v287
    %v546 = vpop.f32.mrf.mxu0
    %v547 = vadd.f32 0.0, %v546
    %548 = vmatmul.f32.gmra.mxu0 %v290
    %v549 = vpop.f32.mrf.mxu0
    %v550 = vadd.f32 0.0, %v549
    %551 = vmatmul.f32.gmra.mxu0 %v293
    %v552 = vpop.f32.mrf.mxu0
    %v553 = vadd.f32 0.0, %v552
    %554 = vmatmul.f32.gmra.mxu0 %v296
    %v555 = vpop.f32.mrf.mxu0
    %v556 = vadd.f32 0.0, %v555
    %557 = vmatmul.f32.gmra.mxu0 %v299
    %v558 = vpop.f32.mrf.mxu0
    %v559 = vadd.f32 0.0, %v558
    %560 = vmatmul.f32.gmra.mxu0 %v302
    %v561 = vpop.f32.mrf.mxu0
    %v562 = vadd.f32 0.0, %v561
    %563 = vmatmul.f32.gmra.mxu0 %v305
    %v564 = vpop.f32.mrf.mxu0
    %v565 = vadd.f32 0.0, %v564
    %566 = vmatmul.f32.gmra.mxu0 %v308
    %v567 = vpop.f32.mrf.mxu0
    %v568 = vadd.f32 0.0, %v567
    %569 = vdwg.mxu0
    %570 = vmatpush.msra.mxu0 0.0
    %571 = vmatpush.msra.mxu0 0.0
    %572 = vmatpush.msra.mxu0 0.0
    %573 = vmatpush.msra.mxu0 0.0
    %574 = vmatpush.msra.mxu0 0.0
    %575 = vmatpush.msra.mxu0 0.0
    %576 = vmatpush.msra.mxu0 0.0
    %577 = vmatpush.msra.mxu0 0.0
    %578 = vmatpush.msra.mxu0 0.0
    %579 = vmatpush.msra.mxu0 0.0
    %580 = vmatpush.msra.mxu0 0.0
    %581 = vmatpush.msra.mxu0 0.0
    %582 = vmatpush.msra.mxu0 0.0
    %583 = vmatpush.msra.mxu0 0.0
    %584 = vmatpush.msra.mxu0 0.0
    %585 = vmatpush.msra.mxu0 %v240
    %586 = vmatmul.f32.gmra.mxu0 %v263
    %v587 = vpop.f32.mrf.mxu0
    %v588 = vadd.f32 0.0, %v587
    %589 = vmatmul.f32.gmra.mxu0 %v266
    %v590 = vpop.f32.mrf.mxu0
    %v591 = vadd.f32 0.0, %v590
    %592 = vmatmul.f32.gmra.mxu0 %v269
    %v593 = vpop.f32.mrf.mxu0
    %v594 = vadd.f32 0.0, %v593
    %595 = vmatmul.f32.gmra.mxu0 %v272
    %v596 = vpop.f32.mrf.mxu0
    %v597 = vadd.f32 0.0, %v596
    %598 = vmatmul.f32.gmra.mxu0 %v275
    %v599 = vpop.f32.mrf.mxu0
    %v600 = vadd.f32 0.0, %v599
    %601 = vmatmul.f32.gmra.mxu0 %v278
    %v602 = vpop.f32.mrf.mxu0
    %v603 = vadd.f32 0.0, %v602
    %604 = vmatmul.f32.gmra.mxu0 %v281
    %v605 = vpop.f32.mrf.mxu0
    %v606 = vadd.f32 0.0, %v605
    %607 = vmatmul.f32.gmra.mxu0 %v284
    %v608 = vpop.f32.mrf.mxu0
    %v609 = vadd.f32 0.0, %v608
    %610 = vmatmul.f32.gmra.mxu0 %v287
    %v611 = vpop.f32.mrf.mxu0
    %v612 = vadd.f32 0.0, %v611
    %613 = vmatmul.f32.gmra.mxu0 %v290
    %v614 = vpop.f32.mrf.mxu0
    %v615 = vadd.f32 0.0, %v614
    %616 = vmatmul.f32.gmra.mxu0 %v293
    %v617 = vpop.f32.mrf.mxu0
    %v618 = vadd.f32 0.0, %v617
    %619 = vmatmul.f32.gmra.mxu0 %v296
    %v620 = vpop.f32.mrf.mxu0
    %v621 = vadd.f32 0.0, %v620
    %622 = vmatmul.f32.gmra.mxu0 %v299
    %v623 = vpop.f32.mrf.mxu0
    %v624 = vadd.f32 0.0, %v623
    %625 = vmatmul.f32.gmra.mxu0 %v302
    %v626 = vpop.f32.mrf.mxu0
    %v627 = vadd.f32 0.0, %v626
    %628 = vmatmul.f32.gmra.mxu0 %v305
    %v629 = vpop.f32.mrf.mxu0
    %v630 = vadd.f32 0.0, %v629
    %631 = vmatmul.f32.gmra.mxu0 %v308
    %v632 = vpop.f32.mrf.mxu0
    %v633 = vadd.f32 0.0, %v632
    %634 = vdwg.mxu0
    %635 = vmatpush.msra.mxu0 0.0
    %636 = vmatpush.msra.mxu0 0.0
    %637 = vmatpush.msra.mxu0 0.0
    %638 = vmatpush.msra.mxu0 0.0
    %639 = vmatpush.msra.mxu0 0.0
    %640 = vmatpush.msra.mxu0 0.0
    %641 = vmatpush.msra.mxu0 0.0
    %642 = vmatpush.msra.mxu0 0.0
    %643 = vmatpush.msra.mxu0 0.0
    %644 = vmatpush.msra.mxu0 0.0
    %645 = vmatpush.msra.mxu0 0.0
    %646 = vmatpush.msra.mxu0 0.0
    %647 = vmatpush.msra.mxu0 0.0
    %648 = vmatpush.msra.mxu0 0.0
    %649 = vmatpush.msra.mxu0 0.0
    %650 = vmatpush.msra.mxu0 %v241
    %651 = vmatmul.f32.gmra.mxu0 %v263
    %v652 = vpop.f32.mrf.mxu0
    %v653 = vadd.f32 0.0, %v652
    %654 = vmatmul.f32.gmra.mxu0 %v266
    %v655 = vpop.f32.mrf.mxu0
    %v656 = vadd.f32 0.0, %v655
    %657 = vmatmul.f32.gmra.mxu0 %v269
    %v658 = vpop.f32.mrf.mxu0
    %v659 = vadd.f32 0.0, %v658
    %660 = vmatmul.f32.gmra.mxu0 %v272
    %v661 = vpop.f32.mrf.mxu0
    %v662 = vadd.f32 0.0, %v661
    %663 = vmatmul.f32.gmra.mxu0 %v275
    %v664 = vpop.f32.mrf.mxu0
    %v665 = vadd.f32 0.0, %v664
    %666 = vmatmul.f32.gmra.mxu0 %v278
    %v667 = vpop.f32.mrf.mxu0
    %v668 = vadd.f32 0.0, %v667
    %669 = vmatmul.f32.gmra.mxu0 %v281
    %v670 = vpop.f32.mrf.mxu0
    %v671 = vadd.f32 0.0, %v670
    %672 = vmatmul.f32.gmra.mxu0 %v284
    %v673 = vpop.f32.mrf.mxu0
    %v674 = vadd.f32 0.0, %v673
    %675 = vmatmul.f32.gmra.mxu0 %v287
    %v676 = vpop.f32.mrf.mxu0
    %v677 = vadd.f32 0.0, %v676
    %678 = vmatmul.f32.gmra.mxu0 %v290
    %v679 = vpop.f32.mrf.mxu0
    %v680 = vadd.f32 0.0, %v679
    %681 = vmatmul.f32.gmra.mxu0 %v293
    %v682 = vpop.f32.mrf.mxu0
    %v683 = vadd.f32 0.0, %v682
    %684 = vmatmul.f32.gmra.mxu0 %v296
    %v685 = vpop.f32.mrf.mxu0
    %v686 = vadd.f32 0.0, %v685
    %687 = vmatmul.f32.gmra.mxu0 %v299
    %v688 = vpop.f32.mrf.mxu0
    %v689 = vadd.f32 0.0, %v688
    %690 = vmatmul.f32.gmra.mxu0 %v302
    %v691 = vpop.f32.mrf.mxu0
    %v692 = vadd.f32 0.0, %v691
    %693 = vmatmul.f32.gmra.mxu0 %v305
    %v694 = vpop.f32.mrf.mxu0
    %v695 = vadd.f32 0.0, %v694
    %696 = vmatmul.f32.gmra.mxu0 %v308
    %v697 = vpop.f32.mrf.mxu0
    %v698 = vadd.f32 0.0, %v697
    %699 = vdwg.mxu0
    %700 = vmatpush.msra.mxu0 0.0
    %701 = vmatpush.msra.mxu0 0.0
    %702 = vmatpush.msra.mxu0 0.0
    %703 = vmatpush.msra.mxu0 0.0
    %704 = vmatpush.msra.mxu0 0.0
    %705 = vmatpush.msra.mxu0 0.0
    %706 = vmatpush.msra.mxu0 0.0
    %707 = vmatpush.msra.mxu0 0.0
    %708 = vmatpush.msra.mxu0 0.0
    %709 = vmatpush.msra.mxu0 0.0
    %710 = vmatpush.msra.mxu0 0.0
    %711 = vmatpush.msra.mxu0 0.0
    %712 = vmatpush.msra.mxu0 0.0
    %713 = vmatpush.msra.mxu0 0.0
    %714 = vmatpush.msra.mxu0 0.0
    %715 = vmatpush.msra.mxu0 %v242
    %716 = vmatmul.f32.gmra.mxu0 %v263
    %v717 = vpop.f32.mrf.mxu0
    %v718 = vadd.f32 0.0, %v717
    %719 = vmatmul.f32.gmra.mxu0 %v266
    %v720 = vpop.f32.mrf.mxu0
    %v721 = vadd.f32 0.0, %v720
    %722 = vmatmul.f32.gmra.mxu0 %v269
    %v723 = vpop.f32.mrf.mxu0
    %v724 = vadd.f32 0.0, %v723
    %725 = vmatmul.f32.gmra.mxu0 %v272
    %v726 = vpop.f32.mrf.mxu0
    %v727 = vadd.f32 0.0, %v726
    %728 = vmatmul.f32.gmra.mxu0 %v275
    %v729 = vpop.f32.mrf.mxu0
    %v730 = vadd.f32 0.0, %v729
    %731 = vmatmul.f32.gmra.mxu0 %v278
    %v732 = vpop.f32.mrf.mxu0
    %v733 = vadd.f32 0.0, %v732
    %734 = vmatmul.f32.gmra.mxu0 %v281
    %v735 = vpop.f32.mrf.mxu0
    %v736 = vadd.f32 0.0, %v735
    %737 = vmatmul.f32.gmra.mxu0 %v284
    %v738 = vpop.f32.mrf.mxu0
    %v739 = vadd.f32 0.0, %v738
    %740 = vmatmul.f32.gmra.mxu0 %v287
    %v741 = vpop.f32.mrf.mxu0
    %v742 = vadd.f32 0.0, %v741
    %743 = vmatmul.f32.gmra.mxu0 %v290
    %v744 = vpop.f32.mrf.mxu0
    %v745 = vadd.f32 0.0, %v744
    %746 = vmatmul.f32.gmra.mxu0 %v293
    %v747 = vpop.f32.mrf.mxu0
    %v748 = vadd.f32 0.0, %v747
    %749 = vmatmul.f32.gmra.mxu0 %v296
    %v750 = vpop.f32.mrf.mxu0
    %v751 = vadd.f32 0.0, %v750
    %752 = vmatmul.f32.gmra.mxu0 %v299
    %v753 = vpop.f32.mrf.mxu0
    %v754 = vadd.f32 0.0, %v753
    %755 = vmatmul.f32.gmra.mxu0 %v302
    %v756 = vpop.f32.mrf.mxu0
    %v757 = vadd.f32 0.0, %v756
    %758 = vmatmul.f32.gmra.mxu0 %v305
    %v759 = vpop.f32.mrf.mxu0
    %v760 = vadd.f32 0.0, %v759
    %761 = vmatmul.f32.gmra.mxu0 %v308
    %v762 = vpop.f32.mrf.mxu0
    %v763 = vadd.f32 0.0, %v762
    %764 = vdwg.mxu0
    %765 = vmatpush.msra.mxu0 0.0
    %766 = vmatpush.msra.mxu0 0.0
    %767 = vmatpush.msra.mxu0 0.0
    %768 = vmatpush.msra.mxu0 0.0
    %769 = vmatpush.msra.mxu0 0.0
    %770 = vmatpush.msra.mxu0 0.0
    %771 = vmatpush.msra.mxu0 0.0
    %772 = vmatpush.msra.mxu0 0.0
    %773 = vmatpush.msra.mxu0 0.0
    %774 = vmatpush.msra.mxu0 0.0
    %775 = vmatpush.msra.mxu0 0.0
    %776 = vmatpush.msra.mxu0 0.0
    %777 = vmatpush.msra.mxu0 0.0
    %778 = vmatpush.msra.mxu0 0.0
    %779 = vmatpush.msra.mxu0 0.0
    %780 = vmatpush.msra.mxu0 %v243
    %781 = vmatmul.f32.gmra.mxu0 %v263
    %v782 = vpop.f32.mrf.mxu0
    %v783 = vadd.f32 0.0, %v782
    %784 = vmatmul.f32.gmra.mxu0 %v266
    %v785 = vpop.f32.mrf.mxu0
    %v786 = vadd.f32 0.0, %v785
    %787 = vmatmul.f32.gmra.mxu0 %v269
    %v788 = vpop.f32.mrf.mxu0
    %v789 = vadd.f32 0.0, %v788
    %790 = vmatmul.f32.gmra.mxu0 %v272
    %v791 = vpop.f32.mrf.mxu0
    %v792 = vadd.f32 0.0, %v791
    %793 = vmatmul.f32.gmra.mxu0 %v275
    %v794 = vpop.f32.mrf.mxu0
    %v795 = vadd.f32 0.0, %v794
    %796 = vmatmul.f32.gmra.mxu0 %v278
    %v797 = vpop.f32.mrf.mxu0
    %v798 = vadd.f32 0.0, %v797
    %799 = vmatmul.f32.gmra.mxu0 %v281
    %v800 = vpop.f32.mrf.mxu0
    %v801 = vadd.f32 0.0, %v800
    %802 = vmatmul.f32.gmra.mxu0 %v284
    %v803 = vpop.f32.mrf.mxu0
    %v804 = vadd.f32 0.0, %v803
    %805 = vmatmul.f32.gmra.mxu0 %v287
    %v806 = vpop.f32.mrf.mxu0
    %v807 = vadd.f32 0.0, %v806
    %808 = vmatmul.f32.gmra.mxu0 %v290
    %v809 = vpop.f32.mrf.mxu0
    %v810 = vadd.f32 0.0, %v809
    %811 = vmatmul.f32.gmra.mxu0 %v293
    %v812 = vpop.f32.mrf.mxu0
    %v813 = vadd.f32 0.0, %v812
    %814 = vmatmul.f32.gmra.mxu0 %v296
    %v815 = vpop.f32.mrf.mxu0
    %v816 = vadd.f32 0.0, %v815
    %817 = vmatmul.f32.gmra.mxu0 %v299
    %v818 = vpop.f32.mrf.mxu0
    %v819 = vadd.f32 0.0, %v818
    %820 = vmatmul.f32.gmra.mxu0 %v302
    %v821 = vpop.f32.mrf.mxu0
    %v822 = vadd.f32 0.0, %v821
    %823 = vmatmul.f32.gmra.mxu0 %v305
    %v824 = vpop.f32.mrf.mxu0
    %v825 = vadd.f32 0.0, %v824
    %826 = vmatmul.f32.gmra.mxu0 %v308
    %v827 = vpop.f32.mrf.mxu0
    %v828 = vadd.f32 0.0, %v827
    %829 = vdwg.mxu0
    %v831 = vsel %vm261, %v328, 0
    %v834 = vsel %vm261, %v331, 0
    %v837 = vsel %vm261, %v334, 0
    %v840 = vsel %vm261, %v337, 0
    %v843 = vsel %vm261, %v340, 0
    %v846 = vsel %vm261, %v343, 0
    %v849 = vsel %vm261, %v346, 0
    %v852 = vsel %vm261, %v349, 0
    %v855 = vsel %vm261, %v352, 0
    %v858 = vsel %vm261, %v355, 0
    %v861 = vsel %vm261, %v358, 0
    %v864 = vsel %vm261, %v361, 0
    %v867 = vsel %vm261, %v364, 0
    %v870 = vsel %vm261, %v367, 0
    %v873 = vsel %vm261, %v370, 0
    %v876 = vsel %vm261, %v373, 0
    %v879 = vsel %vm261, %v393, 0
    %v882 = vsel %vm261, %v396, 0
    %v885 = vsel %vm261, %v399, 0
    %v888 = vsel %vm261, %v402, 0
    %v891 = vsel %vm261, %v405, 0
    %v894 = vsel %vm261, %v408, 0
    %v897 = vsel %vm261, %v411, 0
    %v900 = vsel %vm261, %v414, 0
    %v903 = vsel %vm261, %v417, 0
    %v906 = vsel %vm261, %v420, 0
    %v909 = vsel %vm261, %v423, 0
    %v912 = vsel %vm261, %v426, 0
    %v915 = vsel %vm261, %v429, 0
    %v918 = vsel %vm261, %v432, 0
    %v921 = vsel %vm261, %v435, 0
    %v924 = vsel %vm261, %v438, 0
    %v927 = vsel %vm261, %v458, 0
    %v930 = vsel %vm261, %v461, 0
    %v933 = vsel %vm261, %v464, 0
    %v936 = vsel %vm261, %v467, 0
    %v939 = vsel %vm261, %v470, 0
    %v942 = vsel %vm261, %v473, 0
    %v945 = vsel %vm261, %v476, 0
    %v948 = vsel %vm261, %v479, 0
    %v951 = vsel %vm261, %v482, 0
    %v954 = vsel %vm261, %v485, 0
    %v957 = vsel %vm261, %v488, 0
    %v960 = vsel %vm261, %v491, 0
    %v963 = vsel %vm261, %v494, 0
    %v966 = vsel %vm261, %v497, 0
    %v969 = vsel %vm261, %v500, 0
    %v972 = vsel %vm261, %v503, 0
    %v975 = vsel %vm261, %v523, 0
    %v978 = vsel %vm261, %v526, 0
    %v981 = vsel %vm261, %v529, 0
    %v984 = vsel %vm261, %v532, 0
    %v987 = vsel %vm261, %v535, 0
    %v990 = vsel %vm261, %v538, 0
    %v993 = vsel %vm261, %v541, 0
    %v996 = vsel %vm261, %v544, 0
    %v999 = vsel %vm261, %v547, 0
    %v1002 = vsel %vm261, %v550, 0
    %v1005 = vsel %vm261, %v553, 0
    %v1008 = vsel %vm261, %v556, 0
    %v1011 = vsel %vm261, %v559, 0
    %v1014 = vsel %vm261, %v562, 0
    %v1017 = vsel %vm261, %v565, 0
    %v1020 = vsel %vm261, %v568, 0
    %v1023 = vsel %vm261, %v588, 0
    %v1026 = vsel %vm261, %v591, 0
    %v1029 = vsel %vm261, %v594, 0
    %v1032 = vsel %vm261, %v597, 0
    %v1035 = vsel %vm261, %v600, 0
    %v1038 = vsel %vm261, %v603, 0
    %v1041 = vsel %vm261, %v606, 0
    %v1044 = vsel %vm261, %v609, 0
    %v1047 = vsel %vm261, %v612, 0
    %v1050 = vsel %vm261, %v615, 0
    %v1053 = vsel %vm261, %v618, 0
    %v1056 = vsel %vm261, %v621, 0
    %v1059 = vsel %vm261, %v624, 0
    %v1062 = vsel %vm261, %v627, 0
    %v1065 = vsel %vm261, %v630, 0
    %v1068 = vsel %vm261, %v633, 0
    %v1071 = vsel %vm261, %v653, 0
    %v1074 = vsel %vm261, %v656, 0
    %v1077 = vsel %vm261, %v659, 0
    %v1080 = vsel %vm261, %v662, 0
    %v1083 = vsel %vm261, %v665, 0
    %v1086 = vsel %vm261, %v668, 0
    %v1089 = vsel %vm261, %v671, 0
    %v1092 = vsel %vm261, %v674, 0
    %v1095 = vsel %vm261, %v677, 0
    %v1098 = vsel %vm261, %v680, 0
    %v1101 = vsel %vm261, %v683, 0
    %v1104 = vsel %vm261, %v686, 0
    %v1107 = vsel %vm261, %v689, 0
    %v1110 = vsel %vm261, %v692, 0
    %v1113 = vsel %vm261, %v695, 0
    %v1116 = vsel %vm261, %v698, 0
    %v1119 = vsel %vm261, %v718, 0
    %v1122 = vsel %vm261, %v721, 0
    %v1125 = vsel %vm261, %v724, 0
    %v1128 = vsel %vm261, %v727, 0
    %v1131 = vsel %vm261, %v730, 0
    %v1134 = vsel %vm261, %v733, 0
    %v1137 = vsel %vm261, %v736, 0
    %v1140 = vsel %vm261, %v739, 0
    %v1143 = vsel %vm261, %v742, 0
    %v1146 = vsel %vm261, %v745, 0
    %v1149 = vsel %vm261, %v748, 0
    %v1152 = vsel %vm261, %v751, 0
    %v1155 = vsel %vm261, %v754, 0
    %v1158 = vsel %vm261, %v757, 0
    %v1161 = vsel %vm261, %v760, 0
    %v1164 = vsel %vm261, %v763, 0
    %v1167 = vsel %vm261, %v783, 0
    %v1170 = vsel %vm261, %v786, 0
    %v1173 = vsel %vm261, %v789, 0
    %v1176 = vsel %vm261, %v792, 0
    %v1179 = vsel %vm261, %v795, 0
    %v1182 = vsel %vm261, %v798, 0
    %v1185 = vsel %vm261, %v801, 0
    %v1188 = vsel %vm261, %v804, 0
    %v1191 = vsel %vm261, %v807, 0
    %v1194 = vsel %vm261, %v810, 0
    %v1197 = vsel %vm261, %v813, 0
    %v1200 = vsel %vm261, %v816, 0
    %v1203 = vsel %vm261, %v819, 0
    %v1206 = vsel %vm261, %v822, 0
    %v1209 = vsel %vm261, %v825, 0
    %v1212 = vsel %vm261, %v828, 0
    %1214 = vmatpush.msra.mxu0 0.0
    %1215 = vmatpush.msra.mxu0 0.0
    %1216 = vmatpush.msra.mxu0 0.0
    %1217 = vmatpush.msra.mxu0 0.0
    %1218 = vmatpush.msra.mxu0 0.0
    %1219 = vmatpush.msra.mxu0 0.0
    %1220 = vmatpush.msra.mxu0 0.0
    %1221 = vmatpush.msra.mxu0 0.0
    %1222 = vmatpush.msra.mxu0 0.0
    %1223 = vmatpush.msra.mxu0 0.0
    %1224 = vmatpush.msra.mxu0 0.0
    %1225 = vmatpush.msra.mxu0 0.0
    %1226 = vmatpush.msra.mxu0 0.0
    %1227 = vmatpush.msra.mxu0 0.0
    %1228 = vmatpush.msra.mxu0 0.0
    %1229 = vmatpush.msra.mxu0 %v260
    %1230 = vmatmul.f32.gmra.mxu0 %v831
    %v1231 = vpop.f32.mrf.mxu0
    %v1232 = vadd.f32 0.0, %v1231
    %1233 = vmatmul.f32.gmra.mxu0 %v834
    %v1234 = vpop.f32.mrf.mxu0
    %v1235 = vadd.f32 0.0, %v1234
    %1236 = vmatmul.f32.gmra.mxu0 %v837
    %v1237 = vpop.f32.mrf.mxu0
    %v1238 = vadd.f32 0.0, %v1237
    %1239 = vmatmul.f32.gmra.mxu0 %v840
    %v1240 = vpop.f32.mrf.mxu0
    %v1241 = vadd.f32 0.0, %v1240
    %1242 = vmatmul.f32.gmra.mxu0 %v843
    %v1243 = vpop.f32.mrf.mxu0
    %v1244 = vadd.f32 0.0, %v1243
    %1245 = vmatmul.f32.gmra.mxu0 %v846
    %v1246 = vpop.f32.mrf.mxu0
    %v1247 = vadd.f32 0.0, %v1246
    %1248 = vmatmul.f32.gmra.mxu0 %v849
    %v1249 = vpop.f32.mrf.mxu0
    %v1250 = vadd.f32 0.0, %v1249
    %1251 = vmatmul.f32.gmra.mxu0 %v852
    %v1252 = vpop.f32.mrf.mxu0
    %v1253 = vadd.f32 0.0, %v1252
    %1254 = vmatmul.f32.gmra.mxu0 %v855
    %v1255 = vpop.f32.mrf.mxu0
    %v1256 = vadd.f32 0.0, %v1255
    %1257 = vmatmul.f32.gmra.mxu0 %v858
    %v1258 = vpop.f32.mrf.mxu0
    %v1259 = vadd.f32 0.0, %v1258
    %1260 = vmatmul.f32.gmra.mxu0 %v861
    %v1261 = vpop.f32.mrf.mxu0
    %v1262 = vadd.f32 0.0, %v1261
    %1263 = vmatmul.f32.gmra.mxu0 %v864
    %v1264 = vpop.f32.mrf.mxu0
    %v1265 = vadd.f32 0.0, %v1264
    %1266 = vmatmul.f32.gmra.mxu0 %v867
    %v1267 = vpop.f32.mrf.mxu0
    %v1268 = vadd.f32 0.0, %v1267
    %1269 = vmatmul.f32.gmra.mxu0 %v870
    %v1270 = vpop.f32.mrf.mxu0
    %v1271 = vadd.f32 0.0, %v1270
    %1272 = vmatmul.f32.gmra.mxu0 %v873
    %v1273 = vpop.f32.mrf.mxu0
    %v1274 = vadd.f32 0.0, %v1273
    %1275 = vmatmul.f32.gmra.mxu0 %v876
    %v1276 = vpop.f32.mrf.mxu0
    %v1277 = vadd.f32 0.0, %v1276
    %1278 = vmatmul.f32.gmra.mxu0 %v879
    %v1279 = vpop.f32.mrf.mxu0
    %v1280 = vadd.f32 0.0, %v1279
    %1281 = vmatmul.f32.gmra.mxu0 %v882
    %v1282 = vpop.f32.mrf.mxu0
    %v1283 = vadd.f32 0.0, %v1282
    %1284 = vmatmul.f32.gmra.mxu0 %v885
    %v1285 = vpop.f32.mrf.mxu0
    %v1286 = vadd.f32 0.0, %v1285
    %1287 = vmatmul.f32.gmra.mxu0 %v888
    %v1288 = vpop.f32.mrf.mxu0
    %v1289 = vadd.f32 0.0, %v1288
    %1290 = vmatmul.f32.gmra.mxu0 %v891
    %v1291 = vpop.f32.mrf.mxu0
    %v1292 = vadd.f32 0.0, %v1291
    %1293 = vmatmul.f32.gmra.mxu0 %v894
    %v1294 = vpop.f32.mrf.mxu0
    %v1295 = vadd.f32 0.0, %v1294
    %1296 = vmatmul.f32.gmra.mxu0 %v897
    %v1297 = vpop.f32.mrf.mxu0
    %v1298 = vadd.f32 0.0, %v1297
    %1299 = vmatmul.f32.gmra.mxu0 %v900
    %v1300 = vpop.f32.mrf.mxu0
    %v1301 = vadd.f32 0.0, %v1300
    %1302 = vmatmul.f32.gmra.mxu0 %v903
    %v1303 = vpop.f32.mrf.mxu0
    %v1304 = vadd.f32 0.0, %v1303
    %1305 = vmatmul.f32.gmra.mxu0 %v906
    %v1306 = vpop.f32.mrf.mxu0
    %v1307 = vadd.f32 0.0, %v1306
    %1308 = vmatmul.f32.gmra.mxu0 %v909
    %v1309 = vpop.f32.mrf.mxu0
    %v1310 = vadd.f32 0.0, %v1309
    %1311 = vmatmul.f32.gmra.mxu0 %v912
    %v1312 = vpop.f32.mrf.mxu0
    %v1313 = vadd.f32 0.0, %v1312
    %1314 = vmatmul.f32.gmra.mxu0 %v915
    %v1315 = vpop.f32.mrf.mxu0
    %v1316 = vadd.f32 0.0, %v1315
    %1317 = vmatmul.f32.gmra.mxu0 %v918
    %v1318 = vpop.f32.mrf.mxu0
    %v1319 = vadd.f32 0.0, %v1318
    %1320 = vmatmul.f32.gmra.mxu0 %v921
    %v1321 = vpop.f32.mrf.mxu0
    %v1322 = vadd.f32 0.0, %v1321
    %1323 = vmatmul.f32.gmra.mxu0 %v924
    %v1324 = vpop.f32.mrf.mxu0
    %v1325 = vadd.f32 0.0, %v1324
    %1326 = vmatmul.f32.gmra.mxu0 %v927
    %v1327 = vpop.f32.mrf.mxu0
    %v1328 = vadd.f32 0.0, %v1327
    %1329 = vmatmul.f32.gmra.mxu0 %v930
    %v1330 = vpop.f32.mrf.mxu0
    %v1331 = vadd.f32 0.0, %v1330
    %1332 = vmatmul.f32.gmra.mxu0 %v933
    %v1333 = vpop.f32.mrf.mxu0
    %v1334 = vadd.f32 0.0, %v1333
    %1335 = vmatmul.f32.gmra.mxu0 %v936
    %v1336 = vpop.f32.mrf.mxu0
    %v1337 = vadd.f32 0.0, %v1336
    %1338 = vmatmul.f32.gmra.mxu0 %v939
    %v1339 = vpop.f32.mrf.mxu0
    %v1340 = vadd.f32 0.0, %v1339
    %1341 = vmatmul.f32.gmra.mxu0 %v942
    %v1342 = vpop.f32.mrf.mxu0
    %v1343 = vadd.f32 0.0, %v1342
    %1344 = vmatmul.f32.gmra.mxu0 %v945
    %v1345 = vpop.f32.mrf.mxu0
    %v1346 = vadd.f32 0.0, %v1345
    %1347 = vmatmul.f32.gmra.mxu0 %v948
    %v1348 = vpop.f32.mrf.mxu0
    %v1349 = vadd.f32 0.0, %v1348
    %1350 = vmatmul.f32.gmra.mxu0 %v951
    %v1351 = vpop.f32.mrf.mxu0
    %v1352 = vadd.f32 0.0, %v1351
    %1353 = vmatmul.f32.gmra.mxu0 %v954
    %v1354 = vpop.f32.mrf.mxu0
    %v1355 = vadd.f32 0.0, %v1354
    %1356 = vmatmul.f32.gmra.mxu0 %v957
    %v1357 = vpop.f32.mrf.mxu0
    %v1358 = vadd.f32 0.0, %v1357
    %1359 = vmatmul.f32.gmra.mxu0 %v960
    %v1360 = vpop.f32.mrf.mxu0
    %v1361 = vadd.f32 0.0, %v1360
    %1362 = vmatmul.f32.gmra.mxu0 %v963
    %v1363 = vpop.f32.mrf.mxu0
    %v1364 = vadd.f32 0.0, %v1363
    %1365 = vmatmul.f32.gmra.mxu0 %v966
    %v1366 = vpop.f32.mrf.mxu0
    %v1367 = vadd.f32 0.0, %v1366
    %1368 = vmatmul.f32.gmra.mxu0 %v969
    %v1369 = vpop.f32.mrf.mxu0
    %v1370 = vadd.f32 0.0, %v1369
    %1371 = vmatmul.f32.gmra.mxu0 %v972
    %v1372 = vpop.f32.mrf.mxu0
    %v1373 = vadd.f32 0.0, %v1372
    %1374 = vmatmul.f32.gmra.mxu0 %v975
    %v1375 = vpop.f32.mrf.mxu0
    %v1376 = vadd.f32 0.0, %v1375
    %1377 = vmatmul.f32.gmra.mxu0 %v978
    %v1378 = vpop.f32.mrf.mxu0
    %v1379 = vadd.f32 0.0, %v1378
    %1380 = vmatmul.f32.gmra.mxu0 %v981
    %v1381 = vpop.f32.mrf.mxu0
    %v1382 = vadd.f32 0.0, %v1381
    %1383 = vmatmul.f32.gmra.mxu0 %v984
    %v1384 = vpop.f32.mrf.mxu0
    %v1385 = vadd.f32 0.0, %v1384
    %1386 = vmatmul.f32.gmra.mxu0 %v987
    %v1387 = vpop.f32.mrf.mxu0
    %v1388 = vadd.f32 0.0, %v1387
    %1389 = vmatmul.f32.gmra.mxu0 %v990
    %v1390 = vpop.f32.mrf.mxu0
    %v1391 = vadd.f32 0.0, %v1390
    %1392 = vmatmul.f32.gmra.mxu0 %v993
    %v1393 = vpop.f32.mrf.mxu0
    %v1394 = vadd.f32 0.0, %v1393
    %1395 = vmatmul.f32.gmra.mxu0 %v996
    %v1396 = vpop.f32.mrf.mxu0
    %v1397 = vadd.f32 0.0, %v1396
    %1398 = vmatmul.f32.gmra.mxu0 %v999
    %v1399 = vpop.f32.mrf.mxu0
    %v1400 = vadd.f32 0.0, %v1399
    %1401 = vmatmul.f32.gmra.mxu0 %v1002
    %v1402 = vpop.f32.mrf.mxu0
    %v1403 = vadd.f32 0.0, %v1402
    %1404 = vmatmul.f32.gmra.mxu0 %v1005
    %v1405 = vpop.f32.mrf.mxu0
    %v1406 = vadd.f32 0.0, %v1405
    %1407 = vmatmul.f32.gmra.mxu0 %v1008
    %v1408 = vpop.f32.mrf.mxu0
    %v1409 = vadd.f32 0.0, %v1408
    %1410 = vmatmul.f32.gmra.mxu0 %v1011
    %v1411 = vpop.f32.mrf.mxu0
    %v1412 = vadd.f32 0.0, %v1411
    %1413 = vmatmul.f32.gmra.mxu0 %v1014
    %v1414 = vpop.f32.mrf.mxu0
    %v1415 = vadd.f32 0.0, %v1414
    %1416 = vmatmul.f32.gmra.mxu0 %v1017
    %v1417 = vpop.f32.mrf.mxu0
    %v1418 = vadd.f32 0.0, %v1417
    %1419 = vmatmul.f32.gmra.mxu0 %v1020
    %v1420 = vpop.f32.mrf.mxu0
    %v1421 = vadd.f32 0.0, %v1420
    %1422 = vmatmul.f32.gmra.mxu0 %v1023
    %v1423 = vpop.f32.mrf.mxu0
    %v1424 = vadd.f32 0.0, %v1423
    %1425 = vmatmul.f32.gmra.mxu0 %v1026
    %v1426 = vpop.f32.mrf.mxu0
    %v1427 = vadd.f32 0.0, %v1426
    %1428 = vmatmul.f32.gmra.mxu0 %v1029
    %v1429 = vpop.f32.mrf.mxu0
    %v1430 = vadd.f32 0.0, %v1429
    %1431 = vmatmul.f32.gmra.mxu0 %v1032
    %v1432 = vpop.f32.mrf.mxu0
    %v1433 = vadd.f32 0.0, %v1432
    %1434 = vmatmul.f32.gmra.mxu0 %v1035
    %v1435 = vpop.f32.mrf.mxu0
    %v1436 = vadd.f32 0.0, %v1435
    %1437 = vmatmul.f32.gmra.mxu0 %v1038
    %v1438 = vpop.f32.mrf.mxu0
    %v1439 = vadd.f32 0.0, %v1438
    %1440 = vmatmul.f32.gmra.mxu0 %v1041
    %v1441 = vpop.f32.mrf.mxu0
    %v1442 = vadd.f32 0.0, %v1441
    %1443 = vmatmul.f32.gmra.mxu0 %v1044
    %v1444 = vpop.f32.mrf.mxu0
    %v1445 = vadd.f32 0.0, %v1444
    %1446 = vmatmul.f32.gmra.mxu0 %v1047
    %v1447 = vpop.f32.mrf.mxu0
    %v1448 = vadd.f32 0.0, %v1447
    %1449 = vmatmul.f32.gmra.mxu0 %v1050
    %v1450 = vpop.f32.mrf.mxu0
    %v1451 = vadd.f32 0.0, %v1450
    %1452 = vmatmul.f32.gmra.mxu0 %v1053
    %v1453 = vpop.f32.mrf.mxu0
    %v1454 = vadd.f32 0.0, %v1453
    %1455 = vmatmul.f32.gmra.mxu0 %v1056
    %v1456 = vpop.f32.mrf.mxu0
    %v1457 = vadd.f32 0.0, %v1456
    %1458 = vmatmul.f32.gmra.mxu0 %v1059
    %v1459 = vpop.f32.mrf.mxu0
    %v1460 = vadd.f32 0.0, %v1459
    %1461 = vmatmul.f32.gmra.mxu0 %v1062
    %v1462 = vpop.f32.mrf.mxu0
    %v1463 = vadd.f32 0.0, %v1462
    %1464 = vmatmul.f32.gmra.mxu0 %v1065
    %v1465 = vpop.f32.mrf.mxu0
    %v1466 = vadd.f32 0.0, %v1465
    %1467 = vmatmul.f32.gmra.mxu0 %v1068
    %v1468 = vpop.f32.mrf.mxu0
    %v1469 = vadd.f32 0.0, %v1468
    %1470 = vmatmul.f32.gmra.mxu0 %v1071
    %v1471 = vpop.f32.mrf.mxu0
    %v1472 = vadd.f32 0.0, %v1471
    %1473 = vmatmul.f32.gmra.mxu0 %v1074
    %v1474 = vpop.f32.mrf.mxu0
    %v1475 = vadd.f32 0.0, %v1474
    %1476 = vmatmul.f32.gmra.mxu0 %v1077
    %v1477 = vpop.f32.mrf.mxu0
    %v1478 = vadd.f32 0.0, %v1477
    %1479 = vmatmul.f32.gmra.mxu0 %v1080
    %v1480 = vpop.f32.mrf.mxu0
    %v1481 = vadd.f32 0.0, %v1480
    %1482 = vmatmul.f32.gmra.mxu0 %v1083
    %v1483 = vpop.f32.mrf.mxu0
    %v1484 = vadd.f32 0.0, %v1483
    %1485 = vmatmul.f32.gmra.mxu0 %v1086
    %v1486 = vpop.f32.mrf.mxu0
    %v1487 = vadd.f32 0.0, %v1486
    %1488 = vmatmul.f32.gmra.mxu0 %v1089
    %v1489 = vpop.f32.mrf.mxu0
    %v1490 = vadd.f32 0.0, %v1489
    %1491 = vmatmul.f32.gmra.mxu0 %v1092
    %v1492 = vpop.f32.mrf.mxu0
    %v1493 = vadd.f32 0.0, %v1492
    %1494 = vmatmul.f32.gmra.mxu0 %v1095
    %v1495 = vpop.f32.mrf.mxu0
    %v1496 = vadd.f32 0.0, %v1495
    %1497 = vmatmul.f32.gmra.mxu0 %v1098
    %v1498 = vpop.f32.mrf.mxu0
    %v1499 = vadd.f32 0.0, %v1498
    %1500 = vmatmul.f32.gmra.mxu0 %v1101
    %v1501 = vpop.f32.mrf.mxu0
    %v1502 = vadd.f32 0.0, %v1501
    %1503 = vmatmul.f32.gmra.mxu0 %v1104
    %v1504 = vpop.f32.mrf.mxu0
    %v1505 = vadd.f32 0.0, %v1504
    %1506 = vmatmul.f32.gmra.mxu0 %v1107
    %v1507 = vpop.f32.mrf.mxu0
    %v1508 = vadd.f32 0.0, %v1507
    %1509 = vmatmul.f32.gmra.mxu0 %v1110
    %v1510 = vpop.f32.mrf.mxu0
    %v1511 = vadd.f32 0.0, %v1510
    %1512 = vmatmul.f32.gmra.mxu0 %v1113
    %v1513 = vpop.f32.mrf.mxu0
    %v1514 = vadd.f32 0.0, %v1513
    %1515 = vmatmul.f32.gmra.mxu0 %v1116
    %v1516 = vpop.f32.mrf.mxu0
    %v1517 = vadd.f32 0.0, %v1516
    %1518 = vmatmul.f32.gmra.mxu0 %v1119
    %v1519 = vpop.f32.mrf.mxu0
    %v1520 = vadd.f32 0.0, %v1519
    %1521 = vmatmul.f32.gmra.mxu0 %v1122
    %v1522 = vpop.f32.mrf.mxu0
    %v1523 = vadd.f32 0.0, %v1522
    %1524 = vmatmul.f32.gmra.mxu0 %v1125
    %v1525 = vpop.f32.mrf.mxu0
    %v1526 = vadd.f32 0.0, %v1525
    %1527 = vmatmul.f32.gmra.mxu0 %v1128
    %v1528 = vpop.f32.mrf.mxu0
    %v1529 = vadd.f32 0.0, %v1528
    %1530 = vmatmul.f32.gmra.mxu0 %v1131
    %v1531 = vpop.f32.mrf.mxu0
    %v1532 = vadd.f32 0.0, %v1531
    %1533 = vmatmul.f32.gmra.mxu0 %v1134
    %v1534 = vpop.f32.mrf.mxu0
    %v1535 = vadd.f32 0.0, %v1534
    %1536 = vmatmul.f32.gmra.mxu0 %v1137
    %v1537 = vpop.f32.mrf.mxu0
    %v1538 = vadd.f32 0.0, %v1537
    %1539 = vmatmul.f32.gmra.mxu0 %v1140
    %v1540 = vpop.f32.mrf.mxu0
    %v1541 = vadd.f32 0.0, %v1540
    %1542 = vmatmul.f32.gmra.mxu0 %v1143
    %v1543 = vpop.f32.mrf.mxu0
    %v1544 = vadd.f32 0.0, %v1543
    %1545 = vmatmul.f32.gmra.mxu0 %v1146
    %v1546 = vpop.f32.mrf.mxu0
    %v1547 = vadd.f32 0.0, %v1546
    %1548 = vmatmul.f32.gmra.mxu0 %v1149
    %v1549 = vpop.f32.mrf.mxu0
    %v1550 = vadd.f32 0.0, %v1549
    %1551 = vmatmul.f32.gmra.mxu0 %v1152
    %v1552 = vpop.f32.mrf.mxu0
    %v1553 = vadd.f32 0.0, %v1552
    %1554 = vmatmul.f32.gmra.mxu0 %v1155
    %v1555 = vpop.f32.mrf.mxu0
    %v1556 = vadd.f32 0.0, %v1555
    %1557 = vmatmul.f32.gmra.mxu0 %v1158
    %v1558 = vpop.f32.mrf.mxu0
    %v1559 = vadd.f32 0.0, %v1558
    %1560 = vmatmul.f32.gmra.mxu0 %v1161
    %v1561 = vpop.f32.mrf.mxu0
    %v1562 = vadd.f32 0.0, %v1561
    %1563 = vmatmul.f32.gmra.mxu0 %v1164
    %v1564 = vpop.f32.mrf.mxu0
    %v1565 = vadd.f32 0.0, %v1564
    %1566 = vmatmul.f32.gmra.mxu0 %v1167
    %v1567 = vpop.f32.mrf.mxu0
    %v1568 = vadd.f32 0.0, %v1567
    %1569 = vmatmul.f32.gmra.mxu0 %v1170
    %v1570 = vpop.f32.mrf.mxu0
    %v1571 = vadd.f32 0.0, %v1570
    %1572 = vmatmul.f32.gmra.mxu0 %v1173
    %v1573 = vpop.f32.mrf.mxu0
    %v1574 = vadd.f32 0.0, %v1573
    %1575 = vmatmul.f32.gmra.mxu0 %v1176
    %v1576 = vpop.f32.mrf.mxu0
    %v1577 = vadd.f32 0.0, %v1576
    %1578 = vmatmul.f32.gmra.mxu0 %v1179
    %v1579 = vpop.f32.mrf.mxu0
    %v1580 = vadd.f32 0.0, %v1579
    %1581 = vmatmul.f32.gmra.mxu0 %v1182
    %v1582 = vpop.f32.mrf.mxu0
    %v1583 = vadd.f32 0.0, %v1582
    %1584 = vmatmul.f32.gmra.mxu0 %v1185
    %v1585 = vpop.f32.mrf.mxu0
    %v1586 = vadd.f32 0.0, %v1585
    %1587 = vmatmul.f32.gmra.mxu0 %v1188
    %v1588 = vpop.f32.mrf.mxu0
    %v1589 = vadd.f32 0.0, %v1588
    %1590 = vmatmul.f32.gmra.mxu0 %v1191
    %v1591 = vpop.f32.mrf.mxu0
    %v1592 = vadd.f32 0.0, %v1591
    %1593 = vmatmul.f32.gmra.mxu0 %v1194
    %v1594 = vpop.f32.mrf.mxu0
    %v1595 = vadd.f32 0.0, %v1594
    %1596 = vmatmul.f32.gmra.mxu0 %v1197
    %v1597 = vpop.f32.mrf.mxu0
    %v1598 = vadd.f32 0.0, %v1597
    %1599 = vmatmul.f32.gmra.mxu0 %v1200
    %v1600 = vpop.f32.mrf.mxu0
    %v1601 = vadd.f32 0.0, %v1600
    %1602 = vmatmul.f32.gmra.mxu0 %v1203
    %v1603 = vpop.f32.mrf.mxu0
    %v1604 = vadd.f32 0.0, %v1603
    %1605 = vmatmul.f32.gmra.mxu0 %v1206
    %v1606 = vpop.f32.mrf.mxu0
    %v1607 = vadd.f32 0.0, %v1606
    %1608 = vmatmul.f32.gmra.mxu0 %v1209
    %v1609 = vpop.f32.mrf.mxu0
    %v1610 = vadd.f32 0.0, %v1609
    %1611 = vmatmul.f32.gmra.mxu0 %v1212
    %v1612 = vpop.f32.mrf.mxu0
    %v1613 = vadd.f32 0.0, %v1612
    %1614 = vdwg.mxu0
    %v1615 = vadd.f32 %v108, %v1232
    %v1616 = vadd.f32 %v109, %v1235
    %v1617 = vadd.f32 %v110, %v1238
    %v1618 = vadd.f32 %v111, %v1241
    %v1619 = vadd.f32 %v112, %v1244
    %v1620 = vadd.f32 %v113, %v1247
    %v1621 = vadd.f32 %v114, %v1250
    %v1622 = vadd.f32 %v115, %v1253
    %v1623 = vadd.f32 %v116, %v1256
    %v1624 = vadd.f32 %v117, %v1259
    %v1625 = vadd.f32 %v118, %v1262
    %v1626 = vadd.f32 %v119, %v1265
    %v1627 = vadd.f32 %v120, %v1268
    %v1628 = vadd.f32 %v121, %v1271
    %v1629 = vadd.f32 %v122, %v1274
    %v1630 = vadd.f32 %v123, %v1277
    %v1631 = vadd.f32 %v124, %v1280
    %v1632 = vadd.f32 %v125, %v1283
    %v1633 = vadd.f32 %v126, %v1286
    %v1634 = vadd.f32 %v127, %v1289
    %v1635 = vadd.f32 %v128, %v1292
    %v1636 = vadd.f32 %v129, %v1295
    %v1637 = vadd.f32 %v130, %v1298
    %v1638 = vadd.f32 %v131, %v1301
    %v1639 = vadd.f32 %v132, %v1304
    %v1640 = vadd.f32 %v133, %v1307
    %v1641 = vadd.f32 %v134, %v1310
    %v1642 = vadd.f32 %v135, %v1313
    %v1643 = vadd.f32 %v136, %v1316
    %v1644 = vadd.f32 %v137, %v1319
    %v1645 = vadd.f32 %v138, %v1322
    %v1646 = vadd.f32 %v139, %v1325
    %v1647 = vadd.f32 %v140, %v1328
    %v1648 = vadd.f32 %v141, %v1331
    %v1649 = vadd.f32 %v142, %v1334
    %v1650 = vadd.f32 %v143, %v1337
    %v1651 = vadd.f32 %v144, %v1340
    %v1652 = vadd.f32 %v145, %v1343
    %v1653 = vadd.f32 %v146, %v1346
    %v1654 = vadd.f32 %v147, %v1349
    %v1655 = vadd.f32 %v148, %v1352
    %v1656 = vadd.f32 %v149, %v1355
    %v1657 = vadd.f32 %v150, %v1358
    %v1658 = vadd.f32 %v151, %v1361
    %v1659 = vadd.f32 %v152, %v1364
    %v1660 = vadd.f32 %v153, %v1367
    %v1661 = vadd.f32 %v154, %v1370
    %v1662 = vadd.f32 %v155, %v1373
    %v1663 = vadd.f32 %v156, %v1376
    %v1664 = vadd.f32 %v157, %v1379
    %v1665 = vadd.f32 %v158, %v1382
    %v1666 = vadd.f32 %v159, %v1385
    %v1667 = vadd.f32 %v160, %v1388
    %v1668 = vadd.f32 %v161, %v1391
    %v1669 = vadd.f32 %v162, %v1394
    %v1670 = vadd.f32 %v163, %v1397
    %v1671 = vadd.f32 %v164, %v1400
    %v1672 = vadd.f32 %v165, %v1403
    %v1673 = vadd.f32 %v166, %v1406
    %v1674 = vadd.f32 %v167, %v1409
    %v1675 = vadd.f32 %v168, %v1412
    %v1676 = vadd.f32 %v169, %v1415
    %v1677 = vadd.f32 %v170, %v1418
    %v1678 = vadd.f32 %v171, %v1421
    %v1679 = vadd.f32 %v172, %v1424
    %v1680 = vadd.f32 %v173, %v1427
    %v1681 = vadd.f32 %v174, %v1430
    %v1682 = vadd.f32 %v175, %v1433
    %v1683 = vadd.f32 %v176, %v1436
    %v1684 = vadd.f32 %v177, %v1439
    %v1685 = vadd.f32 %v178, %v1442
    %v1686 = vadd.f32 %v179, %v1445
    %v1687 = vadd.f32 %v180, %v1448
    %v1688 = vadd.f32 %v181, %v1451
    %v1689 = vadd.f32 %v182, %v1454
    %v1690 = vadd.f32 %v183, %v1457
    %v1691 = vadd.f32 %v184, %v1460
    %v1692 = vadd.f32 %v185, %v1463
    %v1693 = vadd.f32 %v186, %v1466
    %v1694 = vadd.f32 %v187, %v1469
    %v1695 = vadd.f32 %v188, %v1472
    %v1696 = vadd.f32 %v189, %v1475
    %v1697 = vadd.f32 %v190, %v1478
    %v1698 = vadd.f32 %v191, %v1481
    %v1699 = vadd.f32 %v192, %v1484
    %v1700 = vadd.f32 %v193, %v1487
    %v1701 = vadd.f32 %v194, %v1490
    %v1702 = vadd.f32 %v195, %v1493
    %v1703 = vadd.f32 %v196, %v1496
    %v1704 = vadd.f32 %v197, %v1499
    %v1705 = vadd.f32 %v198, %v1502
    %v1706 = vadd.f32 %v199, %v1505
    %v1707 = vadd.f32 %v200, %v1508
    %v1708 = vadd.f32 %v201, %v1511
    %v1709 = vadd.f32 %v202, %v1514
    %v1710 = vadd.f32 %v203, %v1517
    %v1711 = vadd.f32 %v204, %v1520
    %v1712 = vadd.f32 %v205, %v1523
    %v1713 = vadd.f32 %v206, %v1526
    %v1714 = vadd.f32 %v207, %v1529
    %v1715 = vadd.f32 %v208, %v1532
    %v1716 = vadd.f32 %v209, %v1535
    %v1717 = vadd.f32 %v210, %v1538
    %v1718 = vadd.f32 %v211, %v1541
    %v1719 = vadd.f32 %v212, %v1544
    %v1720 = vadd.f32 %v213, %v1547
    %v1721 = vadd.f32 %v214, %v1550
    %v1722 = vadd.f32 %v215, %v1553
    %v1723 = vadd.f32 %v216, %v1556
    %v1724 = vadd.f32 %v217, %v1559
    %v1725 = vadd.f32 %v218, %v1562
    %v1726 = vadd.f32 %v219, %v1565
    %v1727 = vadd.f32 %v220, %v1568
    %v1728 = vadd.f32 %v221, %v1571
    %v1729 = vadd.f32 %v222, %v1574
    %v1730 = vadd.f32 %v223, %v1577
    %v1731 = vadd.f32 %v224, %v1580
    %v1732 = vadd.f32 %v225, %v1583
    %v1733 = vadd.f32 %v226, %v1586
    %v1734 = vadd.f32 %v227, %v1589
    %v1735 = vadd.f32 %v228, %v1592
    %v1736 = vadd.f32 %v229, %v1595
    %v1737 = vadd.f32 %v230, %v1598
    %v1738 = vadd.f32 %v231, %v1601
    %v1739 = vadd.f32 %v232, %v1604
    %v1740 = vadd.f32 %v233, %v1607
    %v1741 = vadd.f32 %v234, %v1610
    %v1742 = vadd.f32 %v235, %v1613
    %v1743 = vld [vmem:[%s1] sm:$0xff]
    %v1744 = vld [vmem:[%s1 + $0x8] sm:$0xff]
    %v1745 = vld [vmem:[%s1 + $0x10] sm:$0xff]
    %v1746 = vld [vmem:[%s1 + $0x18] sm:$0xff]
    %v1747 = vld [vmem:[%s1 + $0x20] sm:$0xff]
    %v1748 = vld [vmem:[%s1 + $0x28] sm:$0xff]
    %v1749 = vld [vmem:[%s1 + $0x30] sm:$0xff]
    %v1750 = vld [vmem:[%s1 + $0x38] sm:$0xff]
    %v1751 = vld [vmem:[%s1 + $0x40] sm:$0xff]
    %v1752 = vld [vmem:[%s1 + $0x48] sm:$0xff]
    %v1753 = vld [vmem:[%s1 + $0x50] sm:$0xff]
    %v1754 = vld [vmem:[%s1 + $0x58] sm:$0xff]
    %v1755 = vld [vmem:[%s1 + $0x60] sm:$0xff]
    %v1756 = vld [vmem:[%s1 + $0x68] sm:$0xff]
    %v1757 = vld [vmem:[%s1 + $0x70] sm:$0xff]
    %v1758 = vld [vmem:[%s1 + $0x78] sm:$0xff]
    %v1759 = vld [vmem:[%s7] sm:$0xff]
    %v1760 = vld [vmem:[%s7 + $0x8] sm:$0xff]
    %v1761 = vld [vmem:[%s7 + $0x10] sm:$0xff]
    %v1762 = vld [vmem:[%s7 + $0x18] sm:$0xff]
    %v1763 = vld [vmem:[%s7 + $0x20] sm:$0xff]
    %v1764 = vld [vmem:[%s7 + $0x28] sm:$0xff]
    %v1765 = vld [vmem:[%s7 + $0x30] sm:$0xff]
    %v1766 = vld [vmem:[%s7 + $0x38] sm:$0xff]
    %v1767 = vld [vmem:[%s7 + $0x40] sm:$0xff]
    %v1768 = vld [vmem:[%s7 + $0x48] sm:$0xff]
    %v1769 = vld [vmem:[%s7 + $0x50] sm:$0xff]
    %v1770 = vld [vmem:[%s7 + $0x58] sm:$0xff]
    %v1771 = vld [vmem:[%s7 + $0x60] sm:$0xff]
    %v1772 = vld [vmem:[%s7 + $0x68] sm:$0xff]
    %v1773 = vld [vmem:[%s7 + $0x70] sm:$0xff]
    %v1774 = vld [vmem:[%s7 + $0x78] sm:$0xff]
    %v1775 = vld [vmem:[#allocation7] sm:$0xff]
    %v1776 = vld [vmem:[#allocation7 + $0x8] sm:$0xff]
    %vm1777 = vcmask 130048
    %v1779 = vsel %vm1777, %v1759, 0
    %v1782 = vsel %vm1777, %v1760, 0
    %v1785 = vsel %vm1777, %v1761, 0
    %v1788 = vsel %vm1777, %v1762, 0
    %v1791 = vsel %vm1777, %v1763, 0
    %v1794 = vsel %vm1777, %v1764, 0
    %v1797 = vsel %vm1777, %v1765, 0
    %v1800 = vsel %vm1777, %v1766, 0
    %v1803 = vsel %vm1777, %v1767, 0
    %v1806 = vsel %vm1777, %v1768, 0
    %v1809 = vsel %vm1777, %v1769, 0
    %v1812 = vsel %vm1777, %v1770, 0
    %v1815 = vsel %vm1777, %v1771, 0
    %v1818 = vsel %vm1777, %v1772, 0
    %v1821 = vsel %vm1777, %v1773, 0
    %v1824 = vsel %vm1777, %v1774, 0
    %1826 = vmatpush.msra.mxu0 0.0
    %1827 = vmatpush.msra.mxu0 0.0
    %1828 = vmatpush.msra.mxu0 0.0
    %1829 = vmatpush.msra.mxu0 0.0
    %1830 = vmatpush.msra.mxu0 0.0
    %1831 = vmatpush.msra.mxu0 0.0
    %1832 = vmatpush.msra.mxu0 0.0
    %1833 = vmatpush.msra.mxu0 0.0
    %1834 = vmatpush.msra.mxu0 0.0
    %1835 = vmatpush.msra.mxu0 0.0
    %1836 = vmatpush.msra.mxu0 0.0
    %1837 = vmatpush.msra.mxu0 0.0
    %1838 = vmatpush.msra.mxu0 0.0
    %1839 = vmatpush.msra.mxu0 0.0
    %1840 = vmatpush.msra.mxu0 %v1744
    %1841 = vmatpush.msra.mxu0 %v1743
    %1842 = vmatmul.f32.gmra.mxu0 %v1779
    %v1843 = vpop.f32.mrf.mxu0
    %v1844 = vadd.f32 0.0, %v1843
    %1845 = vmatmul.f32.gmra.mxu0 %v1782
    %v1846 = vpop.f32.mrf.mxu0
    %v1847 = vadd.f32 0.0, %v1846
    %1848 = vmatmul.f32.gmra.mxu0 %v1785
    %v1849 = vpop.f32.mrf.mxu0
    %v1850 = vadd.f32 0.0, %v1849
    %1851 = vmatmul.f32.gmra.mxu0 %v1788
    %v1852 = vpop.f32.mrf.mxu0
    %v1853 = vadd.f32 0.0, %v1852
    %1854 = vmatmul.f32.gmra.mxu0 %v1791
    %v1855 = vpop.f32.mrf.mxu0
    %v1856 = vadd.f32 0.0, %v1855
    %1857 = vmatmul.f32.gmra.mxu0 %v1794
    %v1858 = vpop.f32.mrf.mxu0
    %v1859 = vadd.f32 0.0, %v1858
    %1860 = vmatmul.f32.gmra.mxu0 %v1797
    %v1861 = vpop.f32.mrf.mxu0
    %v1862 = vadd.f32 0.0, %v1861
    %1863 = vmatmul.f32.gmra.mxu0 %v1800
    %v1864 = vpop.f32.mrf.mxu0
    %v1865 = vadd.f32 0.0, %v1864
    %1866 = vmatmul.f32.gmra.mxu0 %v1803
    %v1867 = vpop.f32.mrf.mxu0
    %v1868 = vadd.f32 0.0, %v1867
    %1869 = vmatmul.f32.gmra.mxu0 %v1806
    %v1870 = vpop.f32.mrf.mxu0
    %v1871 = vadd.f32 0.0, %v1870
    %1872 = vmatmul.f32.gmra.mxu0 %v1809
    %v1873 = vpop.f32.mrf.mxu0
    %v1874 = vadd.f32 0.0, %v1873
    %1875 = vmatmul.f32.gmra.mxu0 %v1812
    %v1876 = vpop.f32.mrf.mxu0
    %v1877 = vadd.f32 0.0, %v1876
    %1878 = vmatmul.f32.gmra.mxu0 %v1815
    %v1879 = vpop.f32.mrf.mxu0
    %v1880 = vadd.f32 0.0, %v1879
    %1881 = vmatmul.f32.gmra.mxu0 %v1818
    %v1882 = vpop.f32.mrf.mxu0
    %v1883 = vadd.f32 0.0, %v1882
    %1884 = vmatmul.f32.gmra.mxu0 %v1821
    %v1885 = vpop.f32.mrf.mxu0
    %v1886 = vadd.f32 0.0, %v1885
    %1887 = vmatmul.f32.gmra.mxu0 %v1824
    %v1888 = vpop.f32.mrf.mxu0
    %v1889 = vadd.f32 0.0, %v1888
    %1890 = vdwg.mxu0
    %1891 = vmatpush.msra.mxu0 0.0
    %1892 = vmatpush.msra.mxu0 0.0
    %1893 = vmatpush.msra.mxu0 0.0
    %1894 = vmatpush.msra.mxu0 0.0
    %1895 = vmatpush.msra.mxu0 0.0
    %1896 = vmatpush.msra.mxu0 0.0
    %1897 = vmatpush.msra.mxu0 0.0
    %1898 = vmatpush.msra.mxu0 0.0
    %1899 = vmatpush.msra.mxu0 0.0
    %1900 = vmatpush.msra.mxu0 0.0
    %1901 = vmatpush.msra.mxu0 0.0
    %1902 = vmatpush.msra.mxu0 0.0
    %1903 = vmatpush.msra.mxu0 0.0
    %1904 = vmatpush.msra.mxu0 0.0
    %1905 = vmatpush.msra.mxu0 %v1746
    %1906 = vmatpush.msra.mxu0 %v1745
    %1907 = vmatmul.f32.gmra.mxu0 %v1779
    %v1908 = vpop.f32.mrf.mxu0
    %v1909 = vadd.f32 0.0, %v1908
    %1910 = vmatmul.f32.gmra.mxu0 %v1782
    %v1911 = vpop.f32.mrf.mxu0
    %v1912 = vadd.f32 0.0, %v1911
    %1913 = vmatmul.f32.gmra.mxu0 %v1785
    %v1914 = vpop.f32.mrf.mxu0
    %v1915 = vadd.f32 0.0, %v1914
    %1916 = vmatmul.f32.gmra.mxu0 %v1788
    %v1917 = vpop.f32.mrf.mxu0
    %v1918 = vadd.f32 0.0, %v1917
    %1919 = vmatmul.f32.gmra.mxu0 %v1791
    %v1920 = vpop.f32.mrf.mxu0
    %v1921 = vadd.f32 0.0, %v1920
    %1922 = vmatmul.f32.gmra.mxu0 %v1794
    %v1923 = vpop.f32.mrf.mxu0
    %v1924 = vadd.f32 0.0, %v1923
    %1925 = vmatmul.f32.gmra.mxu0 %v1797
    %v1926 = vpop.f32.mrf.mxu0
    %v1927 = vadd.f32 0.0, %v1926
    %1928 = vmatmul.f32.gmra.mxu0 %v1800
    %v1929 = vpop.f32.mrf.mxu0
    %v1930 = vadd.f32 0.0, %v1929
    %1931 = vmatmul.f32.gmra.mxu0 %v1803
    %v1932 = vpop.f32.mrf.mxu0
    %v1933 = vadd.f32 0.0, %v1932
    %1934 = vmatmul.f32.gmra.mxu0 %v1806
    %v1935 = vpop.f32.mrf.mxu0
    %v1936 = vadd.f32 0.0, %v1935
    %1937 = vmatmul.f32.gmra.mxu0 %v1809
    %v1938 = vpop.f32.mrf.mxu0
    %v1939 = vadd.f32 0.0, %v1938
    %1940 = vmatmul.f32.gmra.mxu0 %v1812
    %v1941 = vpop.f32.mrf.mxu0
    %v1942 = vadd.f32 0.0, %v1941
    %1943 = vmatmul.f32.gmra.mxu0 %v1815
    %v1944 = vpop.f32.mrf.mxu0
    %v1945 = vadd.f32 0.0, %v1944
    %1946 = vmatmul.f32.gmra.mxu0 %v1818
    %v1947 = vpop.f32.mrf.mxu0
    %v1948 = vadd.f32 0.0, %v1947
    %1949 = vmatmul.f32.gmra.mxu0 %v1821
    %v1950 = vpop.f32.mrf.mxu0
    %v1951 = vadd.f32 0.0, %v1950
    %1952 = vmatmul.f32.gmra.mxu0 %v1824
    %v1953 = vpop.f32.mrf.mxu0
    %v1954 = vadd.f32 0.0, %v1953
    %1955 = vdwg.mxu0
    %1956 = vmatpush.msra.mxu0 0.0
    %1957 = vmatpush.msra.mxu0 0.0
    %1958 = vmatpush.msra.mxu0 0.0
    %1959 = vmatpush.msra.mxu0 0.0
    %1960 = vmatpush.msra.mxu0 0.0
    %1961 = vmatpush.msra.mxu0 0.0
    %1962 = vmatpush.msra.mxu0 0.0
    %1963 = vmatpush.msra.mxu0 0.0
    %1964 = vmatpush.msra.mxu0 0.0
    %1965 = vmatpush.msra.mxu0 0.0
    %1966 = vmatpush.msra.mxu0 0.0
    %1967 = vmatpush.msra.mxu0 0.0
    %1968 = vmatpush.msra.mxu0 0.0
    %1969 = vmatpush.msra.mxu0 0.0
    %1970 = vmatpush.msra.mxu0 %v1748
    %1971 = vmatpush.msra.mxu0 %v1747
    %1972 = vmatmul.f32.gmra.mxu0 %v1779
    %v1973 = vpop.f32.mrf.mxu0
    %v1974 = vadd.f32 0.0, %v1973
    %1975 = vmatmul.f32.gmra.mxu0 %v1782
    %v1976 = vpop.f32.mrf.mxu0
    %v1977 = vadd.f32 0.0, %v1976
    %1978 = vmatmul.f32.gmra.mxu0 %v1785
    %v1979 = vpop.f32.mrf.mxu0
    %v1980 = vadd.f32 0.0, %v1979
    %1981 = vmatmul.f32.gmra.mxu0 %v1788
    %v1982 = vpop.f32.mrf.mxu0
    %v1983 = vadd.f32 0.0, %v1982
    %1984 = vmatmul.f32.gmra.mxu0 %v1791
    %v1985 = vpop.f32.mrf.mxu0
    %v1986 = vadd.f32 0.0, %v1985
    %1987 = vmatmul.f32.gmra.mxu0 %v1794
    %v1988 = vpop.f32.mrf.mxu0
    %v1989 = vadd.f32 0.0, %v1988
    %1990 = vmatmul.f32.gmra.mxu0 %v1797
    %v1991 = vpop.f32.mrf.mxu0
    %v1992 = vadd.f32 0.0, %v1991
    %1993 = vmatmul.f32.gmra.mxu0 %v1800
    %v1994 = vpop.f32.mrf.mxu0
    %v1995 = vadd.f32 0.0, %v1994
    %1996 = vmatmul.f32.gmra.mxu0 %v1803
    %v1997 = vpop.f32.mrf.mxu0
    %v1998 = vadd.f32 0.0, %v1997
    %1999 = vmatmul.f32.gmra.mxu0 %v1806
    %v2000 = vpop.f32.mrf.mxu0
    %v2001 = vadd.f32 0.0, %v2000
    %2002 = vmatmul.f32.gmra.mxu0 %v1809
    %v2003 = vpop.f32.mrf.mxu0
    %v2004 = vadd.f32 0.0, %v2003
    %2005 = vmatmul.f32.gmra.mxu0 %v1812
    %v2006 = vpop.f32.mrf.mxu0
    %v2007 = vadd.f32 0.0, %v2006
    %2008 = vmatmul.f32.gmra.mxu0 %v1815
    %v2009 = vpop.f32.mrf.mxu0
    %v2010 = vadd.f32 0.0, %v2009
    %2011 = vmatmul.f32.gmra.mxu0 %v1818
    %v2012 = vpop.f32.mrf.mxu0
    %v2013 = vadd.f32 0.0, %v2012
    %2014 = vmatmul.f32.gmra.mxu0 %v1821
    %v2015 = vpop.f32.mrf.mxu0
    %v2016 = vadd.f32 0.0, %v2015
    %2017 = vmatmul.f32.gmra.mxu0 %v1824
    %v2018 = vpop.f32.mrf.mxu0
    %v2019 = vadd.f32 0.0, %v2018
    %2020 = vdwg.mxu0
    %2021 = vmatpush.msra.mxu0 0.0
    %2022 = vmatpush.msra.mxu0 0.0
    %2023 = vmatpush.msra.mxu0 0.0
    %2024 = vmatpush.msra.mxu0 0.0
    %2025 = vmatpush.msra.mxu0 0.0
    %2026 = vmatpush.msra.mxu0 0.0
    %2027 = vmatpush.msra.mxu0 0.0
    %2028 = vmatpush.msra.mxu0 0.0
    %2029 = vmatpush.msra.mxu0 0.0
    %2030 = vmatpush.msra.mxu0 0.0
    %2031 = vmatpush.msra.mxu0 0.0
    %2032 = vmatpush.msra.mxu0 0.0
    %2033 = vmatpush.msra.mxu0 0.0
    %2034 = vmatpush.msra.mxu0 0.0
    %2035 = vmatpush.msra.mxu0 %v1750
    %2036 = vmatpush.msra.mxu0 %v1749
    %2037 = vmatmul.f32.gmra.mxu0 %v1779
    %v2038 = vpop.f32.mrf.mxu0
    %v2039 = vadd.f32 0.0, %v2038
    %2040 = vmatmul.f32.gmra.mxu0 %v1782
    %v2041 = vpop.f32.mrf.mxu0
    %v2042 = vadd.f32 0.0, %v2041
    %2043 = vmatmul.f32.gmra.mxu0 %v1785
    %v2044 = vpop.f32.mrf.mxu0
    %v2045 = vadd.f32 0.0, %v2044
    %2046 = vmatmul.f32.gmra.mxu0 %v1788
    %v2047 = vpop.f32.mrf.mxu0
    %v2048 = vadd.f32 0.0, %v2047
    %2049 = vmatmul.f32.gmra.mxu0 %v1791
    %v2050 = vpop.f32.mrf.mxu0
    %v2051 = vadd.f32 0.0, %v2050
    %2052 = vmatmul.f32.gmra.mxu0 %v1794
    %v2053 = vpop.f32.mrf.mxu0
    %v2054 = vadd.f32 0.0, %v2053
    %2055 = vmatmul.f32.gmra.mxu0 %v1797
    %v2056 = vpop.f32.mrf.mxu0
    %v2057 = vadd.f32 0.0, %v2056
    %2058 = vmatmul.f32.gmra.mxu0 %v1800
    %v2059 = vpop.f32.mrf.mxu0
    %v2060 = vadd.f32 0.0, %v2059
    %2061 = vmatmul.f32.gmra.mxu0 %v1803
    %v2062 = vpop.f32.mrf.mxu0
    %v2063 = vadd.f32 0.0, %v2062
    %2064 = vmatmul.f32.gmra.mxu0 %v1806
    %v2065 = vpop.f32.mrf.mxu0
    %v2066 = vadd.f32 0.0, %v2065
    %2067 = vmatmul.f32.gmra.mxu0 %v1809
    %v2068 = vpop.f32.mrf.mxu0
    %v2069 = vadd.f32 0.0, %v2068
    %2070 = vmatmul.f32.gmra.mxu0 %v1812
    %v2071 = vpop.f32.mrf.mxu0
    %v2072 = vadd.f32 0.0, %v2071
    %2073 = vmatmul.f32.gmra.mxu0 %v1815
    %v2074 = vpop.f32.mrf.mxu0
    %v2075 = vadd.f32 0.0, %v2074
    %2076 = vmatmul.f32.gmra.mxu0 %v1818
    %v2077 = vpop.f32.mrf.mxu0
    %v2078 = vadd.f32 0.0, %v2077
    %2079 = vmatmul.f32.gmra.mxu0 %v1821
    %v2080 = vpop.f32.mrf.mxu0
    %v2081 = vadd.f32 0.0, %v2080
    %2082 = vmatmul.f32.gmra.mxu0 %v1824
    %v2083 = vpop.f32.mrf.mxu0
    %v2084 = vadd.f32 0.0, %v2083
    %2085 = vdwg.mxu0
    %2086 = vmatpush.msra.mxu0 0.0
    %2087 = vmatpush.msra.mxu0 0.0
    %2088 = vmatpush.msra.mxu0 0.0
    %2089 = vmatpush.msra.mxu0 0.0
    %2090 = vmatpush.msra.mxu0 0.0
    %2091 = vmatpush.msra.mxu0 0.0
    %2092 = vmatpush.msra.mxu0 0.0
    %2093 = vmatpush.msra.mxu0 0.0
    %2094 = vmatpush.msra.mxu0 0.0
    %2095 = vmatpush.msra.mxu0 0.0
    %2096 = vmatpush.msra.mxu0 0.0
    %2097 = vmatpush.msra.mxu0 0.0
    %2098 = vmatpush.msra.mxu0 0.0
    %2099 = vmatpush.msra.mxu0 0.0
    %2100 = vmatpush.msra.mxu0 %v1752
    %2101 = vmatpush.msra.mxu0 %v1751
    %2102 = vmatmul.f32.gmra.mxu0 %v1779
    %v2103 = vpop.f32.mrf.mxu0
    %v2104 = vadd.f32 0.0, %v2103
    %2105 = vmatmul.f32.gmra.mxu0 %v1782
    %v2106 = vpop.f32.mrf.mxu0
    %v2107 = vadd.f32 0.0, %v2106
    %2108 = vmatmul.f32.gmra.mxu0 %v1785
    %v2109 = vpop.f32.mrf.mxu0
    %v2110 = vadd.f32 0.0, %v2109
    %2111 = vmatmul.f32.gmra.mxu0 %v1788
    %v2112 = vpop.f32.mrf.mxu0
    %v2113 = vadd.f32 0.0, %v2112
    %2114 = vmatmul.f32.gmra.mxu0 %v1791
    %v2115 = vpop.f32.mrf.mxu0
    %v2116 = vadd.f32 0.0, %v2115
    %2117 = vmatmul.f32.gmra.mxu0 %v1794
    %v2118 = vpop.f32.mrf.mxu0
    %v2119 = vadd.f32 0.0, %v2118
    %2120 = vmatmul.f32.gmra.mxu0 %v1797
    %v2121 = vpop.f32.mrf.mxu0
    %v2122 = vadd.f32 0.0, %v2121
    %2123 = vmatmul.f32.gmra.mxu0 %v1800
    %v2124 = vpop.f32.mrf.mxu0
    %v2125 = vadd.f32 0.0, %v2124
    %2126 = vmatmul.f32.gmra.mxu0 %v1803
    %v2127 = vpop.f32.mrf.mxu0
    %v2128 = vadd.f32 0.0, %v2127
    %2129 = vmatmul.f32.gmra.mxu0 %v1806
    %v2130 = vpop.f32.mrf.mxu0
    %v2131 = vadd.f32 0.0, %v2130
    %2132 = vmatmul.f32.gmra.mxu0 %v1809
    %v2133 = vpop.f32.mrf.mxu0
    %v2134 = vadd.f32 0.0, %v2133
    %2135 = vmatmul.f32.gmra.mxu0 %v1812
    %v2136 = vpop.f32.mrf.mxu0
    %v2137 = vadd.f32 0.0, %v2136
    %2138 = vmatmul.f32.gmra.mxu0 %v1815
    %v2139 = vpop.f32.mrf.mxu0
    %v2140 = vadd.f32 0.0, %v2139
    %2141 = vmatmul.f32.gmra.mxu0 %v1818
    %v2142 = vpop.f32.mrf.mxu0
    %v2143 = vadd.f32 0.0, %v2142
    %2144 = vmatmul.f32.gmra.mxu0 %v1821
    %v2145 = vpop.f32.mrf.mxu0
    %v2146 = vadd.f32 0.0, %v2145
    %2147 = vmatmul.f32.gmra.mxu0 %v1824
    %v2148 = vpop.f32.mrf.mxu0
    %v2149 = vadd.f32 0.0, %v2148
    %2150 = vdwg.mxu0
    %2151 = vmatpush.msra.mxu0 0.0
    %2152 = vmatpush.msra.mxu0 0.0
    %2153 = vmatpush.msra.mxu0 0.0
    %2154 = vmatpush.msra.mxu0 0.0
    %2155 = vmatpush.msra.mxu0 0.0
    %2156 = vmatpush.msra.mxu0 0.0
    %2157 = vmatpush.msra.mxu0 0.0
    %2158 = vmatpush.msra.mxu0 0.0
    %2159 = vmatpush.msra.mxu0 0.0
    %2160 = vmatpush.msra.mxu0 0.0
    %2161 = vmatpush.msra.mxu0 0.0
    %2162 = vmatpush.msra.mxu0 0.0
    %2163 = vmatpush.msra.mxu0 0.0
    %2164 = vmatpush.msra.mxu0 0.0
    %2165 = vmatpush.msra.mxu0 %v1754
    %2166 = vmatpush.msra.mxu0 %v1753
    %2167 = vmatmul.f32.gmra.mxu0 %v1779
    %v2168 = vpop.f32.mrf.mxu0
    %v2169 = vadd.f32 0.0, %v2168
    %2170 = vmatmul.f32.gmra.mxu0 %v1782
    %v2171 = vpop.f32.mrf.mxu0
    %v2172 = vadd.f32 0.0, %v2171
    %2173 = vmatmul.f32.gmra.mxu0 %v1785
    %v2174 = vpop.f32.mrf.mxu0
    %v2175 = vadd.f32 0.0, %v2174
    %2176 = vmatmul.f32.gmra.mxu0 %v1788
    %v2177 = vpop.f32.mrf.mxu0
    %v2178 = vadd.f32 0.0, %v2177
    %2179 = vmatmul.f32.gmra.mxu0 %v1791
    %v2180 = vpop.f32.mrf.mxu0
    %v2181 = vadd.f32 0.0, %v2180
    %2182 = vmatmul.f32.gmra.mxu0 %v1794
    %v2183 = vpop.f32.mrf.mxu0
    %v2184 = vadd.f32 0.0, %v2183
    %2185 = vmatmul.f32.gmra.mxu0 %v1797
    %v2186 = vpop.f32.mrf.mxu0
    %v2187 = vadd.f32 0.0, %v2186
    %2188 = vmatmul.f32.gmra.mxu0 %v1800
    %v2189 = vpop.f32.mrf.mxu0
    %v2190 = vadd.f32 0.0, %v2189
    %2191 = vmatmul.f32.gmra.mxu0 %v1803
    %v2192 = vpop.f32.mrf.mxu0
    %v2193 = vadd.f32 0.0, %v2192
    %2194 = vmatmul.f32.gmra.mxu0 %v1806
    %v2195 = vpop.f32.mrf.mxu0
    %v2196 = vadd.f32 0.0, %v2195
    %2197 = vmatmul.f32.gmra.mxu0 %v1809
    %v2198 = vpop.f32.mrf.mxu0
    %v2199 = vadd.f32 0.0, %v2198
    %2200 = vmatmul.f32.gmra.mxu0 %v1812
    %v2201 = vpop.f32.mrf.mxu0
    %v2202 = vadd.f32 0.0, %v2201
    %2203 = vmatmul.f32.gmra.mxu0 %v1815
    %v2204 = vpop.f32.mrf.mxu0
    %v2205 = vadd.f32 0.0, %v2204
    %2206 = vmatmul.f32.gmra.mxu0 %v1818
    %v2207 = vpop.f32.mrf.mxu0
    %v2208 = vadd.f32 0.0, %v2207
    %2209 = vmatmul.f32.gmra.mxu0 %v1821
    %v2210 = vpop.f32.mrf.mxu0
    %v2211 = vadd.f32 0.0, %v2210
    %2212 = vmatmul.f32.gmra.mxu0 %v1824
    %v2213 = vpop.f32.mrf.mxu0
    %v2214 = vadd.f32 0.0, %v2213
    %2215 = vdwg.mxu0
    %2216 = vmatpush.msra.mxu0 0.0
    %2217 = vmatpush.msra.mxu0 0.0
    %2218 = vmatpush.msra.mxu0 0.0
    %2219 = vmatpush.msra.mxu0 0.0
    %2220 = vmatpush.msra.mxu0 0.0
    %2221 = vmatpush.msra.mxu0 0.0
    %2222 = vmatpush.msra.mxu0 0.0
    %2223 = vmatpush.msra.mxu0 0.0
    %2224 = vmatpush.msra.mxu0 0.0
    %2225 = vmatpush.msra.mxu0 0.0
    %2226 = vmatpush.msra.mxu0 0.0
    %2227 = vmatpush.msra.mxu0 0.0
    %2228 = vmatpush.msra.mxu0 0.0
    %2229 = vmatpush.msra.mxu0 0.0
    %2230 = vmatpush.msra.mxu0 %v1756
    %2231 = vmatpush.msra.mxu0 %v1755
    %2232 = vmatmul.f32.gmra.mxu0 %v1779
    %v2233 = vpop.f32.mrf.mxu0
    %v2234 = vadd.f32 0.0, %v2233
    %2235 = vmatmul.f32.gmra.mxu0 %v1782
    %v2236 = vpop.f32.mrf.mxu0
    %v2237 = vadd.f32 0.0, %v2236
    %2238 = vmatmul.f32.gmra.mxu0 %v1785
    %v2239 = vpop.f32.mrf.mxu0
    %v2240 = vadd.f32 0.0, %v2239
    %2241 = vmatmul.f32.gmra.mxu0 %v1788
    %v2242 = vpop.f32.mrf.mxu0
    %v2243 = vadd.f32 0.0, %v2242
    %2244 = vmatmul.f32.gmra.mxu0 %v1791
    %v2245 = vpop.f32.mrf.mxu0
    %v2246 = vadd.f32 0.0, %v2245
    %2247 = vmatmul.f32.gmra.mxu0 %v1794
    %v2248 = vpop.f32.mrf.mxu0
    %v2249 = vadd.f32 0.0, %v2248
    %2250 = vmatmul.f32.gmra.mxu0 %v1797
    %v2251 = vpop.f32.mrf.mxu0
    %v2252 = vadd.f32 0.0, %v2251
    %2253 = vmatmul.f32.gmra.mxu0 %v1800
    %v2254 = vpop.f32.mrf.mxu0
    %v2255 = vadd.f32 0.0, %v2254
    %2256 = vmatmul.f32.gmra.mxu0 %v1803
    %v2257 = vpop.f32.mrf.mxu0
    %v2258 = vadd.f32 0.0, %v2257
    %2259 = vmatmul.f32.gmra.mxu0 %v1806
    %v2260 = vpop.f32.mrf.mxu0
    %v2261 = vadd.f32 0.0, %v2260
    %2262 = vmatmul.f32.gmra.mxu0 %v1809
    %v2263 = vpop.f32.mrf.mxu0
    %v2264 = vadd.f32 0.0, %v2263
    %2265 = vmatmul.f32.gmra.mxu0 %v1812
    %v2266 = vpop.f32.mrf.mxu0
    %v2267 = vadd.f32 0.0, %v2266
    %2268 = vmatmul.f32.gmra.mxu0 %v1815
    %v2269 = vpop.f32.mrf.mxu0
    %v2270 = vadd.f32 0.0, %v2269
    %2271 = vmatmul.f32.gmra.mxu0 %v1818
    %v2272 = vpop.f32.mrf.mxu0
    %v2273 = vadd.f32 0.0, %v2272
    %2274 = vmatmul.f32.gmra.mxu0 %v1821
    %v2275 = vpop.f32.mrf.mxu0
    %v2276 = vadd.f32 0.0, %v2275
    %2277 = vmatmul.f32.gmra.mxu0 %v1824
    %v2278 = vpop.f32.mrf.mxu0
    %v2279 = vadd.f32 0.0, %v2278
    %2280 = vdwg.mxu0
    %2281 = vmatpush.msra.mxu0 0.0
    %2282 = vmatpush.msra.mxu0 0.0
    %2283 = vmatpush.msra.mxu0 0.0
    %2284 = vmatpush.msra.mxu0 0.0
    %2285 = vmatpush.msra.mxu0 0.0
    %2286 = vmatpush.msra.mxu0 0.0
    %2287 = vmatpush.msra.mxu0 0.0
    %2288 = vmatpush.msra.mxu0 0.0
    %2289 = vmatpush.msra.mxu0 0.0
    %2290 = vmatpush.msra.mxu0 0.0
    %2291 = vmatpush.msra.mxu0 0.0
    %2292 = vmatpush.msra.mxu0 0.0
    %2293 = vmatpush.msra.mxu0 0.0
    %2294 = vmatpush.msra.mxu0 0.0
    %2295 = vmatpush.msra.mxu0 %v1758
    %2296 = vmatpush.msra.mxu0 %v1757
    %2297 = vmatmul.f32.gmra.mxu0 %v1779
    %v2298 = vpop.f32.mrf.mxu0
    %v2299 = vadd.f32 0.0, %v2298
    %2300 = vmatmul.f32.gmra.mxu0 %v1782
    %v2301 = vpop.f32.mrf.mxu0
    %v2302 = vadd.f32 0.0, %v2301
    %2303 = vmatmul.f32.gmra.mxu0 %v1785
    %v2304 = vpop.f32.mrf.mxu0
    %v2305 = vadd.f32 0.0, %v2304
    %2306 = vmatmul.f32.gmra.mxu0 %v1788
    %v2307 = vpop.f32.mrf.mxu0
    %v2308 = vadd.f32 0.0, %v2307
    %2309 = vmatmul.f32.gmra.mxu0 %v1791
    %v2310 = vpop.f32.mrf.mxu0
    %v2311 = vadd.f32 0.0, %v2310
    %2312 = vmatmul.f32.gmra.mxu0 %v1794
    %v2313 = vpop.f32.mrf.mxu0
    %v2314 = vadd.f32 0.0, %v2313
    %2315 = vmatmul.f32.gmra.mxu0 %v1797
    %v2316 = vpop.f32.mrf.mxu0
    %v2317 = vadd.f32 0.0, %v2316
    %2318 = vmatmul.f32.gmra.mxu0 %v1800
    %v2319 = vpop.f32.mrf.mxu0
    %v2320 = vadd.f32 0.0, %v2319
    %2321 = vmatmul.f32.gmra.mxu0 %v1803
    %v2322 = vpop.f32.mrf.mxu0
    %v2323 = vadd.f32 0.0, %v2322
    %2324 = vmatmul.f32.gmra.mxu0 %v1806
    %v2325 = vpop.f32.mrf.mxu0
    %v2326 = vadd.f32 0.0, %v2325
    %2327 = vmatmul.f32.gmra.mxu0 %v1809
    %v2328 = vpop.f32.mrf.mxu0
    %v2329 = vadd.f32 0.0, %v2328
    %2330 = vmatmul.f32.gmra.mxu0 %v1812
    %v2331 = vpop.f32.mrf.mxu0
    %v2332 = vadd.f32 0.0, %v2331
    %2333 = vmatmul.f32.gmra.mxu0 %v1815
    %v2334 = vpop.f32.mrf.mxu0
    %v2335 = vadd.f32 0.0, %v2334
    %2336 = vmatmul.f32.gmra.mxu0 %v1818
    %v2337 = vpop.f32.mrf.mxu0
    %v2338 = vadd.f32 0.0, %v2337
    %2339 = vmatmul.f32.gmra.mxu0 %v1821
    %v2340 = vpop.f32.mrf.mxu0
    %v2341 = vadd.f32 0.0, %v2340
    %2342 = vmatmul.f32.gmra.mxu0 %v1824
    %v2343 = vpop.f32.mrf.mxu0
    %v2344 = vadd.f32 0.0, %v2343
    %2345 = vdwg.mxu0
    %v2347 = vsel %vm1777, %v1844, 0
    %v2350 = vsel %vm1777, %v1847, 0
    %v2353 = vsel %vm1777, %v1850, 0
    %v2356 = vsel %vm1777, %v1853, 0
    %v2359 = vsel %vm1777, %v1856, 0
    %v2362 = vsel %vm1777, %v1859, 0
    %v2365 = vsel %vm1777, %v1862, 0
    %v2368 = vsel %vm1777, %v1865, 0
    %v2371 = vsel %vm1777, %v1868, 0
    %v2374 = vsel %vm1777, %v1871, 0
    %v2377 = vsel %vm1777, %v1874, 0
    %v2380 = vsel %vm1777, %v1877, 0
    %v2383 = vsel %vm1777, %v1880, 0
    %v2386 = vsel %vm1777, %v1883, 0
    %v2389 = vsel %vm1777, %v1886, 0
    %v2392 = vsel %vm1777, %v1889, 0
    %v2395 = vsel %vm1777, %v1909, 0
    %v2398 = vsel %vm1777, %v1912, 0
    %v2401 = vsel %vm1777, %v1915, 0
    %v2404 = vsel %vm1777, %v1918, 0
    %v2407 = vsel %vm1777, %v1921, 0
    %v2410 = vsel %vm1777, %v1924, 0
    %v2413 = vsel %vm1777, %v1927, 0
    %v2416 = vsel %vm1777, %v1930, 0
    %v2419 = vsel %vm1777, %v1933, 0
    %v2422 = vsel %vm1777, %v1936, 0
    %v2425 = vsel %vm1777, %v1939, 0
    %v2428 = vsel %vm1777, %v1942, 0
    %v2431 = vsel %vm1777, %v1945, 0
    %v2434 = vsel %vm1777, %v1948, 0
    %v2437 = vsel %vm1777, %v1951, 0
    %v2440 = vsel %vm1777, %v1954, 0
    %v2443 = vsel %vm1777, %v1974, 0
    %v2446 = vsel %vm1777, %v1977, 0
    %v2449 = vsel %vm1777, %v1980, 0
    %v2452 = vsel %vm1777, %v1983, 0
    %v2455 = vsel %vm1777, %v1986, 0
    %v2458 = vsel %vm1777, %v1989, 0
    %v2461 = vsel %vm1777, %v1992, 0
    %v2464 = vsel %vm1777, %v1995, 0
    %v2467 = vsel %vm1777, %v1998, 0
    %v2470 = vsel %vm1777, %v2001, 0
    %v2473 = vsel %vm1777, %v2004, 0
    %v2476 = vsel %vm1777, %v2007, 0
    %v2479 = vsel %vm1777, %v2010, 0
    %v2482 = vsel %vm1777, %v2013, 0
    %v2485 = vsel %vm1777, %v2016, 0
    %v2488 = vsel %vm1777, %v2019, 0
    %v2491 = vsel %vm1777, %v2039, 0
    %v2494 = vsel %vm1777, %v2042, 0
    %v2497 = vsel %vm1777, %v2045, 0
    %v2500 = vsel %vm1777, %v2048, 0
    %v2503 = vsel %vm1777, %v2051, 0
    %v2506 = vsel %vm1777, %v2054, 0
    %v2509 = vsel %vm1777, %v2057, 0
    %v2512 = vsel %vm1777, %v2060, 0
    %v2515 = vsel %vm1777, %v2063, 0
    %v2518 = vsel %vm1777, %v2066, 0
    %v2521 = vsel %vm1777, %v2069, 0
    %v2524 = vsel %vm1777, %v2072, 0
    %v2527 = vsel %vm1777, %v2075, 0
    %v2530 = vsel %vm1777, %v2078, 0
    %v2533 = vsel %vm1777, %v2081, 0
    %v2536 = vsel %vm1777, %v2084, 0
    %v2539 = vsel %vm1777, %v2104, 0
    %v2542 = vsel %vm1777, %v2107, 0
    %v2545 = vsel %vm1777, %v2110, 0
    %v2548 = vsel %vm1777, %v2113, 0
    %v2551 = vsel %vm1777, %v2116, 0
    %v2554 = vsel %vm1777, %v2119, 0
    %v2557 = vsel %vm1777, %v2122, 0
    %v2560 = vsel %vm1777, %v2125, 0
    %v2563 = vsel %vm1777, %v2128, 0
    %v2566 = vsel %vm1777, %v2131, 0
    %v2569 = vsel %vm1777, %v2134, 0
    %v2572 = vsel %vm1777, %v2137, 0
    %v2575 = vsel %vm1777, %v2140, 0
    %v2578 = vsel %vm1777, %v2143, 0
    %v2581 = vsel %vm1777, %v2146, 0
    %v2584 = vsel %vm1777, %v2149, 0
    %v2587 = vsel %vm1777, %v2169, 0
    %v2590 = vsel %vm1777, %v2172, 0
    %v2593 = vsel %vm1777, %v2175, 0
    %v2596 = vsel %vm1777, %v2178, 0
    %v2599 = vsel %vm1777, %v2181, 0
    %v2602 = vsel %vm1777, %v2184, 0
    %v2605 = vsel %vm1777, %v2187, 0
    %v2608 = vsel %vm1777, %v2190, 0
    %v2611 = vsel %vm1777, %v2193, 0
    %v2614 = vsel %vm1777, %v2196, 0
    %v2617 = vsel %vm1777, %v2199, 0
    %v2620 = vsel %vm1777, %v2202, 0
    %v2623 = vsel %vm1777, %v2205, 0
    %v2626 = vsel %vm1777, %v2208, 0
    %v2629 = vsel %vm1777, %v2211, 0
    %v2632 = vsel %vm1777, %v2214, 0
    %v2635 = vsel %vm1777, %v2234, 0
    %v2638 = vsel %vm1777, %v2237, 0
    %v2641 = vsel %vm1777, %v2240, 0
    %v2644 = vsel %vm1777, %v2243, 0
    %v2647 = vsel %vm1777, %v2246, 0
    %v2650 = vsel %vm1777, %v2249, 0
    %v2653 = vsel %vm1777, %v2252, 0
    %v2656 = vsel %vm1777, %v2255, 0
    %v2659 = vsel %vm1777, %v2258, 0
    %v2662 = vsel %vm1777, %v2261, 0
    %v2665 = vsel %vm1777, %v2264, 0
    %v2668 = vsel %vm1777, %v2267, 0
    %v2671 = vsel %vm1777, %v2270, 0
    %v2674 = vsel %vm1777, %v2273, 0
    %v2677 = vsel %vm1777, %v2276, 0
    %v2680 = vsel %vm1777, %v2279, 0
    %v2683 = vsel %vm1777, %v2299, 0
    %v2686 = vsel %vm1777, %v2302, 0
    %v2689 = vsel %vm1777, %v2305, 0
    %v2692 = vsel %vm1777, %v2308, 0
    %v2695 = vsel %vm1777, %v2311, 0
    %v2698 = vsel %vm1777, %v2314, 0
    %v2701 = vsel %vm1777, %v2317, 0
    %v2704 = vsel %vm1777, %v2320, 0
    %v2707 = vsel %vm1777, %v2323, 0
    %v2710 = vsel %vm1777, %v2326, 0
    %v2713 = vsel %vm1777, %v2329, 0
    %v2716 = vsel %vm1777, %v2332, 0
    %v2719 = vsel %vm1777, %v2335, 0
    %v2722 = vsel %vm1777, %v2338, 0
    %v2725 = vsel %vm1777, %v2341, 0
    %v2728 = vsel %vm1777, %v2344, 0
    %2730 = vmatpush.msra.mxu0 0.0
    %2731 = vmatpush.msra.mxu0 0.0
    %2732 = vmatpush.msra.mxu0 0.0
    %2733 = vmatpush.msra.mxu0 0.0
    %2734 = vmatpush.msra.mxu0 0.0
    %2735 = vmatpush.msra.mxu0 0.0
    %2736 = vmatpush.msra.mxu0 0.0
    %2737 = vmatpush.msra.mxu0 0.0
    %2738 = vmatpush.msra.mxu0 0.0
    %2739 = vmatpush.msra.mxu0 0.0
    %2740 = vmatpush.msra.mxu0 0.0
    %2741 = vmatpush.msra.mxu0 0.0
    %2742 = vmatpush.msra.mxu0 0.0
    %2743 = vmatpush.msra.mxu0 0.0
    %2744 = vmatpush.msra.mxu0 %v1776
    %2745 = vmatpush.msra.mxu0 %v1775
    %2746 = vmatmul.f32.gmra.mxu0 %v2347
    %v2747 = vpop.f32.mrf.mxu0
    %v2748 = vadd.f32 0.0, %v2747
    %2749 = vmatmul.f32.gmra.mxu0 %v2350
    %v2750 = vpop.f32.mrf.mxu0
    %v2751 = vadd.f32 0.0, %v2750
    %2752 = vmatmul.f32.gmra.mxu0 %v2353
    %v2753 = vpop.f32.mrf.mxu0
    %v2754 = vadd.f32 0.0, %v2753
    %2755 = vmatmul.f32.gmra.mxu0 %v2356
    %v2756 = vpop.f32.mrf.mxu0
    %v2757 = vadd.f32 0.0, %v2756
    %2758 = vmatmul.f32.gmra.mxu0 %v2359
    %v2759 = vpop.f32.mrf.mxu0
    %v2760 = vadd.f32 0.0, %v2759
    %2761 = vmatmul.f32.gmra.mxu0 %v2362
    %v2762 = vpop.f32.mrf.mxu0
    %v2763 = vadd.f32 0.0, %v2762
    %2764 = vmatmul.f32.gmra.mxu0 %v2365
    %v2765 = vpop.f32.mrf.mxu0
    %v2766 = vadd.f32 0.0, %v2765
    %2767 = vmatmul.f32.gmra.mxu0 %v2368
    %v2768 = vpop.f32.mrf.mxu0
    %v2769 = vadd.f32 0.0, %v2768
    %2770 = vmatmul.f32.gmra.mxu0 %v2371
    %v2771 = vpop.f32.mrf.mxu0
    %v2772 = vadd.f32 0.0, %v2771
    %2773 = vmatmul.f32.gmra.mxu0 %v2374
    %v2774 = vpop.f32.mrf.mxu0
    %v2775 = vadd.f32 0.0, %v2774
    %2776 = vmatmul.f32.gmra.mxu0 %v2377
    %v2777 = vpop.f32.mrf.mxu0
    %v2778 = vadd.f32 0.0, %v2777
    %2779 = vmatmul.f32.gmra.mxu0 %v2380
    %v2780 = vpop.f32.mrf.mxu0
    %v2781 = vadd.f32 0.0, %v2780
    %2782 = vmatmul.f32.gmra.mxu0 %v2383
    %v2783 = vpop.f32.mrf.mxu0
    %v2784 = vadd.f32 0.0, %v2783
    %2785 = vmatmul.f32.gmra.mxu0 %v2386
    %v2786 = vpop.f32.mrf.mxu0
    %v2787 = vadd.f32 0.0, %v2786
    %2788 = vmatmul.f32.gmra.mxu0 %v2389
    %v2789 = vpop.f32.mrf.mxu0
    %v2790 = vadd.f32 0.0, %v2789
    %2791 = vmatmul.f32.gmra.mxu0 %v2392
    %v2792 = vpop.f32.mrf.mxu0
    %v2793 = vadd.f32 0.0, %v2792
    %2794 = vmatmul.f32.gmra.mxu0 %v2395
    %v2795 = vpop.f32.mrf.mxu0
    %v2796 = vadd.f32 0.0, %v2795
    %2797 = vmatmul.f32.gmra.mxu0 %v2398
    %v2798 = vpop.f32.mrf.mxu0
    %v2799 = vadd.f32 0.0, %v2798
    %2800 = vmatmul.f32.gmra.mxu0 %v2401
    %v2801 = vpop.f32.mrf.mxu0
    %v2802 = vadd.f32 0.0, %v2801
    %2803 = vmatmul.f32.gmra.mxu0 %v2404
    %v2804 = vpop.f32.mrf.mxu0
    %v2805 = vadd.f32 0.0, %v2804
    %2806 = vmatmul.f32.gmra.mxu0 %v2407
    %v2807 = vpop.f32.mrf.mxu0
    %v2808 = vadd.f32 0.0, %v2807
    %2809 = vmatmul.f32.gmra.mxu0 %v2410
    %v2810 = vpop.f32.mrf.mxu0
    %v2811 = vadd.f32 0.0, %v2810
    %2812 = vmatmul.f32.gmra.mxu0 %v2413
    %v2813 = vpop.f32.mrf.mxu0
    %v2814 = vadd.f32 0.0, %v2813
    %2815 = vmatmul.f32.gmra.mxu0 %v2416
    %v2816 = vpop.f32.mrf.mxu0
    %v2817 = vadd.f32 0.0, %v2816
    %2818 = vmatmul.f32.gmra.mxu0 %v2419
    %v2819 = vpop.f32.mrf.mxu0
    %v2820 = vadd.f32 0.0, %v2819
    %2821 = vmatmul.f32.gmra.mxu0 %v2422
    %v2822 = vpop.f32.mrf.mxu0
    %v2823 = vadd.f32 0.0, %v2822
    %2824 = vmatmul.f32.gmra.mxu0 %v2425
    %v2825 = vpop.f32.mrf.mxu0
    %v2826 = vadd.f32 0.0, %v2825
    %2827 = vmatmul.f32.gmra.mxu0 %v2428
    %v2828 = vpop.f32.mrf.mxu0
    %v2829 = vadd.f32 0.0, %v2828
    %2830 = vmatmul.f32.gmra.mxu0 %v2431
    %v2831 = vpop.f32.mrf.mxu0
    %v2832 = vadd.f32 0.0, %v2831
    %2833 = vmatmul.f32.gmra.mxu0 %v2434
    %v2834 = vpop.f32.mrf.mxu0
    %v2835 = vadd.f32 0.0, %v2834
    %2836 = vmatmul.f32.gmra.mxu0 %v2437
    %v2837 = vpop.f32.mrf.mxu0
    %v2838 = vadd.f32 0.0, %v2837
    %2839 = vmatmul.f32.gmra.mxu0 %v2440
    %v2840 = vpop.f32.mrf.mxu0
    %v2841 = vadd.f32 0.0, %v2840
    %2842 = vmatmul.f32.gmra.mxu0 %v2443
    %v2843 = vpop.f32.mrf.mxu0
    %v2844 = vadd.f32 0.0, %v2843
    %2845 = vmatmul.f32.gmra.mxu0 %v2446
    %v2846 = vpop.f32.mrf.mxu0
    %v2847 = vadd.f32 0.0, %v2846
    %2848 = vmatmul.f32.gmra.mxu0 %v2449
    %v2849 = vpop.f32.mrf.mxu0
    %v2850 = vadd.f32 0.0, %v2849
    %2851 = vmatmul.f32.gmra.mxu0 %v2452
    %v2852 = vpop.f32.mrf.mxu0
    %v2853 = vadd.f32 0.0, %v2852
    %2854 = vmatmul.f32.gmra.mxu0 %v2455
    %v2855 = vpop.f32.mrf.mxu0
    %v2856 = vadd.f32 0.0, %v2855
    %2857 = vmatmul.f32.gmra.mxu0 %v2458
    %v2858 = vpop.f32.mrf.mxu0
    %v2859 = vadd.f32 0.0, %v2858
    %2860 = vmatmul.f32.gmra.mxu0 %v2461
    %v2861 = vpop.f32.mrf.mxu0
    %v2862 = vadd.f32 0.0, %v2861
    %2863 = vmatmul.f32.gmra.mxu0 %v2464
    %v2864 = vpop.f32.mrf.mxu0
    %v2865 = vadd.f32 0.0, %v2864
    %2866 = vmatmul.f32.gmra.mxu0 %v2467
    %v2867 = vpop.f32.mrf.mxu0
    %v2868 = vadd.f32 0.0, %v2867
    %2869 = vmatmul.f32.gmra.mxu0 %v2470
    %v2870 = vpop.f32.mrf.mxu0
    %v2871 = vadd.f32 0.0, %v2870
    %2872 = vmatmul.f32.gmra.mxu0 %v2473
    %v2873 = vpop.f32.mrf.mxu0
    %v2874 = vadd.f32 0.0, %v2873
    %2875 = vmatmul.f32.gmra.mxu0 %v2476
    %v2876 = vpop.f32.mrf.mxu0
    %v2877 = vadd.f32 0.0, %v2876
    %2878 = vmatmul.f32.gmra.mxu0 %v2479
    %v2879 = vpop.f32.mrf.mxu0
    %v2880 = vadd.f32 0.0, %v2879
    %2881 = vmatmul.f32.gmra.mxu0 %v2482
    %v2882 = vpop.f32.mrf.mxu0
    %v2883 = vadd.f32 0.0, %v2882
    %2884 = vmatmul.f32.gmra.mxu0 %v2485
    %v2885 = vpop.f32.mrf.mxu0
    %v2886 = vadd.f32 0.0, %v2885
    %2887 = vmatmul.f32.gmra.mxu0 %v2488
    %v2888 = vpop.f32.mrf.mxu0
    %v2889 = vadd.f32 0.0, %v2888
    %2890 = vmatmul.f32.gmra.mxu0 %v2491
    %v2891 = vpop.f32.mrf.mxu0
    %v2892 = vadd.f32 0.0, %v2891
    %2893 = vmatmul.f32.gmra.mxu0 %v2494
    %v2894 = vpop.f32.mrf.mxu0
    %v2895 = vadd.f32 0.0, %v2894
    %2896 = vmatmul.f32.gmra.mxu0 %v2497
    %v2897 = vpop.f32.mrf.mxu0
    %v2898 = vadd.f32 0.0, %v2897
    %2899 = vmatmul.f32.gmra.mxu0 %v2500
    %v2900 = vpop.f32.mrf.mxu0
    %v2901 = vadd.f32 0.0, %v2900
    %2902 = vmatmul.f32.gmra.mxu0 %v2503
    %v2903 = vpop.f32.mrf.mxu0
    %v2904 = vadd.f32 0.0, %v2903
    %2905 = vmatmul.f32.gmra.mxu0 %v2506
    %v2906 = vpop.f32.mrf.mxu0
    %v2907 = vadd.f32 0.0, %v2906
    %2908 = vmatmul.f32.gmra.mxu0 %v2509
    %v2909 = vpop.f32.mrf.mxu0
    %v2910 = vadd.f32 0.0, %v2909
    %2911 = vmatmul.f32.gmra.mxu0 %v2512
    %v2912 = vpop.f32.mrf.mxu0
    %v2913 = vadd.f32 0.0, %v2912
    %2914 = vmatmul.f32.gmra.mxu0 %v2515
    %v2915 = vpop.f32.mrf.mxu0
    %v2916 = vadd.f32 0.0, %v2915
    %2917 = vmatmul.f32.gmra.mxu0 %v2518
    %v2918 = vpop.f32.mrf.mxu0
    %v2919 = vadd.f32 0.0, %v2918
    %2920 = vmatmul.f32.gmra.mxu0 %v2521
    %v2921 = vpop.f32.mrf.mxu0
    %v2922 = vadd.f32 0.0, %v2921
    %2923 = vmatmul.f32.gmra.mxu0 %v2524
    %v2924 = vpop.f32.mrf.mxu0
    %v2925 = vadd.f32 0.0, %v2924
    %2926 = vmatmul.f32.gmra.mxu0 %v2527
    %v2927 = vpop.f32.mrf.mxu0
    %v2928 = vadd.f32 0.0, %v2927
    %2929 = vmatmul.f32.gmra.mxu0 %v2530
    %v2930 = vpop.f32.mrf.mxu0
    %v2931 = vadd.f32 0.0, %v2930
    %2932 = vmatmul.f32.gmra.mxu0 %v2533
    %v2933 = vpop.f32.mrf.mxu0
    %v2934 = vadd.f32 0.0, %v2933
    %2935 = vmatmul.f32.gmra.mxu0 %v2536
    %v2936 = vpop.f32.mrf.mxu0
    %v2937 = vadd.f32 0.0, %v2936
    %2938 = vmatmul.f32.gmra.mxu0 %v2539
    %v2939 = vpop.f32.mrf.mxu0
    %v2940 = vadd.f32 0.0, %v2939
    %2941 = vmatmul.f32.gmra.mxu0 %v2542
    %v2942 = vpop.f32.mrf.mxu0
    %v2943 = vadd.f32 0.0, %v2942
    %2944 = vmatmul.f32.gmra.mxu0 %v2545
    %v2945 = vpop.f32.mrf.mxu0
    %v2946 = vadd.f32 0.0, %v2945
    %2947 = vmatmul.f32.gmra.mxu0 %v2548
    %v2948 = vpop.f32.mrf.mxu0
    %v2949 = vadd.f32 0.0, %v2948
    %2950 = vmatmul.f32.gmra.mxu0 %v2551
    %v2951 = vpop.f32.mrf.mxu0
    %v2952 = vadd.f32 0.0, %v2951
    %2953 = vmatmul.f32.gmra.mxu0 %v2554
    %v2954 = vpop.f32.mrf.mxu0
    %v2955 = vadd.f32 0.0, %v2954
    %2956 = vmatmul.f32.gmra.mxu0 %v2557
    %v2957 = vpop.f32.mrf.mxu0
    %v2958 = vadd.f32 0.0, %v2957
    %2959 = vmatmul.f32.gmra.mxu0 %v2560
    %v2960 = vpop.f32.mrf.mxu0
    %v2961 = vadd.f32 0.0, %v2960
    %2962 = vmatmul.f32.gmra.mxu0 %v2563
    %v2963 = vpop.f32.mrf.mxu0
    %v2964 = vadd.f32 0.0, %v2963
    %2965 = vmatmul.f32.gmra.mxu0 %v2566
    %v2966 = vpop.f32.mrf.mxu0
    %v2967 = vadd.f32 0.0, %v2966
    %2968 = vmatmul.f32.gmra.mxu0 %v2569
    %v2969 = vpop.f32.mrf.mxu0
    %v2970 = vadd.f32 0.0, %v2969
    %2971 = vmatmul.f32.gmra.mxu0 %v2572
    %v2972 = vpop.f32.mrf.mxu0
    %v2973 = vadd.f32 0.0, %v2972
    %2974 = vmatmul.f32.gmra.mxu0 %v2575
    %v2975 = vpop.f32.mrf.mxu0
    %v2976 = vadd.f32 0.0, %v2975
    %2977 = vmatmul.f32.gmra.mxu0 %v2578
    %v2978 = vpop.f32.mrf.mxu0
    %v2979 = vadd.f32 0.0, %v2978
    %2980 = vmatmul.f32.gmra.mxu0 %v2581
    %v2981 = vpop.f32.mrf.mxu0
    %v2982 = vadd.f32 0.0, %v2981
    %2983 = vmatmul.f32.gmra.mxu0 %v2584
    %v2984 = vpop.f32.mrf.mxu0
    %v2985 = vadd.f32 0.0, %v2984
    %2986 = vmatmul.f32.gmra.mxu0 %v2587
    %v2987 = vpop.f32.mrf.mxu0
    %v2988 = vadd.f32 0.0, %v2987
    %2989 = vmatmul.f32.gmra.mxu0 %v2590
    %v2990 = vpop.f32.mrf.mxu0
    %v2991 = vadd.f32 0.0, %v2990
    %2992 = vmatmul.f32.gmra.mxu0 %v2593
    %v2993 = vpop.f32.mrf.mxu0
    %v2994 = vadd.f32 0.0, %v2993
    %2995 = vmatmul.f32.gmra.mxu0 %v2596
    %v2996 = vpop.f32.mrf.mxu0
    %v2997 = vadd.f32 0.0, %v2996
    %2998 = vmatmul.f32.gmra.mxu0 %v2599
    %v2999 = vpop.f32.mrf.mxu0
    %v3000 = vadd.f32 0.0, %v2999
    %3001 = vmatmul.f32.gmra.mxu0 %v2602
    %v3002 = vpop.f32.mrf.mxu0
    %v3003 = vadd.f32 0.0, %v3002
    %3004 = vmatmul.f32.gmra.mxu0 %v2605
    %v3005 = vpop.f32.mrf.mxu0
    %v3006 = vadd.f32 0.0, %v3005
    %3007 = vmatmul.f32.gmra.mxu0 %v2608
    %v3008 = vpop.f32.mrf.mxu0
    %v3009 = vadd.f32 0.0, %v3008
    %3010 = vmatmul.f32.gmra.mxu0 %v2611
    %v3011 = vpop.f32.mrf.mxu0
    %v3012 = vadd.f32 0.0, %v3011
    %3013 = vmatmul.f32.gmra.mxu0 %v2614
    %v3014 = vpop.f32.mrf.mxu0
    %v3015 = vadd.f32 0.0, %v3014
    %3016 = vmatmul.f32.gmra.mxu0 %v2617
    %v3017 = vpop.f32.mrf.mxu0
    %v3018 = vadd.f32 0.0, %v3017
    %3019 = vmatmul.f32.gmra.mxu0 %v2620
    %v3020 = vpop.f32.mrf.mxu0
    %v3021 = vadd.f32 0.0, %v3020
    %3022 = vmatmul.f32.gmra.mxu0 %v2623
    %v3023 = vpop.f32.mrf.mxu0
    %v3024 = vadd.f32 0.0, %v3023
    %3025 = vmatmul.f32.gmra.mxu0 %v2626
    %v3026 = vpop.f32.mrf.mxu0
    %v3027 = vadd.f32 0.0, %v3026
    %3028 = vmatmul.f32.gmra.mxu0 %v2629
    %v3029 = vpop.f32.mrf.mxu0
    %v3030 = vadd.f32 0.0, %v3029
    %3031 = vmatmul.f32.gmra.mxu0 %v2632
    %v3032 = vpop.f32.mrf.mxu0
    %v3033 = vadd.f32 0.0, %v3032
    %3034 = vmatmul.f32.gmra.mxu0 %v2635
    %v3035 = vpop.f32.mrf.mxu0
    %v3036 = vadd.f32 0.0, %v3035
    %3037 = vmatmul.f32.gmra.mxu0 %v2638
    %v3038 = vpop.f32.mrf.mxu0
    %v3039 = vadd.f32 0.0, %v3038
    %3040 = vmatmul.f32.gmra.mxu0 %v2641
    %v3041 = vpop.f32.mrf.mxu0
    %v3042 = vadd.f32 0.0, %v3041
    %3043 = vmatmul.f32.gmra.mxu0 %v2644
    %v3044 = vpop.f32.mrf.mxu0
    %v3045 = vadd.f32 0.0, %v3044
    %3046 = vmatmul.f32.gmra.mxu0 %v2647
    %v3047 = vpop.f32.mrf.mxu0
    %v3048 = vadd.f32 0.0, %v3047
    %3049 = vmatmul.f32.gmra.mxu0 %v2650
    %v3050 = vpop.f32.mrf.mxu0
    %v3051 = vadd.f32 0.0, %v3050
    %3052 = vmatmul.f32.gmra.mxu0 %v2653
    %v3053 = vpop.f32.mrf.mxu0
    %v3054 = vadd.f32 0.0, %v3053
    %3055 = vmatmul.f32.gmra.mxu0 %v2656
    %v3056 = vpop.f32.mrf.mxu0
    %v3057 = vadd.f32 0.0, %v3056
    %3058 = vmatmul.f32.gmra.mxu0 %v2659
    %v3059 = vpop.f32.mrf.mxu0
    %v3060 = vadd.f32 0.0, %v3059
    %3061 = vmatmul.f32.gmra.mxu0 %v2662
    %v3062 = vpop.f32.mrf.mxu0
    %v3063 = vadd.f32 0.0, %v3062
    %3064 = vmatmul.f32.gmra.mxu0 %v2665
    %v3065 = vpop.f32.mrf.mxu0
    %v3066 = vadd.f32 0.0, %v3065
    %3067 = vmatmul.f32.gmra.mxu0 %v2668
    %v3068 = vpop.f32.mrf.mxu0
    %v3069 = vadd.f32 0.0, %v3068
    %3070 = vmatmul.f32.gmra.mxu0 %v2671
    %v3071 = vpop.f32.mrf.mxu0
    %v3072 = vadd.f32 0.0, %v3071
    %3073 = vmatmul.f32.gmra.mxu0 %v2674
    %v3074 = vpop.f32.mrf.mxu0
    %v3075 = vadd.f32 0.0, %v3074
    %3076 = vmatmul.f32.gmra.mxu0 %v2677
    %v3077 = vpop.f32.mrf.mxu0
    %v3078 = vadd.f32 0.0, %v3077
    %3079 = vmatmul.f32.gmra.mxu0 %v2680
    %v3080 = vpop.f32.mrf.mxu0
    %v3081 = vadd.f32 0.0, %v3080
    %3082 = vmatmul.f32.gmra.mxu0 %v2683
    %v3083 = vpop.f32.mrf.mxu0
    %v3084 = vadd.f32 0.0, %v3083
    %3085 = vmatmul.f32.gmra.mxu0 %v2686
    %v3086 = vpop.f32.mrf.mxu0
    %v3087 = vadd.f32 0.0, %v3086
    %3088 = vmatmul.f32.gmra.mxu0 %v2689
    %v3089 = vpop.f32.mrf.mxu0
    %v3090 = vadd.f32 0.0, %v3089
    %3091 = vmatmul.f32.gmra.mxu0 %v2692
    %v3092 = vpop.f32.mrf.mxu0
    %v3093 = vadd.f32 0.0, %v3092
    %3094 = vmatmul.f32.gmra.mxu0 %v2695
    %v3095 = vpop.f32.mrf.mxu0
    %v3096 = vadd.f32 0.0, %v3095
    %3097 = vmatmul.f32.gmra.mxu0 %v2698
    %v3098 = vpop.f32.mrf.mxu0
    %v3099 = vadd.f32 0.0, %v3098
    %3100 = vmatmul.f32.gmra.mxu0 %v2701
    %v3101 = vpop.f32.mrf.mxu0
    %v3102 = vadd.f32 0.0, %v3101
    %3103 = vmatmul.f32.gmra.mxu0 %v2704
    %v3104 = vpop.f32.mrf.mxu0
    %v3105 = vadd.f32 0.0, %v3104
    %3106 = vmatmul.f32.gmra.mxu0 %v2707
    %v3107 = vpop.f32.mrf.mxu0
    %v3108 = vadd.f32 0.0, %v3107
    %3109 = vmatmul.f32.gmra.mxu0 %v2710
    %v3110 = vpop.f32.mrf.mxu0
    %v3111 = vadd.f32 0.0, %v3110
    %3112 = vmatmul.f32.gmra.mxu0 %v2713
    %v3113 = vpop.f32.mrf.mxu0
    %v3114 = vadd.f32 0.0, %v3113
    %3115 = vmatmul.f32.gmra.mxu0 %v2716
    %v3116 = vpop.f32.mrf.mxu0
    %v3117 = vadd.f32 0.0, %v3116
    %3118 = vmatmul.f32.gmra.mxu0 %v2719
    %v3119 = vpop.f32.mrf.mxu0
    %v3120 = vadd.f32 0.0, %v3119
    %3121 = vmatmul.f32.gmra.mxu0 %v2722
    %v3122 = vpop.f32.mrf.mxu0
    %v3123 = vadd.f32 0.0, %v3122
    %3124 = vmatmul.f32.gmra.mxu0 %v2725
    %v3125 = vpop.f32.mrf.mxu0
    %v3126 = vadd.f32 0.0, %v3125
    %3127 = vmatmul.f32.gmra.mxu0 %v2728
    %v3128 = vpop.f32.mrf.mxu0
    %v3129 = vadd.f32 0.0, %v3128
    %3130 = vdwg.mxu0
    %v3131 = vadd.f32 %v1615, %v2748
    %v3132 = vadd.f32 %v1616, %v2751
    %v3133 = vadd.f32 %v1617, %v2754
    %v3134 = vadd.f32 %v1618, %v2757
    %v3135 = vadd.f32 %v1619, %v2760
    %v3136 = vadd.f32 %v1620, %v2763
    %v3137 = vadd.f32 %v1621, %v2766
    %v3138 = vadd.f32 %v1622, %v2769
    %v3139 = vadd.f32 %v1623, %v2772
    %v3140 = vadd.f32 %v1624, %v2775
    %v3141 = vadd.f32 %v1625, %v2778
    %v3142 = vadd.f32 %v1626, %v2781
    %v3143 = vadd.f32 %v1627, %v2784
    %v3144 = vadd.f32 %v1628, %v2787
    %v3145 = vadd.f32 %v1629, %v2790
    %v3146 = vadd.f32 %v1630, %v2793
    %v3147 = vadd.f32 %v1631, %v2796
    %v3148 = vadd.f32 %v1632, %v2799
    %v3149 = vadd.f32 %v1633, %v2802
    %v3150 = vadd.f32 %v1634, %v2805
    %v3151 = vadd.f32 %v1635, %v2808
    %v3152 = vadd.f32 %v1636, %v2811
    %v3153 = vadd.f32 %v1637, %v2814
    %v3154 = vadd.f32 %v1638, %v2817
    %v3155 = vadd.f32 %v1639, %v2820
    %v3156 = vadd.f32 %v1640, %v2823
    %v3157 = vadd.f32 %v1641, %v2826
    %v3158 = vadd.f32 %v1642, %v2829
    %v3159 = vadd.f32 %v1643, %v2832
    %v3160 = vadd.f32 %v1644, %v2835
    %v3161 = vadd.f32 %v1645, %v2838
    %v3162 = vadd.f32 %v1646, %v2841
    %v3163 = vadd.f32 %v1647, %v2844
    %v3164 = vadd.f32 %v1648, %v2847
    %v3165 = vadd.f32 %v1649, %v2850
    %v3166 = vadd.f32 %v1650, %v2853
    %v3167 = vadd.f32 %v1651, %v2856
    %v3168 = vadd.f32 %v1652, %v2859
    %v3169 = vadd.f32 %v1653, %v2862
    %v3170 = vadd.f32 %v1654, %v2865
    %v3171 = vadd.f32 %v1655, %v2868
    %v3172 = vadd.f32 %v1656, %v2871
    %v3173 = vadd.f32 %v1657, %v2874
    %v3174 = vadd.f32 %v1658, %v2877
    %v3175 = vadd.f32 %v1659, %v2880
    %v3176 = vadd.f32 %v1660, %v2883
    %v3177 = vadd.f32 %v1661, %v2886
    %v3178 = vadd.f32 %v1662, %v2889
    %v3179 = vadd.f32 %v1663, %v2892
    %v3180 = vadd.f32 %v1664, %v2895
    %v3181 = vadd.f32 %v1665, %v2898
    %v3182 = vadd.f32 %v1666, %v2901
    %v3183 = vadd.f32 %v1667, %v2904
    %v3184 = vadd.f32 %v1668, %v2907
    %v3185 = vadd.f32 %v1669, %v2910
    %v3186 = vadd.f32 %v1670, %v2913
    %v3187 = vadd.f32 %v1671, %v2916
    %v3188 = vadd.f32 %v1672, %v2919
    %v3189 = vadd.f32 %v1673, %v2922
    %v3190 = vadd.f32 %v1674, %v2925
    %v3191 = vadd.f32 %v1675, %v2928
    %v3192 = vadd.f32 %v1676, %v2931
    %v3193 = vadd.f32 %v1677, %v2934
    %v3194 = vadd.f32 %v1678, %v2937
    %v3195 = vadd.f32 %v1679, %v2940
    %v3196 = vadd.f32 %v1680, %v2943
    %v3197 = vadd.f32 %v1681, %v2946
    %v3198 = vadd.f32 %v1682, %v2949
    %v3199 = vadd.f32 %v1683, %v2952
    %v3200 = vadd.f32 %v1684, %v2955
    %v3201 = vadd.f32 %v1685, %v2958
    %v3202 = vadd.f32 %v1686, %v2961
    %v3203 = vadd.f32 %v1687, %v2964
    %v3204 = vadd.f32 %v1688, %v2967
    %v3205 = vadd.f32 %v1689, %v2970
    %v3206 = vadd.f32 %v1690, %v2973
    %v3207 = vadd.f32 %v1691, %v2976
    %v3208 = vadd.f32 %v1692, %v2979
    %v3209 = vadd.f32 %v1693, %v2982
    %v3210 = vadd.f32 %v1694, %v2985
    %v3211 = vadd.f32 %v1695, %v2988
    %v3212 = vadd.f32 %v1696, %v2991
    %v3213 = vadd.f32 %v1697, %v2994
    %v3214 = vadd.f32 %v1698, %v2997
    %v3215 = vadd.f32 %v1699, %v3000
    %v3216 = vadd.f32 %v1700, %v3003
    %v3217 = vadd.f32 %v1701, %v3006
    %v3218 = vadd.f32 %v1702, %v3009
    %v3219 = vadd.f32 %v1703, %v3012
    %v3220 = vadd.f32 %v1704, %v3015
    %v3221 = vadd.f32 %v1705, %v3018
    %v3222 = vadd.f32 %v1706, %v3021
    %v3223 = vadd.f32 %v1707, %v3024
    %v3224 = vadd.f32 %v1708, %v3027
    %v3225 = vadd.f32 %v1709, %v3030
    %v3226 = vadd.f32 %v1710, %v3033
    %v3227 = vadd.f32 %v1711, %v3036
    %v3228 = vadd.f32 %v1712, %v3039
    %v3229 = vadd.f32 %v1713, %v3042
    %v3230 = vadd.f32 %v1714, %v3045
    %v3231 = vadd.f32 %v1715, %v3048
    %v3232 = vadd.f32 %v1716, %v3051
    %v3233 = vadd.f32 %v1717, %v3054
    %v3234 = vadd.f32 %v1718, %v3057
    %v3235 = vadd.f32 %v1719, %v3060
    %v3236 = vadd.f32 %v1720, %v3063
    %v3237 = vadd.f32 %v1721, %v3066
    %v3238 = vadd.f32 %v1722, %v3069
    %v3239 = vadd.f32 %v1723, %v3072
    %v3240 = vadd.f32 %v1724, %v3075
    %v3241 = vadd.f32 %v1725, %v3078
    %v3242 = vadd.f32 %v1726, %v3081
    %v3243 = vadd.f32 %v1727, %v3084
    %v3244 = vadd.f32 %v1728, %v3087
    %v3245 = vadd.f32 %v1729, %v3090
    %v3246 = vadd.f32 %v1730, %v3093
    %v3247 = vadd.f32 %v1731, %v3096
    %v3248 = vadd.f32 %v1732, %v3099
    %v3249 = vadd.f32 %v1733, %v3102
    %v3250 = vadd.f32 %v1734, %v3105
    %v3251 = vadd.f32 %v1735, %v3108
    %v3252 = vadd.f32 %v1736, %v3111
    %v3253 = vadd.f32 %v1737, %v3114
    %v3254 = vadd.f32 %v1738, %v3117
    %v3255 = vadd.f32 %v1739, %v3120
    %v3256 = vadd.f32 %v1740, %v3123
    %v3257 = vadd.f32 %v1741, %v3126
    %v3258 = vadd.f32 %v1742, %v3129
    %v3259 = vld [vmem:[%s2] sm:$0xff]
    %v3260 = vld [vmem:[%s2 + $0x8] sm:$0xff]
    %v3261 = vld [vmem:[%s2 + $0x10] sm:$0xff]
    %v3262 = vld [vmem:[%s2 + $0x18] sm:$0xff]
    %v3263 = vld [vmem:[%s2 + $0x20] sm:$0xff]
    %v3264 = vld [vmem:[%s2 + $0x28] sm:$0xff]
    %v3265 = vld [vmem:[%s2 + $0x30] sm:$0xff]
    %v3266 = vld [vmem:[%s2 + $0x38] sm:$0xff]
    %v3267 = vld [vmem:[%s2 + $0x40] sm:$0xff]
    %v3268 = vld [vmem:[%s2 + $0x48] sm:$0xff]
    %v3269 = vld [vmem:[%s2 + $0x50] sm:$0xff]
    %v3270 = vld [vmem:[%s2 + $0x58] sm:$0xff]
    %v3271 = vld [vmem:[%s2 + $0x60] sm:$0xff]
    %v3272 = vld [vmem:[%s2 + $0x68] sm:$0xff]
    %v3273 = vld [vmem:[%s2 + $0x70] sm:$0xff]
    %v3274 = vld [vmem:[%s2 + $0x78] sm:$0xff]
    %v3275 = vld [vmem:[%s2 + $0x80] sm:$0xff]
    %v3276 = vld [vmem:[%s2 + $0x88] sm:$0xff]
    %v3277 = vld [vmem:[%s2 + $0x90] sm:$0xff]
    %v3278 = vld [vmem:[%s2 + $0x98] sm:$0xff]
    %v3279 = vld [vmem:[%s2 + $0xa0] sm:$0xff]
    %v3280 = vld [vmem:[%s2 + $0xa8] sm:$0xff]
    %v3281 = vld [vmem:[%s2 + $0xb0] sm:$0xff]
    %v3282 = vld [vmem:[%s2 + $0xb8] sm:$0xff]
    %v3283 = vld [vmem:[%s2 + $0xc0] sm:$0xff]
    %v3284 = vld [vmem:[%s2 + $0xc8] sm:$0xff]
    %v3285 = vld [vmem:[%s2 + $0xd0] sm:$0xff]
    %v3286 = vld [vmem:[%s2 + $0xd8] sm:$0xff]
    %v3287 = vld [vmem:[%s2 + $0xe0] sm:$0xff]
    %v3288 = vld [vmem:[%s2 + $0xe8] sm:$0xff]
    %v3289 = vld [vmem:[%s2 + $0xf0] sm:$0xff]
    %v3290 = vld [vmem:[%s2 + $0xf8] sm:$0xff]
    %v3291 = vld [vmem:[%s9] sm:$0xff]
    %v3292 = vld [vmem:[%s9 + $0x8] sm:$0xff]
    %v3293 = vld [vmem:[%s9 + $0x10] sm:$0xff]
    %v3294 = vld [vmem:[%s9 + $0x18] sm:$0xff]
    %v3295 = vld [vmem:[%s9 + $0x20] sm:$0xff]
    %v3296 = vld [vmem:[%s9 + $0x28] sm:$0xff]
    %v3297 = vld [vmem:[%s9 + $0x30] sm:$0xff]
    %v3298 = vld [vmem:[%s9 + $0x38] sm:$0xff]
    %v3299 = vld [vmem:[%s9 + $0x40] sm:$0xff]
    %v3300 = vld [vmem:[%s9 + $0x48] sm:$0xff]
    %v3301 = vld [vmem:[%s9 + $0x50] sm:$0xff]
    %v3302 = vld [vmem:[%s9 + $0x58] sm:$0xff]
    %v3303 = vld [vmem:[%s9 + $0x60] sm:$0xff]
    %v3304 = vld [vmem:[%s9 + $0x68] sm:$0xff]
    %v3305 = vld [vmem:[%s9 + $0x70] sm:$0xff]
    %v3306 = vld [vmem:[%s9 + $0x78] sm:$0xff]
    %v3307 = vld [vmem:[#allocation8] sm:$0xff]
    %v3308 = vld [vmem:[#allocation8 + $0x8] sm:$0xff]
    %v3309 = vld [vmem:[#allocation8 + $0x10] sm:$0xff]
    %v3310 = vld [vmem:[#allocation8 + $0x18] sm:$0xff]
    %vm3311 = vcmask 261120
    %v3313 = vsel %vm3311, %v3291, 0
    %v3316 = vsel %vm3311, %v3292, 0
    %v3319 = vsel %vm3311, %v3293, 0
    %v3322 = vsel %vm3311, %v3294, 0
    %v3325 = vsel %vm3311, %v3295, 0
    %v3328 = vsel %vm3311, %v3296, 0
    %v3331 = vsel %vm3311, %v3297, 0
    %v3334 = vsel %vm3311, %v3298, 0
    %v3337 = vsel %vm3311, %v3299, 0
    %v3340 = vsel %vm3311, %v3300, 0
    %v3343 = vsel %vm3311, %v3301, 0
    %v3346 = vsel %vm3311, %v3302, 0
    %v3349 = vsel %vm3311, %v3303, 0
    %v3352 = vsel %vm3311, %v3304, 0
    %v3355 = vsel %vm3311, %v3305, 0
    %v3358 = vsel %vm3311, %v3306, 0
    %3360 = vmatpush.msra.mxu0 0.0
    %3361 = vmatpush.msra.mxu0 0.0
    %3362 = vmatpush.msra.mxu0 0.0
    %3363 = vmatpush.msra.mxu0 0.0
    %3364 = vmatpush.msra.mxu0 0.0
    %3365 = vmatpush.msra.mxu0 0.0
    %3366 = vmatpush.msra.mxu0 0.0
    %3367 = vmatpush.msra.mxu0 0.0
    %3368 = vmatpush.msra.mxu0 0.0
    %3369 = vmatpush.msra.mxu0 0.0
    %3370 = vmatpush.msra.mxu0 0.0
    %3371 = vmatpush.msra.mxu0 0.0
    %3372 = vmatpush.msra.mxu0 %v3262
    %3373 = vmatpush.msra.mxu0 %v3261
    %3374 = vmatpush.msra.mxu0 %v3260
    %3375 = vmatpush.msra.mxu0 %v3259
    %3376 = vmatmul.f32.gmra.mxu0 %v3313
    %v3377 = vpop.f32.mrf.mxu0
    %v3378 = vadd.f32 0.0, %v3377
    %3379 = vmatmul.f32.gmra.mxu0 %v3316
    %v3380 = vpop.f32.mrf.mxu0
    %v3381 = vadd.f32 0.0, %v3380
    %3382 = vmatmul.f32.gmra.mxu0 %v3319
    %v3383 = vpop.f32.mrf.mxu0
    %v3384 = vadd.f32 0.0, %v3383
    %3385 = vmatmul.f32.gmra.mxu0 %v3322
    %v3386 = vpop.f32.mrf.mxu0
    %v3387 = vadd.f32 0.0, %v3386
    %3388 = vmatmul.f32.gmra.mxu0 %v3325
    %v3389 = vpop.f32.mrf.mxu0
    %v3390 = vadd.f32 0.0, %v3389
    %3391 = vmatmul.f32.gmra.mxu0 %v3328
    %v3392 = vpop.f32.mrf.mxu0
    %v3393 = vadd.f32 0.0, %v3392
    %3394 = vmatmul.f32.gmra.mxu0 %v3331
    %v3395 = vpop.f32.mrf.mxu0
    %v3396 = vadd.f32 0.0, %v3395
    %3397 = vmatmul.f32.gmra.mxu0 %v3334
    %v3398 = vpop.f32.mrf.mxu0
    %v3399 = vadd.f32 0.0, %v3398
    %3400 = vmatmul.f32.gmra.mxu0 %v3337
    %v3401 = vpop.f32.mrf.mxu0
    %v3402 = vadd.f32 0.0, %v3401
    %3403 = vmatmul.f32.gmra.mxu0 %v3340
    %v3404 = vpop.f32.mrf.mxu0
    %v3405 = vadd.f32 0.0, %v3404
    %3406 = vmatmul.f32.gmra.mxu0 %v3343
    %v3407 = vpop.f32.mrf.mxu0
    %v3408 = vadd.f32 0.0, %v3407
    %3409 = vmatmul.f32.gmra.mxu0 %v3346
    %v3410 = vpop.f32.mrf.mxu0
    %v3411 = vadd.f32 0.0, %v3410
    %3412 = vmatmul.f32.gmra.mxu0 %v3349
    %v3413 = vpop.f32.mrf.mxu0
    %v3414 = vadd.f32 0.0, %v3413
    %3415 = vmatmul.f32.gmra.mxu0 %v3352
    %v3416 = vpop.f32.mrf.mxu0
    %v3417 = vadd.f32 0.0, %v3416
    %3418 = vmatmul.f32.gmra.mxu0 %v3355
    %v3419 = vpop.f32.mrf.mxu0
    %v3420 = vadd.f32 0.0, %v3419
    %3421 = vmatmul.f32.gmra.mxu0 %v3358
    %v3422 = vpop.f32.mrf.mxu0
    %v3423 = vadd.f32 0.0, %v3422
    %3424 = vdwg.mxu0
    %3425 = vmatpush.msra.mxu0 0.0
    %3426 = vmatpush.msra.mxu0 0.0
    %3427 = vmatpush.msra.mxu0 0.0
    %3428 = vmatpush.msra.mxu0 0.0
    %3429 = vmatpush.msra.mxu0 0.0
    %3430 = vmatpush.msra.mxu0 0.0
    %3431 = vmatpush.msra.mxu0 0.0
    %3432 = vmatpush.msra.mxu0 0.0
    %3433 = vmatpush.msra.mxu0 0.0
    %3434 = vmatpush.msra.mxu0 0.0
    %3435 = vmatpush.msra.mxu0 0.0
    %3436 = vmatpush.msra.mxu0 0.0
    %3437 = vmatpush.msra.mxu0 %v3266
    %3438 = vmatpush.msra.mxu0 %v3265
    %3439 = vmatpush.msra.mxu0 %v3264
    %3440 = vmatpush.msra.mxu0 %v3263
    %3441 = vmatmul.f32.gmra.mxu0 %v3313
    %v3442 = vpop.f32.mrf.mxu0
    %v3443 = vadd.f32 0.0, %v3442
    %3444 = vmatmul.f32.gmra.mxu0 %v3316
    %v3445 = vpop.f32.mrf.mxu0
    %v3446 = vadd.f32 0.0, %v3445
    %3447 = vmatmul.f32.gmra.mxu0 %v3319
    %v3448 = vpop.f32.mrf.mxu0
    %v3449 = vadd.f32 0.0, %v3448
    %3450 = vmatmul.f32.gmra.mxu0 %v3322
    %v3451 = vpop.f32.mrf.mxu0
    %v3452 = vadd.f32 0.0, %v3451
    %3453 = vmatmul.f32.gmra.mxu0 %v3325
    %v3454 = vpop.f32.mrf.mxu0
    %v3455 = vadd.f32 0.0, %v3454
    %3456 = vmatmul.f32.gmra.mxu0 %v3328
    %v3457 = vpop.f32.mrf.mxu0
    %v3458 = vadd.f32 0.0, %v3457
    %3459 = vmatmul.f32.gmra.mxu0 %v3331
    %v3460 = vpop.f32.mrf.mxu0
    %v3461 = vadd.f32 0.0, %v3460
    %3462 = vmatmul.f32.gmra.mxu0 %v3334
    %v3463 = vpop.f32.mrf.mxu0
    %v3464 = vadd.f32 0.0, %v3463
    %3465 = vmatmul.f32.gmra.mxu0 %v3337
    %v3466 = vpop.f32.mrf.mxu0
    %v3467 = vadd.f32 0.0, %v3466
    %3468 = vmatmul.f32.gmra.mxu0 %v3340
    %v3469 = vpop.f32.mrf.mxu0
    %v3470 = vadd.f32 0.0, %v3469
    %3471 = vmatmul.f32.gmra.mxu0 %v3343
    %v3472 = vpop.f32.mrf.mxu0
    %v3473 = vadd.f32 0.0, %v3472
    %3474 = vmatmul.f32.gmra.mxu0 %v3346
    %v3475 = vpop.f32.mrf.mxu0
    %v3476 = vadd.f32 0.0, %v3475
    %3477 = vmatmul.f32.gmra.mxu0 %v3349
    %v3478 = vpop.f32.mrf.mxu0
    %v3479 = vadd.f32 0.0, %v3478
    %3480 = vmatmul.f32.gmra.mxu0 %v3352
    %v3481 = vpop.f32.mrf.mxu0
    %v3482 = vadd.f32 0.0, %v3481
    %3483 = vmatmul.f32.gmra.mxu0 %v3355
    %v3484 = vpop.f32.mrf.mxu0
    %v3485 = vadd.f32 0.0, %v3484
    %3486 = vmatmul.f32.gmra.mxu0 %v3358
    %v3487 = vpop.f32.mrf.mxu0
    %v3488 = vadd.f32 0.0, %v3487
    %3489 = vdwg.mxu0
    %3490 = vmatpush.msra.mxu0 0.0
    %3491 = vmatpush.msra.mxu0 0.0
    %3492 = vmatpush.msra.mxu0 0.0
    %3493 = vmatpush.msra.mxu0 0.0
    %3494 = vmatpush.msra.mxu0 0.0
    %3495 = vmatpush.msra.mxu0 0.0
    %3496 = vmatpush.msra.mxu0 0.0
    %3497 = vmatpush.msra.mxu0 0.0
    %3498 = vmatpush.msra.mxu0 0.0
    %3499 = vmatpush.msra.mxu0 0.0
    %3500 = vmatpush.msra.mxu0 0.0
    %3501 = vmatpush.msra.mxu0 0.0
    %3502 = vmatpush.msra.mxu0 %v3270
    %3503 = vmatpush.msra.mxu0 %v3269
    %3504 = vmatpush.msra.mxu0 %v3268
    %3505 = vmatpush.msra.mxu0 %v3267
    %3506 = vmatmul.f32.gmra.mxu0 %v3313
    %v3507 = vpop.f32.mrf.mxu0
    %v3508 = vadd.f32 0.0, %v3507
    %3509 = vmatmul.f32.gmra.mxu0 %v3316
    %v3510 = vpop.f32.mrf.mxu0
    %v3511 = vadd.f32 0.0, %v3510
    %3512 = vmatmul.f32.gmra.mxu0 %v3319
    %v3513 = vpop.f32.mrf.mxu0
    %v3514 = vadd.f32 0.0, %v3513
    %3515 = vmatmul.f32.gmra.mxu0 %v3322
    %v3516 = vpop.f32.mrf.mxu0
    %v3517 = vadd.f32 0.0, %v3516
    %3518 = vmatmul.f32.gmra.mxu0 %v3325
    %v3519 = vpop.f32.mrf.mxu0
    %v3520 = vadd.f32 0.0, %v3519
    %3521 = vmatmul.f32.gmra.mxu0 %v3328
    %v3522 = vpop.f32.mrf.mxu0
    %v3523 = vadd.f32 0.0, %v3522
    %3524 = vmatmul.f32.gmra.mxu0 %v3331
    %v3525 = vpop.f32.mrf.mxu0
    %v3526 = vadd.f32 0.0, %v3525
    %3527 = vmatmul.f32.gmra.mxu0 %v3334
    %v3528 = vpop.f32.mrf.mxu0
    %v3529 = vadd.f32 0.0, %v3528
    %3530 = vmatmul.f32.gmra.mxu0 %v3337
    %v3531 = vpop.f32.mrf.mxu0
    %v3532 = vadd.f32 0.0, %v3531
    %3533 = vmatmul.f32.gmra.mxu0 %v3340
    %v3534 = vpop.f32.mrf.mxu0
    %v3535 = vadd.f32 0.0, %v3534
    %3536 = vmatmul.f32.gmra.mxu0 %v3343
    %v3537 = vpop.f32.mrf.mxu0
    %v3538 = vadd.f32 0.0, %v3537
    %3539 = vmatmul.f32.gmra.mxu0 %v3346
    %v3540 = vpop.f32.mrf.mxu0
    %v3541 = vadd.f32 0.0, %v3540
    %3542 = vmatmul.f32.gmra.mxu0 %v3349
    %v3543 = vpop.f32.mrf.mxu0
    %v3544 = vadd.f32 0.0, %v3543
    %3545 = vmatmul.f32.gmra.mxu0 %v3352
    %v3546 = vpop.f32.mrf.mxu0
    %v3547 = vadd.f32 0.0, %v3546
    %3548 = vmatmul.f32.gmra.mxu0 %v3355
    %v3549 = vpop.f32.mrf.mxu0
    %v3550 = vadd.f32 0.0, %v3549
    %3551 = vmatmul.f32.gmra.mxu0 %v3358
    %v3552 = vpop.f32.mrf.mxu0
    %v3553 = vadd.f32 0.0, %v3552
    %3554 = vdwg.mxu0
    %3555 = vmatpush.msra.mxu0 0.0
    %3556 = vmatpush.msra.mxu0 0.0
    %3557 = vmatpush.msra.mxu0 0.0
    %3558 = vmatpush.msra.mxu0 0.0
    %3559 = vmatpush.msra.mxu0 0.0
    %3560 = vmatpush.msra.mxu0 0.0
    %3561 = vmatpush.msra.mxu0 0.0
    %3562 = vmatpush.msra.mxu0 0.0
    %3563 = vmatpush.msra.mxu0 0.0
    %3564 = vmatpush.msra.mxu0 0.0
    %3565 = vmatpush.msra.mxu0 0.0
    %3566 = vmatpush.msra.mxu0 0.0
    %3567 = vmatpush.msra.mxu0 %v3274
    %3568 = vmatpush.msra.mxu0 %v3273
    %3569 = vmatpush.msra.mxu0 %v3272
    %3570 = vmatpush.msra.mxu0 %v3271
    %3571 = vmatmul.f32.gmra.mxu0 %v3313
    %v3572 = vpop.f32.mrf.mxu0
    %v3573 = vadd.f32 0.0, %v3572
    %3574 = vmatmul.f32.gmra.mxu0 %v3316
    %v3575 = vpop.f32.mrf.mxu0
    %v3576 = vadd.f32 0.0, %v3575
    %3577 = vmatmul.f32.gmra.mxu0 %v3319
    %v3578 = vpop.f32.mrf.mxu0
    %v3579 = vadd.f32 0.0, %v3578
    %3580 = vmatmul.f32.gmra.mxu0 %v3322
    %v3581 = vpop.f32.mrf.mxu0
    %v3582 = vadd.f32 0.0, %v3581
    %3583 = vmatmul.f32.gmra.mxu0 %v3325
    %v3584 = vpop.f32.mrf.mxu0
    %v3585 = vadd.f32 0.0, %v3584
    %3586 = vmatmul.f32.gmra.mxu0 %v3328
    %v3587 = vpop.f32.mrf.mxu0
    %v3588 = vadd.f32 0.0, %v3587
    %3589 = vmatmul.f32.gmra.mxu0 %v3331
    %v3590 = vpop.f32.mrf.mxu0
    %v3591 = vadd.f32 0.0, %v3590
    %3592 = vmatmul.f32.gmra.mxu0 %v3334
    %v3593 = vpop.f32.mrf.mxu0
    %v3594 = vadd.f32 0.0, %v3593
    %3595 = vmatmul.f32.gmra.mxu0 %v3337
    %v3596 = vpop.f32.mrf.mxu0
    %v3597 = vadd.f32 0.0, %v3596
    %3598 = vmatmul.f32.gmra.mxu0 %v3340
    %v3599 = vpop.f32.mrf.mxu0
    %v3600 = vadd.f32 0.0, %v3599
    %3601 = vmatmul.f32.gmra.mxu0 %v3343
    %v3602 = vpop.f32.mrf.mxu0
    %v3603 = vadd.f32 0.0, %v3602
    %3604 = vmatmul.f32.gmra.mxu0 %v3346
    %v3605 = vpop.f32.mrf.mxu0
    %v3606 = vadd.f32 0.0, %v3605
    %3607 = vmatmul.f32.gmra.mxu0 %v3349
    %v3608 = vpop.f32.mrf.mxu0
    %v3609 = vadd.f32 0.0, %v3608
    %3610 = vmatmul.f32.gmra.mxu0 %v3352
    %v3611 = vpop.f32.mrf.mxu0
    %v3612 = vadd.f32 0.0, %v3611
    %3613 = vmatmul.f32.gmra.mxu0 %v3355
    %v3614 = vpop.f32.mrf.mxu0
    %v3615 = vadd.f32 0.0, %v3614
    %3616 = vmatmul.f32.gmra.mxu0 %v3358
    %v3617 = vpop.f32.mrf.mxu0
    %v3618 = vadd.f32 0.0, %v3617
    %3619 = vdwg.mxu0
    %3620 = vmatpush.msra.mxu0 0.0
    %3621 = vmatpush.msra.mxu0 0.0
    %3622 = vmatpush.msra.mxu0 0.0
    %3623 = vmatpush.msra.mxu0 0.0
    %3624 = vmatpush.msra.mxu0 0.0
    %3625 = vmatpush.msra.mxu0 0.0
    %3626 = vmatpush.msra.mxu0 0.0
    %3627 = vmatpush.msra.mxu0 0.0
    %3628 = vmatpush.msra.mxu0 0.0
    %3629 = vmatpush.msra.mxu0 0.0
    %3630 = vmatpush.msra.mxu0 0.0
    %3631 = vmatpush.msra.mxu0 0.0
    %3632 = vmatpush.msra.mxu0 %v3278
    %3633 = vmatpush.msra.mxu0 %v3277
    %3634 = vmatpush.msra.mxu0 %v3276
    %3635 = vmatpush.msra.mxu0 %v3275
    %3636 = vmatmul.f32.gmra.mxu0 %v3313
    %v3637 = vpop.f32.mrf.mxu0
    %v3638 = vadd.f32 0.0, %v3637
    %3639 = vmatmul.f32.gmra.mxu0 %v3316
    %v3640 = vpop.f32.mrf.mxu0
    %v3641 = vadd.f32 0.0, %v3640
    %3642 = vmatmul.f32.gmra.mxu0 %v3319
    %v3643 = vpop.f32.mrf.mxu0
    %v3644 = vadd.f32 0.0, %v3643
    %3645 = vmatmul.f32.gmra.mxu0 %v3322
    %v3646 = vpop.f32.mrf.mxu0
    %v3647 = vadd.f32 0.0, %v3646
    %3648 = vmatmul.f32.gmra.mxu0 %v3325
    %v3649 = vpop.f32.mrf.mxu0
    %v3650 = vadd.f32 0.0, %v3649
    %3651 = vmatmul.f32.gmra.mxu0 %v3328
    %v3652 = vpop.f32.mrf.mxu0
    %v3653 = vadd.f32 0.0, %v3652
    %3654 = vmatmul.f32.gmra.mxu0 %v3331
    %v3655 = vpop.f32.mrf.mxu0
    %v3656 = vadd.f32 0.0, %v3655
    %3657 = vmatmul.f32.gmra.mxu0 %v3334
    %v3658 = vpop.f32.mrf.mxu0
    %v3659 = vadd.f32 0.0, %v3658
    %3660 = vmatmul.f32.gmra.mxu0 %v3337
    %v3661 = vpop.f32.mrf.mxu0
    %v3662 = vadd.f32 0.0, %v3661
    %3663 = vmatmul.f32.gmra.mxu0 %v3340
    %v3664 = vpop.f32.mrf.mxu0
    %v3665 = vadd.f32 0.0, %v3664
    %3666 = vmatmul.f32.gmra.mxu0 %v3343
    %v3667 = vpop.f32.mrf.mxu0
    %v3668 = vadd.f32 0.0, %v3667
    %3669 = vmatmul.f32.gmra.mxu0 %v3346
    %v3670 = vpop.f32.mrf.mxu0
    %v3671 = vadd.f32 0.0, %v3670
    %3672 = vmatmul.f32.gmra.mxu0 %v3349
    %v3673 = vpop.f32.mrf.mxu0
    %v3674 = vadd.f32 0.0, %v3673
    %3675 = vmatmul.f32.gmra.mxu0 %v3352
    %v3676 = vpop.f32.mrf.mxu0
    %v3677 = vadd.f32 0.0, %v3676
    %3678 = vmatmul.f32.gmra.mxu0 %v3355
    %v3679 = vpop.f32.mrf.mxu0
    %v3680 = vadd.f32 0.0, %v3679
    %3681 = vmatmul.f32.gmra.mxu0 %v3358
    %v3682 = vpop.f32.mrf.mxu0
    %v3683 = vadd.f32 0.0, %v3682
    %3684 = vdwg.mxu0
    %3685 = vmatpush.msra.mxu0 0.0
    %3686 = vmatpush.msra.mxu0 0.0
    %3687 = vmatpush.msra.mxu0 0.0
    %3688 = vmatpush.msra.mxu0 0.0
    %3689 = vmatpush.msra.mxu0 0.0
    %3690 = vmatpush.msra.mxu0 0.0
    %3691 = vmatpush.msra.mxu0 0.0
    %3692 = vmatpush.msra.mxu0 0.0
    %3693 = vmatpush.msra.mxu0 0.0
    %3694 = vmatpush.msra.mxu0 0.0
    %3695 = vmatpush.msra.mxu0 0.0
    %3696 = vmatpush.msra.mxu0 0.0
    %3697 = vmatpush.msra.mxu0 %v3282
    %3698 = vmatpush.msra.mxu0 %v3281
    %3699 = vmatpush.msra.mxu0 %v3280
    %3700 = vmatpush.msra.mxu0 %v3279
    %3701 = vmatmul.f32.gmra.mxu0 %v3313
    %v3702 = vpop.f32.mrf.mxu0
    %v3703 = vadd.f32 0.0, %v3702
    %3704 = vmatmul.f32.gmra.mxu0 %v3316
    %v3705 = vpop.f32.mrf.mxu0
    %v3706 = vadd.f32 0.0, %v3705
    %3707 = vmatmul.f32.gmra.mxu0 %v3319
    %v3708 = vpop.f32.mrf.mxu0
    %v3709 = vadd.f32 0.0, %v3708
    %3710 = vmatmul.f32.gmra.mxu0 %v3322
    %v3711 = vpop.f32.mrf.mxu0
    %v3712 = vadd.f32 0.0, %v3711
    %3713 = vmatmul.f32.gmra.mxu0 %v3325
    %v3714 = vpop.f32.mrf.mxu0
    %v3715 = vadd.f32 0.0, %v3714
    %3716 = vmatmul.f32.gmra.mxu0 %v3328
    %v3717 = vpop.f32.mrf.mxu0
    %v3718 = vadd.f32 0.0, %v3717
    %3719 = vmatmul.f32.gmra.mxu0 %v3331
    %v3720 = vpop.f32.mrf.mxu0
    %v3721 = vadd.f32 0.0, %v3720
    %3722 = vmatmul.f32.gmra.mxu0 %v3334
    %v3723 = vpop.f32.mrf.mxu0
    %v3724 = vadd.f32 0.0, %v3723
    %3725 = vmatmul.f32.gmra.mxu0 %v3337
    %v3726 = vpop.f32.mrf.mxu0
    %v3727 = vadd.f32 0.0, %v3726
    %3728 = vmatmul.f32.gmra.mxu0 %v3340
    %v3729 = vpop.f32.mrf.mxu0
    %v3730 = vadd.f32 0.0, %v3729
    %3731 = vmatmul.f32.gmra.mxu0 %v3343
    %v3732 = vpop.f32.mrf.mxu0
    %v3733 = vadd.f32 0.0, %v3732
    %3734 = vmatmul.f32.gmra.mxu0 %v3346
    %v3735 = vpop.f32.mrf.mxu0
    %v3736 = vadd.f32 0.0, %v3735
    %3737 = vmatmul.f32.gmra.mxu0 %v3349
    %v3738 = vpop.f32.mrf.mxu0
    %v3739 = vadd.f32 0.0, %v3738
    %3740 = vmatmul.f32.gmra.mxu0 %v3352
    %v3741 = vpop.f32.mrf.mxu0
    %v3742 = vadd.f32 0.0, %v3741
    %3743 = vmatmul.f32.gmra.mxu0 %v3355
    %v3744 = vpop.f32.mrf.mxu0
    %v3745 = vadd.f32 0.0, %v3744
    %3746 = vmatmul.f32.gmra.mxu0 %v3358
    %v3747 = vpop.f32.mrf.mxu0
    %v3748 = vadd.f32 0.0, %v3747
    %3749 = vdwg.mxu0
    %3750 = vmatpush.msra.mxu0 0.0
    %3751 = vmatpush.msra.mxu0 0.0
    %3752 = vmatpush.msra.mxu0 0.0
    %3753 = vmatpush.msra.mxu0 0.0
    %3754 = vmatpush.msra.mxu0 0.0
    %3755 = vmatpush.msra.mxu0 0.0
    %3756 = vmatpush.msra.mxu0 0.0
    %3757 = vmatpush.msra.mxu0 0.0
    %3758 = vmatpush.msra.mxu0 0.0
    %3759 = vmatpush.msra.mxu0 0.0
    %3760 = vmatpush.msra.mxu0 0.0
    %3761 = vmatpush.msra.mxu0 0.0
    %3762 = vmatpush.msra.mxu0 %v3286
    %3763 = vmatpush.msra.mxu0 %v3285
    %3764 = vmatpush.msra.mxu0 %v3284
    %3765 = vmatpush.msra.mxu0 %v3283
    %3766 = vmatmul.f32.gmra.mxu0 %v3313
    %v3767 = vpop.f32.mrf.mxu0
    %v3768 = vadd.f32 0.0, %v3767
    %3769 = vmatmul.f32.gmra.mxu0 %v3316
    %v3770 = vpop.f32.mrf.mxu0
    %v3771 = vadd.f32 0.0, %v3770
    %3772 = vmatmul.f32.gmra.mxu0 %v3319
    %v3773 = vpop.f32.mrf.mxu0
    %v3774 = vadd.f32 0.0, %v3773
    %3775 = vmatmul.f32.gmra.mxu0 %v3322
    %v3776 = vpop.f32.mrf.mxu0
    %v3777 = vadd.f32 0.0, %v3776
    %3778 = vmatmul.f32.gmra.mxu0 %v3325
    %v3779 = vpop.f32.mrf.mxu0
    %v3780 = vadd.f32 0.0, %v3779
    %3781 = vmatmul.f32.gmra.mxu0 %v3328
    %v3782 = vpop.f32.mrf.mxu0
    %v3783 = vadd.f32 0.0, %v3782
    %3784 = vmatmul.f32.gmra.mxu0 %v3331
    %v3785 = vpop.f32.mrf.mxu0
    %v3786 = vadd.f32 0.0, %v3785
    %3787 = vmatmul.f32.gmra.mxu0 %v3334
    %v3788 = vpop.f32.mrf.mxu0
    %v3789 = vadd.f32 0.0, %v3788
    %3790 = vmatmul.f32.gmra.mxu0 %v3337
    %v3791 = vpop.f32.mrf.mxu0
    %v3792 = vadd.f32 0.0, %v3791
    %3793 = vmatmul.f32.gmra.mxu0 %v3340
    %v3794 = vpop.f32.mrf.mxu0
    %v3795 = vadd.f32 0.0, %v3794
    %3796 = vmatmul.f32.gmra.mxu0 %v3343
    %v3797 = vpop.f32.mrf.mxu0
    %v3798 = vadd.f32 0.0, %v3797
    %3799 = vmatmul.f32.gmra.mxu0 %v3346
    %v3800 = vpop.f32.mrf.mxu0
    %v3801 = vadd.f32 0.0, %v3800
    %3802 = vmatmul.f32.gmra.mxu0 %v3349
    %v3803 = vpop.f32.mrf.mxu0
    %v3804 = vadd.f32 0.0, %v3803
    %3805 = vmatmul.f32.gmra.mxu0 %v3352
    %v3806 = vpop.f32.mrf.mxu0
    %v3807 = vadd.f32 0.0, %v3806
    %3808 = vmatmul.f32.gmra.mxu0 %v3355
    %v3809 = vpop.f32.mrf.mxu0
    %v3810 = vadd.f32 0.0, %v3809
    %3811 = vmatmul.f32.gmra.mxu0 %v3358
    %v3812 = vpop.f32.mrf.mxu0
    %v3813 = vadd.f32 0.0, %v3812
    %3814 = vdwg.mxu0
    %3815 = vmatpush.msra.mxu0 0.0
    %3816 = vmatpush.msra.mxu0 0.0
    %3817 = vmatpush.msra.mxu0 0.0
    %3818 = vmatpush.msra.mxu0 0.0
    %3819 = vmatpush.msra.mxu0 0.0
    %3820 = vmatpush.msra.mxu0 0.0
    %3821 = vmatpush.msra.mxu0 0.0
    %3822 = vmatpush.msra.mxu0 0.0
    %3823 = vmatpush.msra.mxu0 0.0
    %3824 = vmatpush.msra.mxu0 0.0
    %3825 = vmatpush.msra.mxu0 0.0
    %3826 = vmatpush.msra.mxu0 0.0
    %3827 = vmatpush.msra.mxu0 %v3290
    %3828 = vmatpush.msra.mxu0 %v3289
    %3829 = vmatpush.msra.mxu0 %v3288
    %3830 = vmatpush.msra.mxu0 %v3287
    %3831 = vmatmul.f32.gmra.mxu0 %v3313
    %v3832 = vpop.f32.mrf.mxu0
    %v3833 = vadd.f32 0.0, %v3832
    %3834 = vmatmul.f32.gmra.mxu0 %v3316
    %v3835 = vpop.f32.mrf.mxu0
    %v3836 = vadd.f32 0.0, %v3835
    %3837 = vmatmul.f32.gmra.mxu0 %v3319
    %v3838 = vpop.f32.mrf.mxu0
    %v3839 = vadd.f32 0.0, %v3838
    %3840 = vmatmul.f32.gmra.mxu0 %v3322
    %v3841 = vpop.f32.mrf.mxu0
    %v3842 = vadd.f32 0.0, %v3841
    %3843 = vmatmul.f32.gmra.mxu0 %v3325
    %v3844 = vpop.f32.mrf.mxu0
    %v3845 = vadd.f32 0.0, %v3844
    %3846 = vmatmul.f32.gmra.mxu0 %v3328
    %v3847 = vpop.f32.mrf.mxu0
    %v3848 = vadd.f32 0.0, %v3847
    %3849 = vmatmul.f32.gmra.mxu0 %v3331
    %v3850 = vpop.f32.mrf.mxu0
    %v3851 = vadd.f32 0.0, %v3850
    %3852 = vmatmul.f32.gmra.mxu0 %v3334
    %v3853 = vpop.f32.mrf.mxu0
    %v3854 = vadd.f32 0.0, %v3853
    %3855 = vmatmul.f32.gmra.mxu0 %v3337
    %v3856 = vpop.f32.mrf.mxu0
    %v3857 = vadd.f32 0.0, %v3856
    %3858 = vmatmul.f32.gmra.mxu0 %v3340
    %v3859 = vpop.f32.mrf.mxu0
    %v3860 = vadd.f32 0.0, %v3859
    %3861 = vmatmul.f32.gmra.mxu0 %v3343
    %v3862 = vpop.f32.mrf.mxu0
    %v3863 = vadd.f32 0.0, %v3862
    %3864 = vmatmul.f32.gmra.mxu0 %v3346
    %v3865 = vpop.f32.mrf.mxu0
    %v3866 = vadd.f32 0.0, %v3865
    %3867 = vmatmul.f32.gmra.mxu0 %v3349
    %v3868 = vpop.f32.mrf.mxu0
    %v3869 = vadd.f32 0.0, %v3868
    %3870 = vmatmul.f32.gmra.mxu0 %v3352
    %v3871 = vpop.f32.mrf.mxu0
    %v3872 = vadd.f32 0.0, %v3871
    %3873 = vmatmul.f32.gmra.mxu0 %v3355
    %v3874 = vpop.f32.mrf.mxu0
    %v3875 = vadd.f32 0.0, %v3874
    %3876 = vmatmul.f32.gmra.mxu0 %v3358
    %v3877 = vpop.f32.mrf.mxu0
    %v3878 = vadd.f32 0.0, %v3877
    %3879 = vdwg.mxu0
    %v3881 = vsel %vm3311, %v3378, 0
    %v3884 = vsel %vm3311, %v3381, 0
    %v3887 = vsel %vm3311, %v3384, 0
    %v3890 = vsel %vm3311, %v3387, 0
    %v3893 = vsel %vm3311, %v3390, 0
    %v3896 = vsel %vm3311, %v3393, 0
    %v3899 = vsel %vm3311, %v3396, 0
    %v3902 = vsel %vm3311, %v3399, 0
    %v3905 = vsel %vm3311, %v3402, 0
    %v3908 = vsel %vm3311, %v3405, 0
    %v3911 = vsel %vm3311, %v3408, 0
    %v3914 = vsel %vm3311, %v3411, 0
    %v3917 = vsel %vm3311, %v3414, 0
    %v3920 = vsel %vm3311, %v3417, 0
    %v3923 = vsel %vm3311, %v3420, 0
    %v3926 = vsel %vm3311, %v3423, 0
    %v3929 = vsel %vm3311, %v3443, 0
    %v3932 = vsel %vm3311, %v3446, 0
    %v3935 = vsel %vm3311, %v3449, 0
    %v3938 = vsel %vm3311, %v3452, 0
    %v3941 = vsel %vm3311, %v3455, 0
    %v3944 = vsel %vm3311, %v3458, 0
    %v3947 = vsel %vm3311, %v3461, 0
    %v3950 = vsel %vm3311, %v3464, 0
    %v3953 = vsel %vm3311, %v3467, 0
    %v3956 = vsel %vm3311, %v3470, 0
    %v3959 = vsel %vm3311, %v3473, 0
    %v3962 = vsel %vm3311, %v3476, 0
    %v3965 = vsel %vm3311, %v3479, 0
    %v3968 = vsel %vm3311, %v3482, 0
    %v3971 = vsel %vm3311, %v3485, 0
    %v3974 = vsel %vm3311, %v3488, 0
    %v3977 = vsel %vm3311, %v3508, 0
    %v3980 = vsel %vm3311, %v3511, 0
    %v3983 = vsel %vm3311, %v3514, 0
    %v3986 = vsel %vm3311, %v3517, 0
    %v3989 = vsel %vm3311, %v3520, 0
    %v3992 = vsel %vm3311, %v3523, 0
    %v3995 = vsel %vm3311, %v3526, 0
    %v3998 = vsel %vm3311, %v3529, 0
    %v4001 = vsel %vm3311, %v3532, 0
    %v4004 = vsel %vm3311, %v3535, 0
    %v4007 = vsel %vm3311, %v3538, 0
    %v4010 = vsel %vm3311, %v3541, 0
    %v4013 = vsel %vm3311, %v3544, 0
    %v4016 = vsel %vm3311, %v3547, 0
    %v4019 = vsel %vm3311, %v3550, 0
    %v4022 = vsel %vm3311, %v3553, 0
    %v4025 = vsel %vm3311, %v3573, 0
    %v4028 = vsel %vm3311, %v3576, 0
    %v4031 = vsel %vm3311, %v3579, 0
    %v4034 = vsel %vm3311, %v3582, 0
    %v4037 = vsel %vm3311, %v3585, 0
    %v4040 = vsel %vm3311, %v3588, 0
    %v4043 = vsel %vm3311, %v3591, 0
    %v4046 = vsel %vm3311, %v3594, 0
    %v4049 = vsel %vm3311, %v3597, 0
    %v4052 = vsel %vm3311, %v3600, 0
    %v4055 = vsel %vm3311, %v3603, 0
    %v4058 = vsel %vm3311, %v3606, 0
    %v4061 = vsel %vm3311, %v3609, 0
    %v4064 = vsel %vm3311, %v3612, 0
    %v4067 = vsel %vm3311, %v3615, 0
    %v4070 = vsel %vm3311, %v3618, 0
    %v4073 = vsel %vm3311, %v3638, 0
    %v4076 = vsel %vm3311, %v3641, 0
    %v4079 = vsel %vm3311, %v3644, 0
    %v4082 = vsel %vm3311, %v3647, 0
    %v4085 = vsel %vm3311, %v3650, 0
    %v4088 = vsel %vm3311, %v3653, 0
    %v4091 = vsel %vm3311, %v3656, 0
    %v4094 = vsel %vm3311, %v3659, 0
    %v4097 = vsel %vm3311, %v3662, 0
    %v4100 = vsel %vm3311, %v3665, 0
    %v4103 = vsel %vm3311, %v3668, 0
    %v4106 = vsel %vm3311, %v3671, 0
    %v4109 = vsel %vm3311, %v3674, 0
    %v4112 = vsel %vm3311, %v3677, 0
    %v4115 = vsel %vm3311, %v3680, 0
    %v4118 = vsel %vm3311, %v3683, 0
    %v4121 = vsel %vm3311, %v3703, 0
    %v4124 = vsel %vm3311, %v3706, 0
    %v4127 = vsel %vm3311, %v3709, 0
    %v4130 = vsel %vm3311, %v3712, 0
    %v4133 = vsel %vm3311, %v3715, 0
    %v4136 = vsel %vm3311, %v3718, 0
    %v4139 = vsel %vm3311, %v3721, 0
    %v4142 = vsel %vm3311, %v3724, 0
    %v4145 = vsel %vm3311, %v3727, 0
    %v4148 = vsel %vm3311, %v3730, 0
    %v4151 = vsel %vm3311, %v3733, 0
    %v4154 = vsel %vm3311, %v3736, 0
    %v4157 = vsel %vm3311, %v3739, 0
    %v4160 = vsel %vm3311, %v3742, 0
    %v4163 = vsel %vm3311, %v3745, 0
    %v4166 = vsel %vm3311, %v3748, 0
    %v4169 = vsel %vm3311, %v3768, 0
    %v4172 = vsel %vm3311, %v3771, 0
    %v4175 = vsel %vm3311, %v3774, 0
    %v4178 = vsel %vm3311, %v3777, 0
    %v4181 = vsel %vm3311, %v3780, 0
    %v4184 = vsel %vm3311, %v3783, 0
    %v4187 = vsel %vm3311, %v3786, 0
    %v4190 = vsel %vm3311, %v3789, 0
    %v4193 = vsel %vm3311, %v3792, 0
    %v4196 = vsel %vm3311, %v3795, 0
    %v4199 = vsel %vm3311, %v3798, 0
    %v4202 = vsel %vm3311, %v3801, 0
    %v4205 = vsel %vm3311, %v3804, 0
    %v4208 = vsel %vm3311, %v3807, 0
    %v4211 = vsel %vm3311, %v3810, 0
    %v4214 = vsel %vm3311, %v3813, 0
    %v4217 = vsel %vm3311, %v3833, 0
    %v4220 = vsel %vm3311, %v3836, 0
    %v4223 = vsel %vm3311, %v3839, 0
    %v4226 = vsel %vm3311, %v3842, 0
    %v4229 = vsel %vm3311, %v3845, 0
    %v4232 = vsel %vm3311, %v3848, 0
    %v4235 = vsel %vm3311, %v3851, 0
    %v4238 = vsel %vm3311, %v3854, 0
    %v4241 = vsel %vm3311, %v3857, 0
    %v4244 = vsel %vm3311, %v3860, 0
    %v4247 = vsel %vm3311, %v3863, 0
    %v4250 = vsel %vm3311, %v3866, 0
    %v4253 = vsel %vm3311, %v3869, 0
    %v4256 = vsel %vm3311, %v3872, 0
    %v4259 = vsel %vm3311, %v3875, 0
    %v4262 = vsel %vm3311, %v3878, 0
    %4264 = vmatpush.msra.mxu0 0.0
    %4265 = vmatpush.msra.mxu0 0.0
    %4266 = vmatpush.msra.mxu0 0.0
    %4267 = vmatpush.msra.mxu0 0.0
    %4268 = vmatpush.msra.mxu0 0.0
    %4269 = vmatpush.msra.mxu0 0.0
    %4270 = vmatpush.msra.mxu0 0.0
    %4271 = vmatpush.msra.mxu0 0.0
    %4272 = vmatpush.msra.mxu0 0.0
    %4273 = vmatpush.msra.mxu0 0.0
    %4274 = vmatpush.msra.mxu0 0.0
    %4275 = vmatpush.msra.mxu0 0.0
    %4276 = vmatpush.msra.mxu0 %v3310
    %4277 = vmatpush.msra.mxu0 %v3309
    %4278 = vmatpush.msra.mxu0 %v3308
    %4279 = vmatpush.msra.mxu0 %v3307
    %4280 = vmatmul.f32.gmra.mxu0 %v3881
    %v4281 = vpop.f32.mrf.mxu0
    %v4282 = vadd.f32 0.0, %v4281
    %4283 = vmatmul.f32.gmra.mxu0 %v3884
    %v4284 = vpop.f32.mrf.mxu0
    %v4285 = vadd.f32 0.0, %v4284
    %4286 = vmatmul.f32.gmra.mxu0 %v3887
    %v4287 = vpop.f32.mrf.mxu0
    %v4288 = vadd.f32 0.0, %v4287
    %4289 = vmatmul.f32.gmra.mxu0 %v3890
    %v4290 = vpop.f32.mrf.mxu0
    %v4291 = vadd.f32 0.0, %v4290
    %4292 = vmatmul.f32.gmra.mxu0 %v3893
    %v4293 = vpop.f32.mrf.mxu0
    %v4294 = vadd.f32 0.0, %v4293
    %4295 = vmatmul.f32.gmra.mxu0 %v3896
    %v4296 = vpop.f32.mrf.mxu0
    %v4297 = vadd.f32 0.0, %v4296
    %4298 = vmatmul.f32.gmra.mxu0 %v3899
    %v4299 = vpop.f32.mrf.mxu0
    %v4300 = vadd.f32 0.0, %v4299
    %4301 = vmatmul.f32.gmra.mxu0 %v3902
    %v4302 = vpop.f32.mrf.mxu0
    %v4303 = vadd.f32 0.0, %v4302
    %4304 = vmatmul.f32.gmra.mxu0 %v3905
    %v4305 = vpop.f32.mrf.mxu0
    %v4306 = vadd.f32 0.0, %v4305
    %4307 = vmatmul.f32.gmra.mxu0 %v3908
    %v4308 = vpop.f32.mrf.mxu0
    %v4309 = vadd.f32 0.0, %v4308
    %4310 = vmatmul.f32.gmra.mxu0 %v3911
    %v4311 = vpop.f32.mrf.mxu0
    %v4312 = vadd.f32 0.0, %v4311
    %4313 = vmatmul.f32.gmra.mxu0 %v3914
    %v4314 = vpop.f32.mrf.mxu0
    %v4315 = vadd.f32 0.0, %v4314
    %4316 = vmatmul.f32.gmra.mxu0 %v3917
    %v4317 = vpop.f32.mrf.mxu0
    %v4318 = vadd.f32 0.0, %v4317
    %4319 = vmatmul.f32.gmra.mxu0 %v3920
    %v4320 = vpop.f32.mrf.mxu0
    %v4321 = vadd.f32 0.0, %v4320
    %4322 = vmatmul.f32.gmra.mxu0 %v3923
    %v4323 = vpop.f32.mrf.mxu0
    %v4324 = vadd.f32 0.0, %v4323
    %4325 = vmatmul.f32.gmra.mxu0 %v3926
    %v4326 = vpop.f32.mrf.mxu0
    %v4327 = vadd.f32 0.0, %v4326
    %4328 = vmatmul.f32.gmra.mxu0 %v3929
    %v4329 = vpop.f32.mrf.mxu0
    %v4330 = vadd.f32 0.0, %v4329
    %4331 = vmatmul.f32.gmra.mxu0 %v3932
    %v4332 = vpop.f32.mrf.mxu0
    %v4333 = vadd.f32 0.0, %v4332
    %4334 = vmatmul.f32.gmra.mxu0 %v3935
    %v4335 = vpop.f32.mrf.mxu0
    %v4336 = vadd.f32 0.0, %v4335
    %4337 = vmatmul.f32.gmra.mxu0 %v3938
    %v4338 = vpop.f32.mrf.mxu0
    %v4339 = vadd.f32 0.0, %v4338
    %4340 = vmatmul.f32.gmra.mxu0 %v3941
    %v4341 = vpop.f32.mrf.mxu0
    %v4342 = vadd.f32 0.0, %v4341
    %4343 = vmatmul.f32.gmra.mxu0 %v3944
    %v4344 = vpop.f32.mrf.mxu0
    %v4345 = vadd.f32 0.0, %v4344
    %4346 = vmatmul.f32.gmra.mxu0 %v3947
    %v4347 = vpop.f32.mrf.mxu0
    %v4348 = vadd.f32 0.0, %v4347
    %4349 = vmatmul.f32.gmra.mxu0 %v3950
    %v4350 = vpop.f32.mrf.mxu0
    %v4351 = vadd.f32 0.0, %v4350
    %4352 = vmatmul.f32.gmra.mxu0 %v3953
    %v4353 = vpop.f32.mrf.mxu0
    %v4354 = vadd.f32 0.0, %v4353
    %4355 = vmatmul.f32.gmra.mxu0 %v3956
    %v4356 = vpop.f32.mrf.mxu0
    %v4357 = vadd.f32 0.0, %v4356
    %4358 = vmatmul.f32.gmra.mxu0 %v3959
    %v4359 = vpop.f32.mrf.mxu0
    %v4360 = vadd.f32 0.0, %v4359
    %4361 = vmatmul.f32.gmra.mxu0 %v3962
    %v4362 = vpop.f32.mrf.mxu0
    %v4363 = vadd.f32 0.0, %v4362
    %4364 = vmatmul.f32.gmra.mxu0 %v3965
    %v4365 = vpop.f32.mrf.mxu0
    %v4366 = vadd.f32 0.0, %v4365
    %4367 = vmatmul.f32.gmra.mxu0 %v3968
    %v4368 = vpop.f32.mrf.mxu0
    %v4369 = vadd.f32 0.0, %v4368
    %4370 = vmatmul.f32.gmra.mxu0 %v3971
    %v4371 = vpop.f32.mrf.mxu0
    %v4372 = vadd.f32 0.0, %v4371
    %4373 = vmatmul.f32.gmra.mxu0 %v3974
    %v4374 = vpop.f32.mrf.mxu0
    %v4375 = vadd.f32 0.0, %v4374
    %4376 = vmatmul.f32.gmra.mxu0 %v3977
    %v4377 = vpop.f32.mrf.mxu0
    %v4378 = vadd.f32 0.0, %v4377
    %4379 = vmatmul.f32.gmra.mxu0 %v3980
    %v4380 = vpop.f32.mrf.mxu0
    %v4381 = vadd.f32 0.0, %v4380
    %4382 = vmatmul.f32.gmra.mxu0 %v3983
    %v4383 = vpop.f32.mrf.mxu0
    %v4384 = vadd.f32 0.0, %v4383
    %4385 = vmatmul.f32.gmra.mxu0 %v3986
    %v4386 = vpop.f32.mrf.mxu0
    %v4387 = vadd.f32 0.0, %v4386
    %4388 = vmatmul.f32.gmra.mxu0 %v3989
    %v4389 = vpop.f32.mrf.mxu0
    %v4390 = vadd.f32 0.0, %v4389
    %4391 = vmatmul.f32.gmra.mxu0 %v3992
    %v4392 = vpop.f32.mrf.mxu0
    %v4393 = vadd.f32 0.0, %v4392
    %4394 = vmatmul.f32.gmra.mxu0 %v3995
    %v4395 = vpop.f32.mrf.mxu0
    %v4396 = vadd.f32 0.0, %v4395
    %4397 = vmatmul.f32.gmra.mxu0 %v3998
    %v4398 = vpop.f32.mrf.mxu0
    %v4399 = vadd.f32 0.0, %v4398
    %4400 = vmatmul.f32.gmra.mxu0 %v4001
    %v4401 = vpop.f32.mrf.mxu0
    %v4402 = vadd.f32 0.0, %v4401
    %4403 = vmatmul.f32.gmra.mxu0 %v4004
    %v4404 = vpop.f32.mrf.mxu0
    %v4405 = vadd.f32 0.0, %v4404
    %4406 = vmatmul.f32.gmra.mxu0 %v4007
    %v4407 = vpop.f32.mrf.mxu0
    %v4408 = vadd.f32 0.0, %v4407
    %4409 = vmatmul.f32.gmra.mxu0 %v4010
    %v4410 = vpop.f32.mrf.mxu0
    %v4411 = vadd.f32 0.0, %v4410
    %4412 = vmatmul.f32.gmra.mxu0 %v4013
    %v4413 = vpop.f32.mrf.mxu0
    %v4414 = vadd.f32 0.0, %v4413
    %4415 = vmatmul.f32.gmra.mxu0 %v4016
    %v4416 = vpop.f32.mrf.mxu0
    %v4417 = vadd.f32 0.0, %v4416
    %4418 = vmatmul.f32.gmra.mxu0 %v4019
    %v4419 = vpop.f32.mrf.mxu0
    %v4420 = vadd.f32 0.0, %v4419
    %4421 = vmatmul.f32.gmra.mxu0 %v4022
    %v4422 = vpop.f32.mrf.mxu0
    %v4423 = vadd.f32 0.0, %v4422
    %4424 = vmatmul.f32.gmra.mxu0 %v4025
    %v4425 = vpop.f32.mrf.mxu0
    %v4426 = vadd.f32 0.0, %v4425
    %4427 = vmatmul.f32.gmra.mxu0 %v4028
    %v4428 = vpop.f32.mrf.mxu0
    %v4429 = vadd.f32 0.0, %v4428
    %4430 = vmatmul.f32.gmra.mxu0 %v4031
    %v4431 = vpop.f32.mrf.mxu0
    %v4432 = vadd.f32 0.0, %v4431
    %4433 = vmatmul.f32.gmra.mxu0 %v4034
    %v4434 = vpop.f32.mrf.mxu0
    %v4435 = vadd.f32 0.0, %v4434
    %4436 = vmatmul.f32.gmra.mxu0 %v4037
    %v4437 = vpop.f32.mrf.mxu0
    %v4438 = vadd.f32 0.0, %v4437
    %4439 = vmatmul.f32.gmra.mxu0 %v4040
    %v4440 = vpop.f32.mrf.mxu0
    %v4441 = vadd.f32 0.0, %v4440
    %4442 = vmatmul.f32.gmra.mxu0 %v4043
    %v4443 = vpop.f32.mrf.mxu0
    %v4444 = vadd.f32 0.0, %v4443
    %4445 = vmatmul.f32.gmra.mxu0 %v4046
    %v4446 = vpop.f32.mrf.mxu0
    %v4447 = vadd.f32 0.0, %v4446
    %4448 = vmatmul.f32.gmra.mxu0 %v4049
    %v4449 = vpop.f32.mrf.mxu0
    %v4450 = vadd.f32 0.0, %v4449
    %4451 = vmatmul.f32.gmra.mxu0 %v4052
    %v4452 = vpop.f32.mrf.mxu0
    %v4453 = vadd.f32 0.0, %v4452
    %4454 = vmatmul.f32.gmra.mxu0 %v4055
    %v4455 = vpop.f32.mrf.mxu0
    %v4456 = vadd.f32 0.0, %v4455
    %4457 = vmatmul.f32.gmra.mxu0 %v4058
    %v4458 = vpop.f32.mrf.mxu0
    %v4459 = vadd.f32 0.0, %v4458
    %4460 = vmatmul.f32.gmra.mxu0 %v4061
    %v4461 = vpop.f32.mrf.mxu0
    %v4462 = vadd.f32 0.0, %v4461
    %4463 = vmatmul.f32.gmra.mxu0 %v4064
    %v4464 = vpop.f32.mrf.mxu0
    %v4465 = vadd.f32 0.0, %v4464
    %4466 = vmatmul.f32.gmra.mxu0 %v4067
    %v4467 = vpop.f32.mrf.mxu0
    %v4468 = vadd.f32 0.0, %v4467
    %4469 = vmatmul.f32.gmra.mxu0 %v4070
    %v4470 = vpop.f32.mrf.mxu0
    %v4471 = vadd.f32 0.0, %v4470
    %4472 = vmatmul.f32.gmra.mxu0 %v4073
    %v4473 = vpop.f32.mrf.mxu0
    %v4474 = vadd.f32 0.0, %v4473
    %4475 = vmatmul.f32.gmra.mxu0 %v4076
    %v4476 = vpop.f32.mrf.mxu0
    %v4477 = vadd.f32 0.0, %v4476
    %4478 = vmatmul.f32.gmra.mxu0 %v4079
    %v4479 = vpop.f32.mrf.mxu0
    %v4480 = vadd.f32 0.0, %v4479
    %4481 = vmatmul.f32.gmra.mxu0 %v4082
    %v4482 = vpop.f32.mrf.mxu0
    %v4483 = vadd.f32 0.0, %v4482
    %4484 = vmatmul.f32.gmra.mxu0 %v4085
    %v4485 = vpop.f32.mrf.mxu0
    %v4486 = vadd.f32 0.0, %v4485
    %4487 = vmatmul.f32.gmra.mxu0 %v4088
    %v4488 = vpop.f32.mrf.mxu0
    %v4489 = vadd.f32 0.0, %v4488
    %4490 = vmatmul.f32.gmra.mxu0 %v4091
    %v4491 = vpop.f32.mrf.mxu0
    %v4492 = vadd.f32 0.0, %v4491
    %4493 = vmatmul.f32.gmra.mxu0 %v4094
    %v4494 = vpop.f32.mrf.mxu0
    %v4495 = vadd.f32 0.0, %v4494
    %4496 = vmatmul.f32.gmra.mxu0 %v4097
    %v4497 = vpop.f32.mrf.mxu0
    %v4498 = vadd.f32 0.0, %v4497
    %4499 = vmatmul.f32.gmra.mxu0 %v4100
    %v4500 = vpop.f32.mrf.mxu0
    %v4501 = vadd.f32 0.0, %v4500
    %4502 = vmatmul.f32.gmra.mxu0 %v4103
    %v4503 = vpop.f32.mrf.mxu0
    %v4504 = vadd.f32 0.0, %v4503
    %4505 = vmatmul.f32.gmra.mxu0 %v4106
    %v4506 = vpop.f32.mrf.mxu0
    %v4507 = vadd.f32 0.0, %v4506
    %4508 = vmatmul.f32.gmra.mxu0 %v4109
    %v4509 = vpop.f32.mrf.mxu0
    %v4510 = vadd.f32 0.0, %v4509
    %4511 = vmatmul.f32.gmra.mxu0 %v4112
    %v4512 = vpop.f32.mrf.mxu0
    %v4513 = vadd.f32 0.0, %v4512
    %4514 = vmatmul.f32.gmra.mxu0 %v4115
    %v4515 = vpop.f32.mrf.mxu0
    %v4516 = vadd.f32 0.0, %v4515
    %4517 = vmatmul.f32.gmra.mxu0 %v4118
    %v4518 = vpop.f32.mrf.mxu0
    %v4519 = vadd.f32 0.0, %v4518
    %4520 = vmatmul.f32.gmra.mxu0 %v4121
    %v4521 = vpop.f32.mrf.mxu0
    %v4522 = vadd.f32 0.0, %v4521
    %4523 = vmatmul.f32.gmra.mxu0 %v4124
    %v4524 = vpop.f32.mrf.mxu0
    %v4525 = vadd.f32 0.0, %v4524
    %4526 = vmatmul.f32.gmra.mxu0 %v4127
    %v4527 = vpop.f32.mrf.mxu0
    %v4528 = vadd.f32 0.0, %v4527
    %4529 = vmatmul.f32.gmra.mxu0 %v4130
    %v4530 = vpop.f32.mrf.mxu0
    %v4531 = vadd.f32 0.0, %v4530
    %4532 = vmatmul.f32.gmra.mxu0 %v4133
    %v4533 = vpop.f32.mrf.mxu0
    %v4534 = vadd.f32 0.0, %v4533
    %4535 = vmatmul.f32.gmra.mxu0 %v4136
    %v4536 = vpop.f32.mrf.mxu0
    %v4537 = vadd.f32 0.0, %v4536
    %4538 = vmatmul.f32.gmra.mxu0 %v4139
    %v4539 = vpop.f32.mrf.mxu0
    %v4540 = vadd.f32 0.0, %v4539
    %4541 = vmatmul.f32.gmra.mxu0 %v4142
    %v4542 = vpop.f32.mrf.mxu0
    %v4543 = vadd.f32 0.0, %v4542
    %4544 = vmatmul.f32.gmra.mxu0 %v4145
    %v4545 = vpop.f32.mrf.mxu0
    %v4546 = vadd.f32 0.0, %v4545
    %4547 = vmatmul.f32.gmra.mxu0 %v4148
    %v4548 = vpop.f32.mrf.mxu0
    %v4549 = vadd.f32 0.0, %v4548
    %4550 = vmatmul.f32.gmra.mxu0 %v4151
    %v4551 = vpop.f32.mrf.mxu0
    %v4552 = vadd.f32 0.0, %v4551
    %4553 = vmatmul.f32.gmra.mxu0 %v4154
    %v4554 = vpop.f32.mrf.mxu0
    %v4555 = vadd.f32 0.0, %v4554
    %4556 = vmatmul.f32.gmra.mxu0 %v4157
    %v4557 = vpop.f32.mrf.mxu0
    %v4558 = vadd.f32 0.0, %v4557
    %4559 = vmatmul.f32.gmra.mxu0 %v4160
    %v4560 = vpop.f32.mrf.mxu0
    %v4561 = vadd.f32 0.0, %v4560
    %4562 = vmatmul.f32.gmra.mxu0 %v4163
    %v4563 = vpop.f32.mrf.mxu0
    %v4564 = vadd.f32 0.0, %v4563
    %4565 = vmatmul.f32.gmra.mxu0 %v4166
    %v4566 = vpop.f32.mrf.mxu0
    %v4567 = vadd.f32 0.0, %v4566
    %4568 = vmatmul.f32.gmra.mxu0 %v4169
    %v4569 = vpop.f32.mrf.mxu0
    %v4570 = vadd.f32 0.0, %v4569
    %4571 = vmatmul.f32.gmra.mxu0 %v4172
    %v4572 = vpop.f32.mrf.mxu0
    %v4573 = vadd.f32 0.0, %v4572
    %4574 = vmatmul.f32.gmra.mxu0 %v4175
    %v4575 = vpop.f32.mrf.mxu0
    %v4576 = vadd.f32 0.0, %v4575
    %4577 = vmatmul.f32.gmra.mxu0 %v4178
    %v4578 = vpop.f32.mrf.mxu0
    %v4579 = vadd.f32 0.0, %v4578
    %4580 = vmatmul.f32.gmra.mxu0 %v4181
    %v4581 = vpop.f32.mrf.mxu0
    %v4582 = vadd.f32 0.0, %v4581
    %4583 = vmatmul.f32.gmra.mxu0 %v4184
    %v4584 = vpop.f32.mrf.mxu0
    %v4585 = vadd.f32 0.0, %v4584
    %4586 = vmatmul.f32.gmra.mxu0 %v4187
    %v4587 = vpop.f32.mrf.mxu0
    %v4588 = vadd.f32 0.0, %v4587
    %4589 = vmatmul.f32.gmra.mxu0 %v4190
    %v4590 = vpop.f32.mrf.mxu0
    %v4591 = vadd.f32 0.0, %v4590
    %4592 = vmatmul.f32.gmra.mxu0 %v4193
    %v4593 = vpop.f32.mrf.mxu0
    %v4594 = vadd.f32 0.0, %v4593
    %4595 = vmatmul.f32.gmra.mxu0 %v4196
    %v4596 = vpop.f32.mrf.mxu0
    %v4597 = vadd.f32 0.0, %v4596
    %4598 = vmatmul.f32.gmra.mxu0 %v4199
    %v4599 = vpop.f32.mrf.mxu0
    %v4600 = vadd.f32 0.0, %v4599
    %4601 = vmatmul.f32.gmra.mxu0 %v4202
    %v4602 = vpop.f32.mrf.mxu0
    %v4603 = vadd.f32 0.0, %v4602
    %4604 = vmatmul.f32.gmra.mxu0 %v4205
    %v4605 = vpop.f32.mrf.mxu0
    %v4606 = vadd.f32 0.0, %v4605
    %4607 = vmatmul.f32.gmra.mxu0 %v4208
    %v4608 = vpop.f32.mrf.mxu0
    %v4609 = vadd.f32 0.0, %v4608
    %4610 = vmatmul.f32.gmra.mxu0 %v4211
    %v4611 = vpop.f32.mrf.mxu0
    %v4612 = vadd.f32 0.0, %v4611
    %4613 = vmatmul.f32.gmra.mxu0 %v4214
    %v4614 = vpop.f32.mrf.mxu0
    %v4615 = vadd.f32 0.0, %v4614
    %4616 = vmatmul.f32.gmra.mxu0 %v4217
    %v4617 = vpop.f32.mrf.mxu0
    %v4618 = vadd.f32 0.0, %v4617
    %4619 = vmatmul.f32.gmra.mxu0 %v4220
    %v4620 = vpop.f32.mrf.mxu0
    %v4621 = vadd.f32 0.0, %v4620
    %4622 = vmatmul.f32.gmra.mxu0 %v4223
    %v4623 = vpop.f32.mrf.mxu0
    %v4624 = vadd.f32 0.0, %v4623
    %4625 = vmatmul.f32.gmra.mxu0 %v4226
    %v4626 = vpop.f32.mrf.mxu0
    %v4627 = vadd.f32 0.0, %v4626
    %4628 = vmatmul.f32.gmra.mxu0 %v4229
    %v4629 = vpop.f32.mrf.mxu0
    %v4630 = vadd.f32 0.0, %v4629
    %4631 = vmatmul.f32.gmra.mxu0 %v4232
    %v4632 = vpop.f32.mrf.mxu0
    %v4633 = vadd.f32 0.0, %v4632
    %4634 = vmatmul.f32.gmra.mxu0 %v4235
    %v4635 = vpop.f32.mrf.mxu0
    %v4636 = vadd.f32 0.0, %v4635
    %4637 = vmatmul.f32.gmra.mxu0 %v4238
    %v4638 = vpop.f32.mrf.mxu0
    %v4639 = vadd.f32 0.0, %v4638
    %4640 = vmatmul.f32.gmra.mxu0 %v4241
    %v4641 = vpop.f32.mrf.mxu0
    %v4642 = vadd.f32 0.0, %v4641
    %4643 = vmatmul.f32.gmra.mxu0 %v4244
    %v4644 = vpop.f32.mrf.mxu0
    %v4645 = vadd.f32 0.0, %v4644
    %4646 = vmatmul.f32.gmra.mxu0 %v4247
    %v4647 = vpop.f32.mrf.mxu0
    %v4648 = vadd.f32 0.0, %v4647
    %4649 = vmatmul.f32.gmra.mxu0 %v4250
    %v4650 = vpop.f32.mrf.mxu0
    %v4651 = vadd.f32 0.0, %v4650
    %4652 = vmatmul.f32.gmra.mxu0 %v4253
    %v4653 = vpop.f32.mrf.mxu0
    %v4654 = vadd.f32 0.0, %v4653
    %4655 = vmatmul.f32.gmra.mxu0 %v4256
    %v4656 = vpop.f32.mrf.mxu0
    %v4657 = vadd.f32 0.0, %v4656
    %4658 = vmatmul.f32.gmra.mxu0 %v4259
    %v4659 = vpop.f32.mrf.mxu0
    %v4660 = vadd.f32 0.0, %v4659
    %4661 = vmatmul.f32.gmra.mxu0 %v4262
    %v4662 = vpop.f32.mrf.mxu0
    %v4663 = vadd.f32 0.0, %v4662
    %4664 = vdwg.mxu0
    %v4665 = vadd.f32 %v3131, %v4282
    %v4666 = vadd.f32 %v3132, %v4285
    %v4667 = vadd.f32 %v3133, %v4288
    %v4668 = vadd.f32 %v3134, %v4291
    %v4669 = vadd.f32 %v3135, %v4294
    %v4670 = vadd.f32 %v3136, %v4297
    %v4671 = vadd.f32 %v3137, %v4300
    %v4672 = vadd.f32 %v3138, %v4303
    %v4673 = vadd.f32 %v3139, %v4306
    %v4674 = vadd.f32 %v3140, %v4309
    %v4675 = vadd.f32 %v3141, %v4312
    %v4676 = vadd.f32 %v3142, %v4315
    %v4677 = vadd.f32 %v3143, %v4318
    %v4678 = vadd.f32 %v3144, %v4321
    %v4679 = vadd.f32 %v3145, %v4324
    %v4680 = vadd.f32 %v3146, %v4327
    %v4681 = vadd.f32 %v3147, %v4330
    %v4682 = vadd.f32 %v3148, %v4333
    %v4683 = vadd.f32 %v3149, %v4336
    %v4684 = vadd.f32 %v3150, %v4339
    %v4685 = vadd.f32 %v3151, %v4342
    %v4686 = vadd.f32 %v3152, %v4345
    %v4687 = vadd.f32 %v3153, %v4348
    %v4688 = vadd.f32 %v3154, %v4351
    %v4689 = vadd.f32 %v3155, %v4354
    %v4690 = vadd.f32 %v3156, %v4357
    %v4691 = vadd.f32 %v3157, %v4360
    %v4692 = vadd.f32 %v3158, %v4363
    %v4693 = vadd.f32 %v3159, %v4366
    %v4694 = vadd.f32 %v3160, %v4369
    %v4695 = vadd.f32 %v3161, %v4372
    %v4696 = vadd.f32 %v3162, %v4375
    %v4697 = vadd.f32 %v3163, %v4378
    %v4698 = vadd.f32 %v3164, %v4381
    %v4699 = vadd.f32 %v3165, %v4384
    %v4700 = vadd.f32 %v3166, %v4387
    %v4701 = vadd.f32 %v3167, %v4390
    %v4702 = vadd.f32 %v3168, %v4393
    %v4703 = vadd.f32 %v3169, %v4396
    %v4704 = vadd.f32 %v3170, %v4399
    %v4705 = vadd.f32 %v3171, %v4402
    %v4706 = vadd.f32 %v3172, %v4405
    %v4707 = vadd.f32 %v3173, %v4408
    %v4708 = vadd.f32 %v3174, %v4411
    %v4709 = vadd.f32 %v3175, %v4414
    %v4710 = vadd.f32 %v3176, %v4417
    %v4711 = vadd.f32 %v3177, %v4420
    %v4712 = vadd.f32 %v3178, %v4423
    %v4713 = vadd.f32 %v3179, %v4426
    %v4714 = vadd.f32 %v3180, %v4429
    %v4715 = vadd.f32 %v3181, %v4432
    %v4716 = vadd.f32 %v3182, %v4435
    %v4717 = vadd.f32 %v3183, %v4438
    %v4718 = vadd.f32 %v3184, %v4441
    %v4719 = vadd.f32 %v3185, %v4444
    %v4720 = vadd.f32 %v3186, %v4447
    %v4721 = vadd.f32 %v3187, %v4450
    %v4722 = vadd.f32 %v3188, %v4453
    %v4723 = vadd.f32 %v3189, %v4456
    %v4724 = vadd.f32 %v3190, %v4459
    %v4725 = vadd.f32 %v3191, %v4462
    %v4726 = vadd.f32 %v3192, %v4465
    %v4727 = vadd.f32 %v3193, %v4468
    %v4728 = vadd.f32 %v3194, %v4471
    %v4729 = vadd.f32 %v3195, %v4474
    %v4730 = vadd.f32 %v3196, %v4477
    %v4731 = vadd.f32 %v3197, %v4480
    %v4732 = vadd.f32 %v3198, %v4483
    %v4733 = vadd.f32 %v3199, %v4486
    %v4734 = vadd.f32 %v3200, %v4489
    %v4735 = vadd.f32 %v3201, %v4492
    %v4736 = vadd.f32 %v3202, %v4495
    %v4737 = vadd.f32 %v3203, %v4498
    %v4738 = vadd.f32 %v3204, %v4501
    %v4739 = vadd.f32 %v3205, %v4504
    %v4740 = vadd.f32 %v3206, %v4507
    %v4741 = vadd.f32 %v3207, %v4510
    %v4742 = vadd.f32 %v3208, %v4513
    %v4743 = vadd.f32 %v3209, %v4516
    %v4744 = vadd.f32 %v3210, %v4519
    %v4745 = vadd.f32 %v3211, %v4522
    %v4746 = vadd.f32 %v3212, %v4525
    %v4747 = vadd.f32 %v3213, %v4528
    %v4748 = vadd.f32 %v3214, %v4531
    %v4749 = vadd.f32 %v3215, %v4534
    %v4750 = vadd.f32 %v3216, %v4537
    %v4751 = vadd.f32 %v3217, %v4540
    %v4752 = vadd.f32 %v3218, %v4543
    %v4753 = vadd.f32 %v3219, %v4546
    %v4754 = vadd.f32 %v3220, %v4549
    %v4755 = vadd.f32 %v3221, %v4552
    %v4756 = vadd.f32 %v3222, %v4555
    %v4757 = vadd.f32 %v3223, %v4558
    %v4758 = vadd.f32 %v3224, %v4561
    %v4759 = vadd.f32 %v3225, %v4564
    %v4760 = vadd.f32 %v3226, %v4567
    %v4761 = vadd.f32 %v3227, %v4570
    %v4762 = vadd.f32 %v3228, %v4573
    %v4763 = vadd.f32 %v3229, %v4576
    %v4764 = vadd.f32 %v3230, %v4579
    %v4765 = vadd.f32 %v3231, %v4582
    %v4766 = vadd.f32 %v3232, %v4585
    %v4767 = vadd.f32 %v3233, %v4588
    %v4768 = vadd.f32 %v3234, %v4591
    %v4769 = vadd.f32 %v3235, %v4594
    %v4770 = vadd.f32 %v3236, %v4597
    %v4771 = vadd.f32 %v3237, %v4600
    %v4772 = vadd.f32 %v3238, %v4603
    %v4773 = vadd.f32 %v3239, %v4606
    %v4774 = vadd.f32 %v3240, %v4609
    %v4775 = vadd.f32 %v3241, %v4612
    %v4776 = vadd.f32 %v3242, %v4615
    %v4777 = vadd.f32 %v3243, %v4618
    %v4778 = vadd.f32 %v3244, %v4621
    %v4779 = vadd.f32 %v3245, %v4624
    %v4780 = vadd.f32 %v3246, %v4627
    %v4781 = vadd.f32 %v3247, %v4630
    %v4782 = vadd.f32 %v3248, %v4633
    %v4783 = vadd.f32 %v3249, %v4636
    %v4784 = vadd.f32 %v3250, %v4639
    %v4785 = vadd.f32 %v3251, %v4642
    %v4786 = vadd.f32 %v3252, %v4645
    %v4787 = vadd.f32 %v3253, %v4648
    %v4788 = vadd.f32 %v3254, %v4651
    %v4789 = vadd.f32 %v3255, %v4654
    %v4790 = vadd.f32 %v3256, %v4657
    %v4791 = vadd.f32 %v3257, %v4660
    %v4792 = vadd.f32 %v3258, %v4663
    %v4793 = vld [vmem:[#allocation2] sm:$0xff]
    %v4794 = vld [vmem:[#allocation2 + $0x8] sm:$0xff]
    %v4795 = vld [vmem:[#allocation2 + $0x10] sm:$0xff]
    %v4796 = vld [vmem:[#allocation2 + $0x18] sm:$0xff]
    %v4797 = vld [vmem:[#allocation2 + $0x20] sm:$0xff]
    %v4798 = vld [vmem:[#allocation2 + $0x28] sm:$0xff]
    %v4799 = vld [vmem:[#allocation2 + $0x30] sm:$0xff]
    %v4800 = vld [vmem:[#allocation2 + $0x38] sm:$0xff]
    %v4801 = vld [vmem:[#allocation2 + $0x40] sm:$0xff]
    %v4802 = vld [vmem:[#allocation2 + $0x48] sm:$0xff]
    %v4803 = vld [vmem:[#allocation2 + $0x50] sm:$0xff]
    %v4804 = vld [vmem:[#allocation2 + $0x58] sm:$0xff]
    %v4805 = vld [vmem:[#allocation2 + $0x60] sm:$0xff]
    %v4806 = vld [vmem:[#allocation2 + $0x68] sm:$0xff]
    %v4807 = vld [vmem:[#allocation2 + $0x70] sm:$0xff]
    %v4808 = vld [vmem:[#allocation2 + $0x78] sm:$0xff]
    %v4809 = vld [vmem:[#allocation2 + $0x80] sm:$0xff]
    %v4810 = vld [vmem:[#allocation2 + $0x88] sm:$0xff]
    %v4811 = vld [vmem:[#allocation2 + $0x90] sm:$0xff]
    %v4812 = vld [vmem:[#allocation2 + $0x98] sm:$0xff]
    %v4813 = vld [vmem:[#allocation2 + $0xa0] sm:$0xff]
    %v4814 = vld [vmem:[#allocation2 + $0xa8] sm:$0xff]
    %v4815 = vld [vmem:[#allocation2 + $0xb0] sm:$0xff]
    %v4816 = vld [vmem:[#allocation2 + $0xb8] sm:$0xff]
    %v4817 = vld [vmem:[#allocation2 + $0xc0] sm:$0xff]
    %v4818 = vld [vmem:[#allocation2 + $0xc8] sm:$0xff]
    %v4819 = vld [vmem:[#allocation2 + $0xd0] sm:$0xff]
    %v4820 = vld [vmem:[#allocation2 + $0xd8] sm:$0xff]
    %v4821 = vld [vmem:[#allocation2 + $0xe0] sm:$0xff]
    %v4822 = vld [vmem:[#allocation2 + $0xe8] sm:$0xff]
    %v4823 = vld [vmem:[#allocation2 + $0xf0] sm:$0xff]
    %v4824 = vld [vmem:[#allocation2 + $0xf8] sm:$0xff]
    %v4825 = vld [vmem:[#allocation2 + $0x100] sm:$0xff]
    %v4826 = vld [vmem:[#allocation2 + $0x108] sm:$0xff]
    %v4827 = vld [vmem:[#allocation2 + $0x110] sm:$0xff]
    %v4828 = vld [vmem:[#allocation2 + $0x118] sm:$0xff]
    %v4829 = vld [vmem:[#allocation2 + $0x120] sm:$0xff]
    %v4830 = vld [vmem:[#allocation2 + $0x128] sm:$0xff]
    %v4831 = vld [vmem:[#allocation2 + $0x130] sm:$0xff]
    %v4832 = vld [vmem:[#allocation2 + $0x138] sm:$0xff]
    %v4833 = vld [vmem:[#allocation2 + $0x140] sm:$0xff]
    %v4834 = vld [vmem:[#allocation2 + $0x148] sm:$0xff]
    %v4835 = vld [vmem:[#allocation2 + $0x150] sm:$0xff]
    %v4836 = vld [vmem:[#allocation2 + $0x158] sm:$0xff]
    %v4837 = vld [vmem:[#allocation2 + $0x160] sm:$0xff]
    %v4838 = vld [vmem:[#allocation2 + $0x168] sm:$0xff]
    %v4839 = vld [vmem:[#allocation2 + $0x170] sm:$0xff]
    %v4840 = vld [vmem:[#allocation2 + $0x178] sm:$0xff]
    %v4841 = vld [vmem:[#allocation2 + $0x180] sm:$0xff]
    %v4842 = vld [vmem:[#allocation2 + $0x188] sm:$0xff]
    %v4843 = vld [vmem:[#allocation2 + $0x190] sm:$0xff]
    %v4844 = vld [vmem:[#allocation2 + $0x198] sm:$0xff]
    %v4845 = vld [vmem:[#allocation2 + $0x1a0] sm:$0xff]
    %v4846 = vld [vmem:[#allocation2 + $0x1a8] sm:$0xff]
    %v4847 = vld [vmem:[#allocation2 + $0x1b0] sm:$0xff]
    %v4848 = vld [vmem:[#allocation2 + $0x1b8] sm:$0xff]
    %v4849 = vld [vmem:[#allocation2 + $0x1c0] sm:$0xff]
    %v4850 = vld [vmem:[#allocation2 + $0x1c8] sm:$0xff]
    %v4851 = vld [vmem:[#allocation2 + $0x1d0] sm:$0xff]
    %v4852 = vld [vmem:[#allocation2 + $0x1d8] sm:$0xff]
    %v4853 = vld [vmem:[#allocation2 + $0x1e0] sm:$0xff]
    %v4854 = vld [vmem:[#allocation2 + $0x1e8] sm:$0xff]
    %v4855 = vld [vmem:[#allocation2 + $0x1f0] sm:$0xff]
    %v4856 = vld [vmem:[#allocation2 + $0x1f8] sm:$0xff]
    %v4857 = vld [vmem:[%s11] sm:$0xff]
    %v4858 = vld [vmem:[%s11 + $0x8] sm:$0xff]
    %v4859 = vld [vmem:[%s11 + $0x10] sm:$0xff]
    %v4860 = vld [vmem:[%s11 + $0x18] sm:$0xff]
    %v4861 = vld [vmem:[%s11 + $0x20] sm:$0xff]
    %v4862 = vld [vmem:[%s11 + $0x28] sm:$0xff]
    %v4863 = vld [vmem:[%s11 + $0x30] sm:$0xff]
    %v4864 = vld [vmem:[%s11 + $0x38] sm:$0xff]
    %v4865 = vld [vmem:[%s11 + $0x40] sm:$0xff]
    %v4866 = vld [vmem:[%s11 + $0x48] sm:$0xff]
    %v4867 = vld [vmem:[%s11 + $0x50] sm:$0xff]
    %v4868 = vld [vmem:[%s11 + $0x58] sm:$0xff]
    %v4869 = vld [vmem:[%s11 + $0x60] sm:$0xff]
    %v4870 = vld [vmem:[%s11 + $0x68] sm:$0xff]
    %v4871 = vld [vmem:[%s11 + $0x70] sm:$0xff]
    %v4872 = vld [vmem:[%s11 + $0x78] sm:$0xff]
    %v4873 = vld [vmem:[%s12] sm:$0xff]
    %v4874 = vld [vmem:[%s12 + $0x8] sm:$0xff]
    %v4875 = vld [vmem:[%s12 + $0x10] sm:$0xff]
    %v4876 = vld [vmem:[%s12 + $0x18] sm:$0xff]
    %v4877 = vld [vmem:[%s12 + $0x20] sm:$0xff]
    %v4878 = vld [vmem:[%s12 + $0x28] sm:$0xff]
    %v4879 = vld [vmem:[%s12 + $0x30] sm:$0xff]
    %v4880 = vld [vmem:[%s12 + $0x38] sm:$0xff]
    %vm4881 = vcmask 523264
    %v4883 = vsel %vm4881, %v4857, 0
    %v4886 = vsel %vm4881, %v4858, 0
    %v4889 = vsel %vm4881, %v4859, 0
    %v4892 = vsel %vm4881, %v4860, 0
    %v4895 = vsel %vm4881, %v4861, 0
    %v4898 = vsel %vm4881, %v4862, 0
    %v4901 = vsel %vm4881, %v4863, 0
    %v4904 = vsel %vm4881, %v4864, 0
    %v4907 = vsel %vm4881, %v4865, 0
    %v4910 = vsel %vm4881, %v4866, 0
    %v4913 = vsel %vm4881, %v4867, 0
    %v4916 = vsel %vm4881, %v4868, 0
    %v4919 = vsel %vm4881, %v4869, 0
    %v4922 = vsel %vm4881, %v4870, 0
    %v4925 = vsel %vm4881, %v4871, 0
    %v4928 = vsel %vm4881, %v4872, 0
    %4930 = vmatpush.msra.mxu0 0.0
    %4931 = vmatpush.msra.mxu0 0.0
    %4932 = vmatpush.msra.mxu0 0.0
    %4933 = vmatpush.msra.mxu0 0.0
    %4934 = vmatpush.msra.mxu0 0.0
    %4935 = vmatpush.msra.mxu0 0.0
    %4936 = vmatpush.msra.mxu0 0.0
    %4937 = vmatpush.msra.mxu0 0.0
    %4938 = vmatpush.msra.mxu0 %v4800
    %4939 = vmatpush.msra.mxu0 %v4799
    %4940 = vmatpush.msra.mxu0 %v4798
    %4941 = vmatpush.msra.mxu0 %v4797
    %4942 = vmatpush.msra.mxu0 %v4796
    %4943 = vmatpush.msra.mxu0 %v4795
    %4944 = vmatpush.msra.mxu0 %v4794
    %4945 = vmatpush.msra.mxu0 %v4793
    %4946 = vmatmul.f32.gmra.mxu0 %v4883
    %v4947 = vpop.f32.mrf.mxu0
    %v4948 = vadd.f32 0.0, %v4947
    %4949 = vmatmul.f32.gmra.mxu0 %v4886
    %v4950 = vpop.f32.mrf.mxu0
    %v4951 = vadd.f32 0.0, %v4950
    %4952 = vmatmul.f32.gmra.mxu0 %v4889
    %v4953 = vpop.f32.mrf.mxu0
    %v4954 = vadd.f32 0.0, %v4953
    %4955 = vmatmul.f32.gmra.mxu0 %v4892
    %v4956 = vpop.f32.mrf.mxu0
    %v4957 = vadd.f32 0.0, %v4956
    %4958 = vmatmul.f32.gmra.mxu0 %v4895
    %v4959 = vpop.f32.mrf.mxu0
    %v4960 = vadd.f32 0.0, %v4959
    %4961 = vmatmul.f32.gmra.mxu0 %v4898
    %v4962 = vpop.f32.mrf.mxu0
    %v4963 = vadd.f32 0.0, %v4962
    %4964 = vmatmul.f32.gmra.mxu0 %v4901
    %v4965 = vpop.f32.mrf.mxu0
    %v4966 = vadd.f32 0.0, %v4965
    %4967 = vmatmul.f32.gmra.mxu0 %v4904
    %v4968 = vpop.f32.mrf.mxu0
    %v4969 = vadd.f32 0.0, %v4968
    %4970 = vmatmul.f32.gmra.mxu0 %v4907
    %v4971 = vpop.f32.mrf.mxu0
    %v4972 = vadd.f32 0.0, %v4971
    %4973 = vmatmul.f32.gmra.mxu0 %v4910
    %v4974 = vpop.f32.mrf.mxu0
    %v4975 = vadd.f32 0.0, %v4974
    %4976 = vmatmul.f32.gmra.mxu0 %v4913
    %v4977 = vpop.f32.mrf.mxu0
    %v4978 = vadd.f32 0.0, %v4977
    %4979 = vmatmul.f32.gmra.mxu0 %v4916
    %v4980 = vpop.f32.mrf.mxu0
    %v4981 = vadd.f32 0.0, %v4980
    %4982 = vmatmul.f32.gmra.mxu0 %v4919
    %v4983 = vpop.f32.mrf.mxu0
    %v4984 = vadd.f32 0.0, %v4983
    %4985 = vmatmul.f32.gmra.mxu0 %v4922
    %v4986 = vpop.f32.mrf.mxu0
    %v4987 = vadd.f32 0.0, %v4986
    %4988 = vmatmul.f32.gmra.mxu0 %v4925
    %v4989 = vpop.f32.mrf.mxu0
    %v4990 = vadd.f32 0.0, %v4989
    %4991 = vmatmul.f32.gmra.mxu0 %v4928
    %v4992 = vpop.f32.mrf.mxu0
    %v4993 = vadd.f32 0.0, %v4992
    %4994 = vdwg.mxu0
    %4995 = vmatpush.msra.mxu0 0.0
    %4996 = vmatpush.msra.mxu0 0.0
    %4997 = vmatpush.msra.mxu0 0.0
    %4998 = vmatpush.msra.mxu0 0.0
    %4999 = vmatpush.msra.mxu0 0.0
    %5000 = vmatpush.msra.mxu0 0.0
    %5001 = vmatpush.msra.mxu0 0.0
    %5002 = vmatpush.msra.mxu0 0.0
    %5003 = vmatpush.msra.mxu0 %v4808
    %5004 = vmatpush.msra.mxu0 %v4807
    %5005 = vmatpush.msra.mxu0 %v4806
    %5006 = vmatpush.msra.mxu0 %v4805
    %5007 = vmatpush.msra.mxu0 %v4804
    %5008 = vmatpush.msra.mxu0 %v4803
    %5009 = vmatpush.msra.mxu0 %v4802
    %5010 = vmatpush.msra.mxu0 %v4801
    %5011 = vmatmul.f32.gmra.mxu0 %v4883
    %v5012 = vpop.f32.mrf.mxu0
    %v5013 = vadd.f32 0.0, %v5012
    %5014 = vmatmul.f32.gmra.mxu0 %v4886
    %v5015 = vpop.f32.mrf.mxu0
    %v5016 = vadd.f32 0.0, %v5015
    %5017 = vmatmul.f32.gmra.mxu0 %v4889
    %v5018 = vpop.f32.mrf.mxu0
    %v5019 = vadd.f32 0.0, %v5018
    %5020 = vmatmul.f32.gmra.mxu0 %v4892
    %v5021 = vpop.f32.mrf.mxu0
    %v5022 = vadd.f32 0.0, %v5021
    %5023 = vmatmul.f32.gmra.mxu0 %v4895
    %v5024 = vpop.f32.mrf.mxu0
    %v5025 = vadd.f32 0.0, %v5024
    %5026 = vmatmul.f32.gmra.mxu0 %v4898
    %v5027 = vpop.f32.mrf.mxu0
    %v5028 = vadd.f32 0.0, %v5027
    %5029 = vmatmul.f32.gmra.mxu0 %v4901
    %v5030 = vpop.f32.mrf.mxu0
    %v5031 = vadd.f32 0.0, %v5030
    %5032 = vmatmul.f32.gmra.mxu0 %v4904
    %v5033 = vpop.f32.mrf.mxu0
    %v5034 = vadd.f32 0.0, %v5033
    %5035 = vmatmul.f32.gmra.mxu0 %v4907
    %v5036 = vpop.f32.mrf.mxu0
    %v5037 = vadd.f32 0.0, %v5036
    %5038 = vmatmul.f32.gmra.mxu0 %v4910
    %v5039 = vpop.f32.mrf.mxu0
    %v5040 = vadd.f32 0.0, %v5039
    %5041 = vmatmul.f32.gmra.mxu0 %v4913
    %v5042 = vpop.f32.mrf.mxu0
    %v5043 = vadd.f32 0.0, %v5042
    %5044 = vmatmul.f32.gmra.mxu0 %v4916
    %v5045 = vpop.f32.mrf.mxu0
    %v5046 = vadd.f32 0.0, %v5045
    %5047 = vmatmul.f32.gmra.mxu0 %v4919
    %v5048 = vpop.f32.mrf.mxu0
    %v5049 = vadd.f32 0.0, %v5048
    %5050 = vmatmul.f32.gmra.mxu0 %v4922
    %v5051 = vpop.f32.mrf.mxu0
    %v5052 = vadd.f32 0.0, %v5051
    %5053 = vmatmul.f32.gmra.mxu0 %v4925
    %v5054 = vpop.f32.mrf.mxu0
    %v5055 = vadd.f32 0.0, %v5054
    %5056 = vmatmul.f32.gmra.mxu0 %v4928
    %v5057 = vpop.f32.mrf.mxu0
    %v5058 = vadd.f32 0.0, %v5057
    %5059 = vdwg.mxu0
    %5060 = vmatpush.msra.mxu0 0.0
    %5061 = vmatpush.msra.mxu0 0.0
    %5062 = vmatpush.msra.mxu0 0.0
    %5063 = vmatpush.msra.mxu0 0.0
    %5064 = vmatpush.msra.mxu0 0.0
    %5065 = vmatpush.msra.mxu0 0.0
    %5066 = vmatpush.msra.mxu0 0.0
    %5067 = vmatpush.msra.mxu0 0.0
    %5068 = vmatpush.msra.mxu0 %v4816
    %5069 = vmatpush.msra.mxu0 %v4815
    %5070 = vmatpush.msra.mxu0 %v4814
    %5071 = vmatpush.msra.mxu0 %v4813
    %5072 = vmatpush.msra.mxu0 %v4812
    %5073 = vmatpush.msra.mxu0 %v4811
    %5074 = vmatpush.msra.mxu0 %v4810
    %5075 = vmatpush.msra.mxu0 %v4809
    %5076 = vmatmul.f32.gmra.mxu0 %v4883
    %v5077 = vpop.f32.mrf.mxu0
    %v5078 = vadd.f32 0.0, %v5077
    %5079 = vmatmul.f32.gmra.mxu0 %v4886
    %v5080 = vpop.f32.mrf.mxu0
    %v5081 = vadd.f32 0.0, %v5080
    %5082 = vmatmul.f32.gmra.mxu0 %v4889
    %v5083 = vpop.f32.mrf.mxu0
    %v5084 = vadd.f32 0.0, %v5083
    %5085 = vmatmul.f32.gmra.mxu0 %v4892
    %v5086 = vpop.f32.mrf.mxu0
    %v5087 = vadd.f32 0.0, %v5086
    %5088 = vmatmul.f32.gmra.mxu0 %v4895
    %v5089 = vpop.f32.mrf.mxu0
    %v5090 = vadd.f32 0.0, %v5089
    %5091 = vmatmul.f32.gmra.mxu0 %v4898
    %v5092 = vpop.f32.mrf.mxu0
    %v5093 = vadd.f32 0.0, %v5092
    %5094 = vmatmul.f32.gmra.mxu0 %v4901
    %v5095 = vpop.f32.mrf.mxu0
    %v5096 = vadd.f32 0.0, %v5095
    %5097 = vmatmul.f32.gmra.mxu0 %v4904
    %v5098 = vpop.f32.mrf.mxu0
    %v5099 = vadd.f32 0.0, %v5098
    %5100 = vmatmul.f32.gmra.mxu0 %v4907
    %v5101 = vpop.f32.mrf.mxu0
    %v5102 = vadd.f32 0.0, %v5101
    %5103 = vmatmul.f32.gmra.mxu0 %v4910
    %v5104 = vpop.f32.mrf.mxu0
    %v5105 = vadd.f32 0.0, %v5104
    %5106 = vmatmul.f32.gmra.mxu0 %v4913
    %v5107 = vpop.f32.mrf.mxu0
    %v5108 = vadd.f32 0.0, %v5107
    %5109 = vmatmul.f32.gmra.mxu0 %v4916
    %v5110 = vpop.f32.mrf.mxu0
    %v5111 = vadd.f32 0.0, %v5110
    %5112 = vmatmul.f32.gmra.mxu0 %v4919
    %v5113 = vpop.f32.mrf.mxu0
    %v5114 = vadd.f32 0.0, %v5113
    %5115 = vmatmul.f32.gmra.mxu0 %v4922
    %v5116 = vpop.f32.mrf.mxu0
    %v5117 = vadd.f32 0.0, %v5116
    %5118 = vmatmul.f32.gmra.mxu0 %v4925
    %v5119 = vpop.f32.mrf.mxu0
    %v5120 = vadd.f32 0.0, %v5119
    %5121 = vmatmul.f32.gmra.mxu0 %v4928
    %v5122 = vpop.f32.mrf.mxu0
    %v5123 = vadd.f32 0.0, %v5122
    %5124 = vdwg.mxu0
    %5125 = vmatpush.msra.mxu0 0.0
    %5126 = vmatpush.msra.mxu0 0.0
    %5127 = vmatpush.msra.mxu0 0.0
    %5128 = vmatpush.msra.mxu0 0.0
    %5129 = vmatpush.msra.mxu0 0.0
    %5130 = vmatpush.msra.mxu0 0.0
    %5131 = vmatpush.msra.mxu0 0.0
    %5132 = vmatpush.msra.mxu0 0.0
    %5133 = vmatpush.msra.mxu0 %v4824
    %5134 = vmatpush.msra.mxu0 %v4823
    %5135 = vmatpush.msra.mxu0 %v4822
    %5136 = vmatpush.msra.mxu0 %v4821
    %5137 = vmatpush.msra.mxu0 %v4820
    %5138 = vmatpush.msra.mxu0 %v4819
    %5139 = vmatpush.msra.mxu0 %v4818
    %5140 = vmatpush.msra.mxu0 %v4817
    %5141 = vmatmul.f32.gmra.mxu0 %v4883
    %v5142 = vpop.f32.mrf.mxu0
    %v5143 = vadd.f32 0.0, %v5142
    %5144 = vmatmul.f32.gmra.mxu0 %v4886
    %v5145 = vpop.f32.mrf.mxu0
    %v5146 = vadd.f32 0.0, %v5145
    %5147 = vmatmul.f32.gmra.mxu0 %v4889
    %v5148 = vpop.f32.mrf.mxu0
    %v5149 = vadd.f32 0.0, %v5148
    %5150 = vmatmul.f32.gmra.mxu0 %v4892
    %v5151 = vpop.f32.mrf.mxu0
    %v5152 = vadd.f32 0.0, %v5151
    %5153 = vmatmul.f32.gmra.mxu0 %v4895
    %v5154 = vpop.f32.mrf.mxu0
    %v5155 = vadd.f32 0.0, %v5154
    %5156 = vmatmul.f32.gmra.mxu0 %v4898
    %v5157 = vpop.f32.mrf.mxu0
    %v5158 = vadd.f32 0.0, %v5157
    %5159 = vmatmul.f32.gmra.mxu0 %v4901
    %v5160 = vpop.f32.mrf.mxu0
    %v5161 = vadd.f32 0.0, %v5160
    %5162 = vmatmul.f32.gmra.mxu0 %v4904
    %v5163 = vpop.f32.mrf.mxu0
    %v5164 = vadd.f32 0.0, %v5163
    %5165 = vmatmul.f32.gmra.mxu0 %v4907
    %v5166 = vpop.f32.mrf.mxu0
    %v5167 = vadd.f32 0.0, %v5166
    %5168 = vmatmul.f32.gmra.mxu0 %v4910
    %v5169 = vpop.f32.mrf.mxu0
    %v5170 = vadd.f32 0.0, %v5169
    %5171 = vmatmul.f32.gmra.mxu0 %v4913
    %v5172 = vpop.f32.mrf.mxu0
    %v5173 = vadd.f32 0.0, %v5172
    %5174 = vmatmul.f32.gmra.mxu0 %v4916
    %v5175 = vpop.f32.mrf.mxu0
    %v5176 = vadd.f32 0.0, %v5175
    %5177 = vmatmul.f32.gmra.mxu0 %v4919
    %v5178 = vpop.f32.mrf.mxu0
    %v5179 = vadd.f32 0.0, %v5178
    %5180 = vmatmul.f32.gmra.mxu0 %v4922
    %v5181 = vpop.f32.mrf.mxu0
    %v5182 = vadd.f32 0.0, %v5181
    %5183 = vmatmul.f32.gmra.mxu0 %v4925
    %v5184 = vpop.f32.mrf.mxu0
    %v5185 = vadd.f32 0.0, %v5184
    %5186 = vmatmul.f32.gmra.mxu0 %v4928
    %v5187 = vpop.f32.mrf.mxu0
    %v5188 = vadd.f32 0.0, %v5187
    %5189 = vdwg.mxu0
    %5190 = vmatpush.msra.mxu0 0.0
    %5191 = vmatpush.msra.mxu0 0.0
    %5192 = vmatpush.msra.mxu0 0.0
    %5193 = vmatpush.msra.mxu0 0.0
    %5194 = vmatpush.msra.mxu0 0.0
    %5195 = vmatpush.msra.mxu0 0.0
    %5196 = vmatpush.msra.mxu0 0.0
    %5197 = vmatpush.msra.mxu0 0.0
    %5198 = vmatpush.msra.mxu0 %v4832
    %5199 = vmatpush.msra.mxu0 %v4831
    %5200 = vmatpush.msra.mxu0 %v4830
    %5201 = vmatpush.msra.mxu0 %v4829
    %5202 = vmatpush.msra.mxu0 %v4828
    %5203 = vmatpush.msra.mxu0 %v4827
    %5204 = vmatpush.msra.mxu0 %v4826
    %5205 = vmatpush.msra.mxu0 %v4825
    %5206 = vmatmul.f32.gmra.mxu0 %v4883
    %v5207 = vpop.f32.mrf.mxu0
    %v5208 = vadd.f32 0.0, %v5207
    %5209 = vmatmul.f32.gmra.mxu0 %v4886
    %v5210 = vpop.f32.mrf.mxu0
    %v5211 = vadd.f32 0.0, %v5210
    %5212 = vmatmul.f32.gmra.mxu0 %v4889
    %v5213 = vpop.f32.mrf.mxu0
    %v5214 = vadd.f32 0.0, %v5213
    %5215 = vmatmul.f32.gmra.mxu0 %v4892
    %v5216 = vpop.f32.mrf.mxu0
    %v5217 = vadd.f32 0.0, %v5216
    %5218 = vmatmul.f32.gmra.mxu0 %v4895
    %v5219 = vpop.f32.mrf.mxu0
    %v5220 = vadd.f32 0.0, %v5219
    %5221 = vmatmul.f32.gmra.mxu0 %v4898
    %v5222 = vpop.f32.mrf.mxu0
    %v5223 = vadd.f32 0.0, %v5222
    %5224 = vmatmul.f32.gmra.mxu0 %v4901
    %v5225 = vpop.f32.mrf.mxu0
    %v5226 = vadd.f32 0.0, %v5225
    %5227 = vmatmul.f32.gmra.mxu0 %v4904
    %v5228 = vpop.f32.mrf.mxu0
    %v5229 = vadd.f32 0.0, %v5228
    %5230 = vmatmul.f32.gmra.mxu0 %v4907
    %v5231 = vpop.f32.mrf.mxu0
    %v5232 = vadd.f32 0.0, %v5231
    %5233 = vmatmul.f32.gmra.mxu0 %v4910
    %v5234 = vpop.f32.mrf.mxu0
    %v5235 = vadd.f32 0.0, %v5234
    %5236 = vmatmul.f32.gmra.mxu0 %v4913
    %v5237 = vpop.f32.mrf.mxu0
    %v5238 = vadd.f32 0.0, %v5237
    %5239 = vmatmul.f32.gmra.mxu0 %v4916
    %v5240 = vpop.f32.mrf.mxu0
    %v5241 = vadd.f32 0.0, %v5240
    %5242 = vmatmul.f32.gmra.mxu0 %v4919
    %v5243 = vpop.f32.mrf.mxu0
    %v5244 = vadd.f32 0.0, %v5243
    %5245 = vmatmul.f32.gmra.mxu0 %v4922
    %v5246 = vpop.f32.mrf.mxu0
    %v5247 = vadd.f32 0.0, %v5246
    %5248 = vmatmul.f32.gmra.mxu0 %v4925
    %v5249 = vpop.f32.mrf.mxu0
    %v5250 = vadd.f32 0.0, %v5249
    %5251 = vmatmul.f32.gmra.mxu0 %v4928
    %v5252 = vpop.f32.mrf.mxu0
    %v5253 = vadd.f32 0.0, %v5252
    %5254 = vdwg.mxu0
    %5255 = vmatpush.msra.mxu0 0.0
    %5256 = vmatpush.msra.mxu0 0.0
    %5257 = vmatpush.msra.mxu0 0.0
    %5258 = vmatpush.msra.mxu0 0.0
    %5259 = vmatpush.msra.mxu0 0.0
    %5260 = vmatpush.msra.mxu0 0.0
    %5261 = vmatpush.msra.mxu0 0.0
    %5262 = vmatpush.msra.mxu0 0.0
    %5263 = vmatpush.msra.mxu0 %v4840
    %5264 = vmatpush.msra.mxu0 %v4839
    %5265 = vmatpush.msra.mxu0 %v4838
    %5266 = vmatpush.msra.mxu0 %v4837
    %5267 = vmatpush.msra.mxu0 %v4836
    %5268 = vmatpush.msra.mxu0 %v4835
    %5269 = vmatpush.msra.mxu0 %v4834
    %5270 = vmatpush.msra.mxu0 %v4833
    %5271 = vmatmul.f32.gmra.mxu0 %v4883
    %v5272 = vpop.f32.mrf.mxu0
    %v5273 = vadd.f32 0.0, %v5272
    %5274 = vmatmul.f32.gmra.mxu0 %v4886
    %v5275 = vpop.f32.mrf.mxu0
    %v5276 = vadd.f32 0.0, %v5275
    %5277 = vmatmul.f32.gmra.mxu0 %v4889
    %v5278 = vpop.f32.mrf.mxu0
    %v5279 = vadd.f32 0.0, %v5278
    %5280 = vmatmul.f32.gmra.mxu0 %v4892
    %v5281 = vpop.f32.mrf.mxu0
    %v5282 = vadd.f32 0.0, %v5281
    %5283 = vmatmul.f32.gmra.mxu0 %v4895
    %v5284 = vpop.f32.mrf.mxu0
    %v5285 = vadd.f32 0.0, %v5284
    %5286 = vmatmul.f32.gmra.mxu0 %v4898
    %v5287 = vpop.f32.mrf.mxu0
    %v5288 = vadd.f32 0.0, %v5287
    %5289 = vmatmul.f32.gmra.mxu0 %v4901
    %v5290 = vpop.f32.mrf.mxu0
    %v5291 = vadd.f32 0.0, %v5290
    %5292 = vmatmul.f32.gmra.mxu0 %v4904
    %v5293 = vpop.f32.mrf.mxu0
    %v5294 = vadd.f32 0.0, %v5293
    %5295 = vmatmul.f32.gmra.mxu0 %v4907
    %v5296 = vpop.f32.mrf.mxu0
    %v5297 = vadd.f32 0.0, %v5296
    %5298 = vmatmul.f32.gmra.mxu0 %v4910
    %v5299 = vpop.f32.mrf.mxu0
    %v5300 = vadd.f32 0.0, %v5299
    %5301 = vmatmul.f32.gmra.mxu0 %v4913
    %v5302 = vpop.f32.mrf.mxu0
    %v5303 = vadd.f32 0.0, %v5302
    %5304 = vmatmul.f32.gmra.mxu0 %v4916
    %v5305 = vpop.f32.mrf.mxu0
    %v5306 = vadd.f32 0.0, %v5305
    %5307 = vmatmul.f32.gmra.mxu0 %v4919
    %v5308 = vpop.f32.mrf.mxu0
    %v5309 = vadd.f32 0.0, %v5308
    %5310 = vmatmul.f32.gmra.mxu0 %v4922
    %v5311 = vpop.f32.mrf.mxu0
    %v5312 = vadd.f32 0.0, %v5311
    %5313 = vmatmul.f32.gmra.mxu0 %v4925
    %v5314 = vpop.f32.mrf.mxu0
    %v5315 = vadd.f32 0.0, %v5314
    %5316 = vmatmul.f32.gmra.mxu0 %v4928
    %v5317 = vpop.f32.mrf.mxu0
    %v5318 = vadd.f32 0.0, %v5317
    %5319 = vdwg.mxu0
    %5320 = vmatpush.msra.mxu0 0.0
    %5321 = vmatpush.msra.mxu0 0.0
    %5322 = vmatpush.msra.mxu0 0.0
    %5323 = vmatpush.msra.mxu0 0.0
    %5324 = vmatpush.msra.mxu0 0.0
    %5325 = vmatpush.msra.mxu0 0.0
    %5326 = vmatpush.msra.mxu0 0.0
    %5327 = vmatpush.msra.mxu0 0.0
    %5328 = vmatpush.msra.mxu0 %v4848
    %5329 = vmatpush.msra.mxu0 %v4847
    %5330 = vmatpush.msra.mxu0 %v4846
    %5331 = vmatpush.msra.mxu0 %v4845
    %5332 = vmatpush.msra.mxu0 %v4844
    %5333 = vmatpush.msra.mxu0 %v4843
    %5334 = vmatpush.msra.mxu0 %v4842
    %5335 = vmatpush.msra.mxu0 %v4841
    %5336 = vmatmul.f32.gmra.mxu0 %v4883
    %v5337 = vpop.f32.mrf.mxu0
    %v5338 = vadd.f32 0.0, %v5337
    %5339 = vmatmul.f32.gmra.mxu0 %v4886
    %v5340 = vpop.f32.mrf.mxu0
    %v5341 = vadd.f32 0.0, %v5340
    %5342 = vmatmul.f32.gmra.mxu0 %v4889
    %v5343 = vpop.f32.mrf.mxu0
    %v5344 = vadd.f32 0.0, %v5343
    %5345 = vmatmul.f32.gmra.mxu0 %v4892
    %v5346 = vpop.f32.mrf.mxu0
    %v5347 = vadd.f32 0.0, %v5346
    %5348 = vmatmul.f32.gmra.mxu0 %v4895
    %v5349 = vpop.f32.mrf.mxu0
    %v5350 = vadd.f32 0.0, %v5349
    %5351 = vmatmul.f32.gmra.mxu0 %v4898
    %v5352 = vpop.f32.mrf.mxu0
    %v5353 = vadd.f32 0.0, %v5352
    %5354 = vmatmul.f32.gmra.mxu0 %v4901
    %v5355 = vpop.f32.mrf.mxu0
    %v5356 = vadd.f32 0.0, %v5355
    %5357 = vmatmul.f32.gmra.mxu0 %v4904
    %v5358 = vpop.f32.mrf.mxu0
    %v5359 = vadd.f32 0.0, %v5358
    %5360 = vmatmul.f32.gmra.mxu0 %v4907
    %v5361 = vpop.f32.mrf.mxu0
    %v5362 = vadd.f32 0.0, %v5361
    %5363 = vmatmul.f32.gmra.mxu0 %v4910
    %v5364 = vpop.f32.mrf.mxu0
    %v5365 = vadd.f32 0.0, %v5364
    %5366 = vmatmul.f32.gmra.mxu0 %v4913
    %v5367 = vpop.f32.mrf.mxu0
    %v5368 = vadd.f32 0.0, %v5367
    %5369 = vmatmul.f32.gmra.mxu0 %v4916
    %v5370 = vpop.f32.mrf.mxu0
    %v5371 = vadd.f32 0.0, %v5370
    %5372 = vmatmul.f32.gmra.mxu0 %v4919
    %v5373 = vpop.f32.mrf.mxu0
    %v5374 = vadd.f32 0.0, %v5373
    %5375 = vmatmul.f32.gmra.mxu0 %v4922
    %v5376 = vpop.f32.mrf.mxu0
    %v5377 = vadd.f32 0.0, %v5376
    %5378 = vmatmul.f32.gmra.mxu0 %v4925
    %v5379 = vpop.f32.mrf.mxu0
    %v5380 = vadd.f32 0.0, %v5379
    %5381 = vmatmul.f32.gmra.mxu0 %v4928
    %v5382 = vpop.f32.mrf.mxu0
    %v5383 = vadd.f32 0.0, %v5382
    %5384 = vdwg.mxu0
    %5385 = vmatpush.msra.mxu0 0.0
    %5386 = vmatpush.msra.mxu0 0.0
    %5387 = vmatpush.msra.mxu0 0.0
    %5388 = vmatpush.msra.mxu0 0.0
    %5389 = vmatpush.msra.mxu0 0.0
    %5390 = vmatpush.msra.mxu0 0.0
    %5391 = vmatpush.msra.mxu0 0.0
    %5392 = vmatpush.msra.mxu0 0.0
    %5393 = vmatpush.msra.mxu0 %v4856
    %5394 = vmatpush.msra.mxu0 %v4855
    %5395 = vmatpush.msra.mxu0 %v4854
    %5396 = vmatpush.msra.mxu0 %v4853
    %5397 = vmatpush.msra.mxu0 %v4852
    %5398 = vmatpush.msra.mxu0 %v4851
    %5399 = vmatpush.msra.mxu0 %v4850
    %5400 = vmatpush.msra.mxu0 %v4849
    %5401 = vmatmul.f32.gmra.mxu0 %v4883
    %v5402 = vpop.f32.mrf.mxu0
    %v5403 = vadd.f32 0.0, %v5402
    %5404 = vmatmul.f32.gmra.mxu0 %v4886
    %v5405 = vpop.f32.mrf.mxu0
    %v5406 = vadd.f32 0.0, %v5405
    %5407 = vmatmul.f32.gmra.mxu0 %v4889
    %v5408 = vpop.f32.mrf.mxu0
    %v5409 = vadd.f32 0.0, %v5408
    %5410 = vmatmul.f32.gmra.mxu0 %v4892
    %v5411 = vpop.f32.mrf.mxu0
    %v5412 = vadd.f32 0.0, %v5411
    %5413 = vmatmul.f32.gmra.mxu0 %v4895
    %v5414 = vpop.f32.mrf.mxu0
    %v5415 = vadd.f32 0.0, %v5414
    %5416 = vmatmul.f32.gmra.mxu0 %v4898
    %v5417 = vpop.f32.mrf.mxu0
    %v5418 = vadd.f32 0.0, %v5417
    %5419 = vmatmul.f32.gmra.mxu0 %v4901
    %v5420 = vpop.f32.mrf.mxu0
    %v5421 = vadd.f32 0.0, %v5420
    %5422 = vmatmul.f32.gmra.mxu0 %v4904
    %v5423 = vpop.f32.mrf.mxu0
    %v5424 = vadd.f32 0.0, %v5423
    %5425 = vmatmul.f32.gmra.mxu0 %v4907
    %v5426 = vpop.f32.mrf.mxu0
    %v5427 = vadd.f32 0.0, %v5426
    %5428 = vmatmul.f32.gmra.mxu0 %v4910
    %v5429 = vpop.f32.mrf.mxu0
    %v5430 = vadd.f32 0.0, %v5429
    %5431 = vmatmul.f32.gmra.mxu0 %v4913
    %v5432 = vpop.f32.mrf.mxu0
    %v5433 = vadd.f32 0.0, %v5432
    %5434 = vmatmul.f32.gmra.mxu0 %v4916
    %v5435 = vpop.f32.mrf.mxu0
    %v5436 = vadd.f32 0.0, %v5435
    %5437 = vmatmul.f32.gmra.mxu0 %v4919
    %v5438 = vpop.f32.mrf.mxu0
    %v5439 = vadd.f32 0.0, %v5438
    %5440 = vmatmul.f32.gmra.mxu0 %v4922
    %v5441 = vpop.f32.mrf.mxu0
    %v5442 = vadd.f32 0.0, %v5441
    %5443 = vmatmul.f32.gmra.mxu0 %v4925
    %v5444 = vpop.f32.mrf.mxu0
    %v5445 = vadd.f32 0.0, %v5444
    %5446 = vmatmul.f32.gmra.mxu0 %v4928
    %v5447 = vpop.f32.mrf.mxu0
    %v5448 = vadd.f32 0.0, %v5447
    %5449 = vdwg.mxu0
    %v5451 = vsel %vm4881, %v4948, 0
    %v5454 = vsel %vm4881, %v4951, 0
    %v5457 = vsel %vm4881, %v4954, 0
    %v5460 = vsel %vm4881, %v4957, 0
    %v5463 = vsel %vm4881, %v4960, 0
    %v5466 = vsel %vm4881, %v4963, 0
    %v5469 = vsel %vm4881, %v4966, 0
    %v5472 = vsel %vm4881, %v4969, 0
    %v5475 = vsel %vm4881, %v4972, 0
    %v5478 = vsel %vm4881, %v4975, 0
    %v5481 = vsel %vm4881, %v4978, 0
    %v5484 = vsel %vm4881, %v4981, 0
    %v5487 = vsel %vm4881, %v4984, 0
    %v5490 = vsel %vm4881, %v4987, 0
    %v5493 = vsel %vm4881, %v4990, 0
    %v5496 = vsel %vm4881, %v4993, 0
    %v5499 = vsel %vm4881, %v5013, 0
    %v5502 = vsel %vm4881, %v5016, 0
    %v5505 = vsel %vm4881, %v5019, 0
    %v5508 = vsel %vm4881, %v5022, 0
    %v5511 = vsel %vm4881, %v5025, 0
    %v5514 = vsel %vm4881, %v5028, 0
    %v5517 = vsel %vm4881, %v5031, 0
    %v5520 = vsel %vm4881, %v5034, 0
    %v5523 = vsel %vm4881, %v5037, 0
    %v5526 = vsel %vm4881, %v5040, 0
    %v5529 = vsel %vm4881, %v5043, 0
    %v5532 = vsel %vm4881, %v5046, 0
    %v5535 = vsel %vm4881, %v5049, 0
    %v5538 = vsel %vm4881, %v5052, 0
    %v5541 = vsel %vm4881, %v5055, 0
    %v5544 = vsel %vm4881, %v5058, 0
    %v5547 = vsel %vm4881, %v5078, 0
    %v5550 = vsel %vm4881, %v5081, 0
    %v5553 = vsel %vm4881, %v5084, 0
    %v5556 = vsel %vm4881, %v5087, 0
    %v5559 = vsel %vm4881, %v5090, 0
    %v5562 = vsel %vm4881, %v5093, 0
    %v5565 = vsel %vm4881, %v5096, 0
    %v5568 = vsel %vm4881, %v5099, 0
    %v5571 = vsel %vm4881, %v5102, 0
    %v5574 = vsel %vm4881, %v5105, 0
    %v5577 = vsel %vm4881, %v5108, 0
    %v5580 = vsel %vm4881, %v5111, 0
    %v5583 = vsel %vm4881, %v5114, 0
    %v5586 = vsel %vm4881, %v5117, 0
    %v5589 = vsel %vm4881, %v5120, 0
    %v5592 = vsel %vm4881, %v5123, 0
    %v5595 = vsel %vm4881, %v5143, 0
    %v5598 = vsel %vm4881, %v5146, 0
    %v5601 = vsel %vm4881, %v5149, 0
    %v5604 = vsel %vm4881, %v5152, 0
    %v5607 = vsel %vm4881, %v5155, 0
    %v5610 = vsel %vm4881, %v5158, 0
    %v5613 = vsel %vm4881, %v5161, 0
    %v5616 = vsel %vm4881, %v5164, 0
    %v5619 = vsel %vm4881, %v5167, 0
    %v5622 = vsel %vm4881, %v5170, 0
    %v5625 = vsel %vm4881, %v5173, 0
    %v5628 = vsel %vm4881, %v5176, 0
    %v5631 = vsel %vm4881, %v5179, 0
    %v5634 = vsel %vm4881, %v5182, 0
    %v5637 = vsel %vm4881, %v5185, 0
    %v5640 = vsel %vm4881, %v5188, 0
    %v5643 = vsel %vm4881, %v5208, 0
    %v5646 = vsel %vm4881, %v5211, 0
    %v5649 = vsel %vm4881, %v5214, 0
    %v5652 = vsel %vm4881, %v5217, 0
    %v5655 = vsel %vm4881, %v5220, 0
    %v5658 = vsel %vm4881, %v5223, 0
    %v5661 = vsel %vm4881, %v5226, 0
    %v5664 = vsel %vm4881, %v5229, 0
    %v5667 = vsel %vm4881, %v5232, 0
    %v5670 = vsel %vm4881, %v5235, 0
    %v5673 = vsel %vm4881, %v5238, 0
    %v5676 = vsel %vm4881, %v5241, 0
    %v5679 = vsel %vm4881, %v5244, 0
    %v5682 = vsel %vm4881, %v5247, 0
    %v5685 = vsel %vm4881, %v5250, 0
    %v5688 = vsel %vm4881, %v5253, 0
    %v5691 = vsel %vm4881, %v5273, 0
    %v5694 = vsel %vm4881, %v5276, 0
    %v5697 = vsel %vm4881, %v5279, 0
    %v5700 = vsel %vm4881, %v5282, 0
    %v5703 = vsel %vm4881, %v5285, 0
    %v5706 = vsel %vm4881, %v5288, 0
    %v5709 = vsel %vm4881, %v5291, 0
    %v5712 = vsel %vm4881, %v5294, 0
    %v5715 = vsel %vm4881, %v5297, 0
    %v5718 = vsel %vm4881, %v5300, 0
    %v5721 = vsel %vm4881, %v5303, 0
    %v5724 = vsel %vm4881, %v5306, 0
    %v5727 = vsel %vm4881, %v5309, 0
    %v5730 = vsel %vm4881, %v5312, 0
    %v5733 = vsel %vm4881, %v5315, 0
    %v5736 = vsel %vm4881, %v5318, 0
    %v5739 = vsel %vm4881, %v5338, 0
    %v5742 = vsel %vm4881, %v5341, 0
    %v5745 = vsel %vm4881, %v5344, 0
    %v5748 = vsel %vm4881, %v5347, 0
    %v5751 = vsel %vm4881, %v5350, 0
    %v5754 = vsel %vm4881, %v5353, 0
    %v5757 = vsel %vm4881, %v5356, 0
    %v5760 = vsel %vm4881, %v5359, 0
    %v5763 = vsel %vm4881, %v5362, 0
    %v5766 = vsel %vm4881, %v5365, 0
    %v5769 = vsel %vm4881, %v5368, 0
    %v5772 = vsel %vm4881, %v5371, 0
    %v5775 = vsel %vm4881, %v5374, 0
    %v5778 = vsel %vm4881, %v5377, 0
    %v5781 = vsel %vm4881, %v5380, 0
    %v5784 = vsel %vm4881, %v5383, 0
    %v5787 = vsel %vm4881, %v5403, 0
    %v5790 = vsel %vm4881, %v5406, 0
    %v5793 = vsel %vm4881, %v5409, 0
    %v5796 = vsel %vm4881, %v5412, 0
    %v5799 = vsel %vm4881, %v5415, 0
    %v5802 = vsel %vm4881, %v5418, 0
    %v5805 = vsel %vm4881, %v5421, 0
    %v5808 = vsel %vm4881, %v5424, 0
    %v5811 = vsel %vm4881, %v5427, 0
    %v5814 = vsel %vm4881, %v5430, 0
    %v5817 = vsel %vm4881, %v5433, 0
    %v5820 = vsel %vm4881, %v5436, 0
    %v5823 = vsel %vm4881, %v5439, 0
    %v5826 = vsel %vm4881, %v5442, 0
    %v5829 = vsel %vm4881, %v5445, 0
    %v5832 = vsel %vm4881, %v5448, 0
    %5834 = vmatpush.msra.mxu0 0.0
    %5835 = vmatpush.msra.mxu0 0.0
    %5836 = vmatpush.msra.mxu0 0.0
    %5837 = vmatpush.msra.mxu0 0.0
    %5838 = vmatpush.msra.mxu0 0.0
    %5839 = vmatpush.msra.mxu0 0.0
    %5840 = vmatpush.msra.mxu0 0.0
    %5841 = vmatpush.msra.mxu0 0.0
    %5842 = vmatpush.msra.mxu0 %v4880
    %5843 = vmatpush.msra.mxu0 %v4879
    %5844 = vmatpush.msra.mxu0 %v4878
    %5845 = vmatpush.msra.mxu0 %v4877
    %5846 = vmatpush.msra.mxu0 %v4876
    %5847 = vmatpush.msra.mxu0 %v4875
    %5848 = vmatpush.msra.mxu0 %v4874
    %5849 = vmatpush.msra.mxu0 %v4873
    %5850 = vmatmul.f32.gmra.mxu0 %v5451
    %v5851 = vpop.f32.mrf.mxu0
    %v5852 = vadd.f32 0.0, %v5851
    %5853 = vmatmul.f32.gmra.mxu0 %v5454
    %v5854 = vpop.f32.mrf.mxu0
    %v5855 = vadd.f32 0.0, %v5854
    %5856 = vmatmul.f32.gmra.mxu0 %v5457
    %v5857 = vpop.f32.mrf.mxu0
    %v5858 = vadd.f32 0.0, %v5857
    %5859 = vmatmul.f32.gmra.mxu0 %v5460
    %v5860 = vpop.f32.mrf.mxu0
    %v5861 = vadd.f32 0.0, %v5860
    %5862 = vmatmul.f32.gmra.mxu0 %v5463
    %v5863 = vpop.f32.mrf.mxu0
    %v5864 = vadd.f32 0.0, %v5863
    %5865 = vmatmul.f32.gmra.mxu0 %v5466
    %v5866 = vpop.f32.mrf.mxu0
    %v5867 = vadd.f32 0.0, %v5866
    %5868 = vmatmul.f32.gmra.mxu0 %v5469
    %v5869 = vpop.f32.mrf.mxu0
    %v5870 = vadd.f32 0.0, %v5869
    %5871 = vmatmul.f32.gmra.mxu0 %v5472
    %v5872 = vpop.f32.mrf.mxu0
    %v5873 = vadd.f32 0.0, %v5872
    %5874 = vmatmul.f32.gmra.mxu0 %v5475
    %v5875 = vpop.f32.mrf.mxu0
    %v5876 = vadd.f32 0.0, %v5875
    %5877 = vmatmul.f32.gmra.mxu0 %v5478
    %v5878 = vpop.f32.mrf.mxu0
    %v5879 = vadd.f32 0.0, %v5878
    %5880 = vmatmul.f32.gmra.mxu0 %v5481
    %v5881 = vpop.f32.mrf.mxu0
    %v5882 = vadd.f32 0.0, %v5881
    %5883 = vmatmul.f32.gmra.mxu0 %v5484
    %v5884 = vpop.f32.mrf.mxu0
    %v5885 = vadd.f32 0.0, %v5884
    %5886 = vmatmul.f32.gmra.mxu0 %v5487
    %v5887 = vpop.f32.mrf.mxu0
    %v5888 = vadd.f32 0.0, %v5887
    %5889 = vmatmul.f32.gmra.mxu0 %v5490
    %v5890 = vpop.f32.mrf.mxu0
    %v5891 = vadd.f32 0.0, %v5890
    %5892 = vmatmul.f32.gmra.mxu0 %v5493
    %v5893 = vpop.f32.mrf.mxu0
    %v5894 = vadd.f32 0.0, %v5893
    %5895 = vmatmul.f32.gmra.mxu0 %v5496
    %v5896 = vpop.f32.mrf.mxu0
    %v5897 = vadd.f32 0.0, %v5896
    %5898 = vmatmul.f32.gmra.mxu0 %v5499
    %v5899 = vpop.f32.mrf.mxu0
    %v5900 = vadd.f32 0.0, %v5899
    %5901 = vmatmul.f32.gmra.mxu0 %v5502
    %v5902 = vpop.f32.mrf.mxu0
    %v5903 = vadd.f32 0.0, %v5902
    %5904 = vmatmul.f32.gmra.mxu0 %v5505
    %v5905 = vpop.f32.mrf.mxu0
    %v5906 = vadd.f32 0.0, %v5905
    %5907 = vmatmul.f32.gmra.mxu0 %v5508
    %v5908 = vpop.f32.mrf.mxu0
    %v5909 = vadd.f32 0.0, %v5908
    %5910 = vmatmul.f32.gmra.mxu0 %v5511
    %v5911 = vpop.f32.mrf.mxu0
    %v5912 = vadd.f32 0.0, %v5911
    %5913 = vmatmul.f32.gmra.mxu0 %v5514
    %v5914 = vpop.f32.mrf.mxu0
    %v5915 = vadd.f32 0.0, %v5914
    %5916 = vmatmul.f32.gmra.mxu0 %v5517
    %v5917 = vpop.f32.mrf.mxu0
    %v5918 = vadd.f32 0.0, %v5917
    %5919 = vmatmul.f32.gmra.mxu0 %v5520
    %v5920 = vpop.f32.mrf.mxu0
    %v5921 = vadd.f32 0.0, %v5920
    %5922 = vmatmul.f32.gmra.mxu0 %v5523
    %v5923 = vpop.f32.mrf.mxu0
    %v5924 = vadd.f32 0.0, %v5923
    %5925 = vmatmul.f32.gmra.mxu0 %v5526
    %v5926 = vpop.f32.mrf.mxu0
    %v5927 = vadd.f32 0.0, %v5926
    %5928 = vmatmul.f32.gmra.mxu0 %v5529
    %v5929 = vpop.f32.mrf.mxu0
    %v5930 = vadd.f32 0.0, %v5929
    %5931 = vmatmul.f32.gmra.mxu0 %v5532
    %v5932 = vpop.f32.mrf.mxu0
    %v5933 = vadd.f32 0.0, %v5932
    %5934 = vmatmul.f32.gmra.mxu0 %v5535
    %v5935 = vpop.f32.mrf.mxu0
    %v5936 = vadd.f32 0.0, %v5935
    %5937 = vmatmul.f32.gmra.mxu0 %v5538
    %v5938 = vpop.f32.mrf.mxu0
    %v5939 = vadd.f32 0.0, %v5938
    %5940 = vmatmul.f32.gmra.mxu0 %v5541
    %v5941 = vpop.f32.mrf.mxu0
    %v5942 = vadd.f32 0.0, %v5941
    %5943 = vmatmul.f32.gmra.mxu0 %v5544
    %v5944 = vpop.f32.mrf.mxu0
    %v5945 = vadd.f32 0.0, %v5944
    %5946 = vmatmul.f32.gmra.mxu0 %v5547
    %v5947 = vpop.f32.mrf.mxu0
    %v5948 = vadd.f32 0.0, %v5947
    %5949 = vmatmul.f32.gmra.mxu0 %v5550
    %v5950 = vpop.f32.mrf.mxu0
    %v5951 = vadd.f32 0.0, %v5950
    %5952 = vmatmul.f32.gmra.mxu0 %v5553
    %v5953 = vpop.f32.mrf.mxu0
    %v5954 = vadd.f32 0.0, %v5953
    %5955 = vmatmul.f32.gmra.mxu0 %v5556
    %v5956 = vpop.f32.mrf.mxu0
    %v5957 = vadd.f32 0.0, %v5956
    %5958 = vmatmul.f32.gmra.mxu0 %v5559
    %v5959 = vpop.f32.mrf.mxu0
    %v5960 = vadd.f32 0.0, %v5959
    %5961 = vmatmul.f32.gmra.mxu0 %v5562
    %v5962 = vpop.f32.mrf.mxu0
    %v5963 = vadd.f32 0.0, %v5962
    %5964 = vmatmul.f32.gmra.mxu0 %v5565
    %v5965 = vpop.f32.mrf.mxu0
    %v5966 = vadd.f32 0.0, %v5965
    %5967 = vmatmul.f32.gmra.mxu0 %v5568
    %v5968 = vpop.f32.mrf.mxu0
    %v5969 = vadd.f32 0.0, %v5968
    %5970 = vmatmul.f32.gmra.mxu0 %v5571
    %v5971 = vpop.f32.mrf.mxu0
    %v5972 = vadd.f32 0.0, %v5971
    %5973 = vmatmul.f32.gmra.mxu0 %v5574
    %v5974 = vpop.f32.mrf.mxu0
    %v5975 = vadd.f32 0.0, %v5974
    %5976 = vmatmul.f32.gmra.mxu0 %v5577
    %v5977 = vpop.f32.mrf.mxu0
    %v5978 = vadd.f32 0.0, %v5977
    %5979 = vmatmul.f32.gmra.mxu0 %v5580
    %v5980 = vpop.f32.mrf.mxu0
    %v5981 = vadd.f32 0.0, %v5980
    %5982 = vmatmul.f32.gmra.mxu0 %v5583
    %v5983 = vpop.f32.mrf.mxu0
    %v5984 = vadd.f32 0.0, %v5983
    %5985 = vmatmul.f32.gmra.mxu0 %v5586
    %v5986 = vpop.f32.mrf.mxu0
    %v5987 = vadd.f32 0.0, %v5986
    %5988 = vmatmul.f32.gmra.mxu0 %v5589
    %v5989 = vpop.f32.mrf.mxu0
    %v5990 = vadd.f32 0.0, %v5989
    %5991 = vmatmul.f32.gmra.mxu0 %v5592
    %v5992 = vpop.f32.mrf.mxu0
    %v5993 = vadd.f32 0.0, %v5992
    %5994 = vmatmul.f32.gmra.mxu0 %v5595
    %v5995 = vpop.f32.mrf.mxu0
    %v5996 = vadd.f32 0.0, %v5995
    %5997 = vmatmul.f32.gmra.mxu0 %v5598
    %v5998 = vpop.f32.mrf.mxu0
    %v5999 = vadd.f32 0.0, %v5998
    %6000 = vmatmul.f32.gmra.mxu0 %v5601
    %v6001 = vpop.f32.mrf.mxu0
    %v6002 = vadd.f32 0.0, %v6001
    %6003 = vmatmul.f32.gmra.mxu0 %v5604
    %v6004 = vpop.f32.mrf.mxu0
    %v6005 = vadd.f32 0.0, %v6004
    %6006 = vmatmul.f32.gmra.mxu0 %v5607
    %v6007 = vpop.f32.mrf.mxu0
    %v6008 = vadd.f32 0.0, %v6007
    %6009 = vmatmul.f32.gmra.mxu0 %v5610
    %v6010 = vpop.f32.mrf.mxu0
    %v6011 = vadd.f32 0.0, %v6010
    %6012 = vmatmul.f32.gmra.mxu0 %v5613
    %v6013 = vpop.f32.mrf.mxu0
    %v6014 = vadd.f32 0.0, %v6013
    %6015 = vmatmul.f32.gmra.mxu0 %v5616
    %v6016 = vpop.f32.mrf.mxu0
    %v6017 = vadd.f32 0.0, %v6016
    %6018 = vmatmul.f32.gmra.mxu0 %v5619
    %v6019 = vpop.f32.mrf.mxu0
    %v6020 = vadd.f32 0.0, %v6019
    %6021 = vmatmul.f32.gmra.mxu0 %v5622
    %v6022 = vpop.f32.mrf.mxu0
    %v6023 = vadd.f32 0.0, %v6022
    %6024 = vmatmul.f32.gmra.mxu0 %v5625
    %v6025 = vpop.f32.mrf.mxu0
    %v6026 = vadd.f32 0.0, %v6025
    %6027 = vmatmul.f32.gmra.mxu0 %v5628
    %v6028 = vpop.f32.mrf.mxu0
    %v6029 = vadd.f32 0.0, %v6028
    %6030 = vmatmul.f32.gmra.mxu0 %v5631
    %v6031 = vpop.f32.mrf.mxu0
    %v6032 = vadd.f32 0.0, %v6031
    %6033 = vmatmul.f32.gmra.mxu0 %v5634
    %v6034 = vpop.f32.mrf.mxu0
    %v6035 = vadd.f32 0.0, %v6034
    %6036 = vmatmul.f32.gmra.mxu0 %v5637
    %v6037 = vpop.f32.mrf.mxu0
    %v6038 = vadd.f32 0.0, %v6037
    %6039 = vmatmul.f32.gmra.mxu0 %v5640
    %v6040 = vpop.f32.mrf.mxu0
    %v6041 = vadd.f32 0.0, %v6040
    %6042 = vmatmul.f32.gmra.mxu0 %v5643
    %v6043 = vpop.f32.mrf.mxu0
    %v6044 = vadd.f32 0.0, %v6043
    %6045 = vmatmul.f32.gmra.mxu0 %v5646
    %v6046 = vpop.f32.mrf.mxu0
    %v6047 = vadd.f32 0.0, %v6046
    %6048 = vmatmul.f32.gmra.mxu0 %v5649
    %v6049 = vpop.f32.mrf.mxu0
    %v6050 = vadd.f32 0.0, %v6049
    %6051 = vmatmul.f32.gmra.mxu0 %v5652
    %v6052 = vpop.f32.mrf.mxu0
    %v6053 = vadd.f32 0.0, %v6052
    %6054 = vmatmul.f32.gmra.mxu0 %v5655
    %v6055 = vpop.f32.mrf.mxu0
    %v6056 = vadd.f32 0.0, %v6055
    %6057 = vmatmul.f32.gmra.mxu0 %v5658
    %v6058 = vpop.f32.mrf.mxu0
    %v6059 = vadd.f32 0.0, %v6058
    %6060 = vmatmul.f32.gmra.mxu0 %v5661
    %v6061 = vpop.f32.mrf.mxu0
    %v6062 = vadd.f32 0.0, %v6061
    %6063 = vmatmul.f32.gmra.mxu0 %v5664
    %v6064 = vpop.f32.mrf.mxu0
    %v6065 = vadd.f32 0.0, %v6064
    %6066 = vmatmul.f32.gmra.mxu0 %v5667
    %v6067 = vpop.f32.mrf.mxu0
    %v6068 = vadd.f32 0.0, %v6067
    %6069 = vmatmul.f32.gmra.mxu0 %v5670
    %v6070 = vpop.f32.mrf.mxu0
    %v6071 = vadd.f32 0.0, %v6070
    %6072 = vmatmul.f32.gmra.mxu0 %v5673
    %v6073 = vpop.f32.mrf.mxu0
    %v6074 = vadd.f32 0.0, %v6073
    %6075 = vmatmul.f32.gmra.mxu0 %v5676
    %v6076 = vpop.f32.mrf.mxu0
    %v6077 = vadd.f32 0.0, %v6076
    %6078 = vmatmul.f32.gmra.mxu0 %v5679
    %v6079 = vpop.f32.mrf.mxu0
    %v6080 = vadd.f32 0.0, %v6079
    %6081 = vmatmul.f32.gmra.mxu0 %v5682
    %v6082 = vpop.f32.mrf.mxu0
    %v6083 = vadd.f32 0.0, %v6082
    %6084 = vmatmul.f32.gmra.mxu0 %v5685
    %v6085 = vpop.f32.mrf.mxu0
    %v6086 = vadd.f32 0.0, %v6085
    %6087 = vmatmul.f32.gmra.mxu0 %v5688
    %v6088 = vpop.f32.mrf.mxu0
    %v6089 = vadd.f32 0.0, %v6088
    %6090 = vmatmul.f32.gmra.mxu0 %v5691
    %v6091 = vpop.f32.mrf.mxu0
    %v6092 = vadd.f32 0.0, %v6091
    %6093 = vmatmul.f32.gmra.mxu0 %v5694
    %v6094 = vpop.f32.mrf.mxu0
    %v6095 = vadd.f32 0.0, %v6094
    %6096 = vmatmul.f32.gmra.mxu0 %v5697
    %v6097 = vpop.f32.mrf.mxu0
    %v6098 = vadd.f32 0.0, %v6097
    %6099 = vmatmul.f32.gmra.mxu0 %v5700
    %v6100 = vpop.f32.mrf.mxu0
    %v6101 = vadd.f32 0.0, %v6100
    %6102 = vmatmul.f32.gmra.mxu0 %v5703
    %v6103 = vpop.f32.mrf.mxu0
    %v6104 = vadd.f32 0.0, %v6103
    %6105 = vmatmul.f32.gmra.mxu0 %v5706
    %v6106 = vpop.f32.mrf.mxu0
    %v6107 = vadd.f32 0.0, %v6106
    %6108 = vmatmul.f32.gmra.mxu0 %v5709
    %v6109 = vpop.f32.mrf.mxu0
    %v6110 = vadd.f32 0.0, %v6109
    %6111 = vmatmul.f32.gmra.mxu0 %v5712
    %v6112 = vpop.f32.mrf.mxu0
    %v6113 = vadd.f32 0.0, %v6112
    %6114 = vmatmul.f32.gmra.mxu0 %v5715
    %v6115 = vpop.f32.mrf.mxu0
    %v6116 = vadd.f32 0.0, %v6115
    %6117 = vmatmul.f32.gmra.mxu0 %v5718
    %v6118 = vpop.f32.mrf.mxu0
    %v6119 = vadd.f32 0.0, %v6118
    %6120 = vmatmul.f32.gmra.mxu0 %v5721
    %v6121 = vpop.f32.mrf.mxu0
    %v6122 = vadd.f32 0.0, %v6121
    %6123 = vmatmul.f32.gmra.mxu0 %v5724
    %v6124 = vpop.f32.mrf.mxu0
    %v6125 = vadd.f32 0.0, %v6124
    %6126 = vmatmul.f32.gmra.mxu0 %v5727
    %v6127 = vpop.f32.mrf.mxu0
    %v6128 = vadd.f32 0.0, %v6127
    %6129 = vmatmul.f32.gmra.mxu0 %v5730
    %v6130 = vpop.f32.mrf.mxu0
    %v6131 = vadd.f32 0.0, %v6130
    %6132 = vmatmul.f32.gmra.mxu0 %v5733
    %v6133 = vpop.f32.mrf.mxu0
    %v6134 = vadd.f32 0.0, %v6133
    %6135 = vmatmul.f32.gmra.mxu0 %v5736
    %v6136 = vpop.f32.mrf.mxu0
    %v6137 = vadd.f32 0.0, %v6136
    %6138 = vmatmul.f32.gmra.mxu0 %v5739
    %v6139 = vpop.f32.mrf.mxu0
    %v6140 = vadd.f32 0.0, %v6139
    %6141 = vmatmul.f32.gmra.mxu0 %v5742
    %v6142 = vpop.f32.mrf.mxu0
    %v6143 = vadd.f32 0.0, %v6142
    %6144 = vmatmul.f32.gmra.mxu0 %v5745
    %v6145 = vpop.f32.mrf.mxu0
    %v6146 = vadd.f32 0.0, %v6145
    %6147 = vmatmul.f32.gmra.mxu0 %v5748
    %v6148 = vpop.f32.mrf.mxu0
    %v6149 = vadd.f32 0.0, %v6148
    %6150 = vmatmul.f32.gmra.mxu0 %v5751
    %v6151 = vpop.f32.mrf.mxu0
    %v6152 = vadd.f32 0.0, %v6151
    %6153 = vmatmul.f32.gmra.mxu0 %v5754
    %v6154 = vpop.f32.mrf.mxu0
    %v6155 = vadd.f32 0.0, %v6154
    %6156 = vmatmul.f32.gmra.mxu0 %v5757
    %v6157 = vpop.f32.mrf.mxu0
    %v6158 = vadd.f32 0.0, %v6157
    %6159 = vmatmul.f32.gmra.mxu0 %v5760
    %v6160 = vpop.f32.mrf.mxu0
    %v6161 = vadd.f32 0.0, %v6160
    %6162 = vmatmul.f32.gmra.mxu0 %v5763
    %v6163 = vpop.f32.mrf.mxu0
    %v6164 = vadd.f32 0.0, %v6163
    %6165 = vmatmul.f32.gmra.mxu0 %v5766
    %v6166 = vpop.f32.mrf.mxu0
    %v6167 = vadd.f32 0.0, %v6166
    %6168 = vmatmul.f32.gmra.mxu0 %v5769
    %v6169 = vpop.f32.mrf.mxu0
    %v6170 = vadd.f32 0.0, %v6169
    %6171 = vmatmul.f32.gmra.mxu0 %v5772
    %v6172 = vpop.f32.mrf.mxu0
    %v6173 = vadd.f32 0.0, %v6172
    %6174 = vmatmul.f32.gmra.mxu0 %v5775
    %v6175 = vpop.f32.mrf.mxu0
    %v6176 = vadd.f32 0.0, %v6175
    %6177 = vmatmul.f32.gmra.mxu0 %v5778
    %v6178 = vpop.f32.mrf.mxu0
    %v6179 = vadd.f32 0.0, %v6178
    %6180 = vmatmul.f32.gmra.mxu0 %v5781
    %v6181 = vpop.f32.mrf.mxu0
    %v6182 = vadd.f32 0.0, %v6181
    %6183 = vmatmul.f32.gmra.mxu0 %v5784
    %v6184 = vpop.f32.mrf.mxu0
    %v6185 = vadd.f32 0.0, %v6184
    %6186 = vmatmul.f32.gmra.mxu0 %v5787
    %v6187 = vpop.f32.mrf.mxu0
    %v6188 = vadd.f32 0.0, %v6187
    %6189 = vmatmul.f32.gmra.mxu0 %v5790
    %v6190 = vpop.f32.mrf.mxu0
    %v6191 = vadd.f32 0.0, %v6190
    %6192 = vmatmul.f32.gmra.mxu0 %v5793
    %v6193 = vpop.f32.mrf.mxu0
    %v6194 = vadd.f32 0.0, %v6193
    %6195 = vmatmul.f32.gmra.mxu0 %v5796
    %v6196 = vpop.f32.mrf.mxu0
    %v6197 = vadd.f32 0.0, %v6196
    %6198 = vmatmul.f32.gmra.mxu0 %v5799
    %v6199 = vpop.f32.mrf.mxu0
    %v6200 = vadd.f32 0.0, %v6199
    %6201 = vmatmul.f32.gmra.mxu0 %v5802
    %v6202 = vpop.f32.mrf.mxu0
    %v6203 = vadd.f32 0.0, %v6202
    %6204 = vmatmul.f32.gmra.mxu0 %v5805
    %v6205 = vpop.f32.mrf.mxu0
    %v6206 = vadd.f32 0.0, %v6205
    %6207 = vmatmul.f32.gmra.mxu0 %v5808
    %v6208 = vpop.f32.mrf.mxu0
    %v6209 = vadd.f32 0.0, %v6208
    %6210 = vmatmul.f32.gmra.mxu0 %v5811
    %v6211 = vpop.f32.mrf.mxu0
    %v6212 = vadd.f32 0.0, %v6211
    %6213 = vmatmul.f32.gmra.mxu0 %v5814
    %v6214 = vpop.f32.mrf.mxu0
    %v6215 = vadd.f32 0.0, %v6214
    %6216 = vmatmul.f32.gmra.mxu0 %v5817
    %v6217 = vpop.f32.mrf.mxu0
    %v6218 = vadd.f32 0.0, %v6217
    %6219 = vmatmul.f32.gmra.mxu0 %v5820
    %v6220 = vpop.f32.mrf.mxu0
    %v6221 = vadd.f32 0.0, %v6220
    %6222 = vmatmul.f32.gmra.mxu0 %v5823
    %v6223 = vpop.f32.mrf.mxu0
    %v6224 = vadd.f32 0.0, %v6223
    %6225 = vmatmul.f32.gmra.mxu0 %v5826
    %v6226 = vpop.f32.mrf.mxu0
    %v6227 = vadd.f32 0.0, %v6226
    %6228 = vmatmul.f32.gmra.mxu0 %v5829
    %v6229 = vpop.f32.mrf.mxu0
    %v6230 = vadd.f32 0.0, %v6229
    %6231 = vmatmul.f32.gmra.mxu0 %v5832
    %v6232 = vpop.f32.mrf.mxu0
    %v6233 = vadd.f32 0.0, %v6232
    %6234 = vdwg.mxu0
    %v6235 = vadd.f32 %v4665, %v5852
    %v6236 = vadd.f32 %v4666, %v5855
    %v6237 = vadd.f32 %v4667, %v5858
    %v6238 = vadd.f32 %v4668, %v5861
    %v6239 = vadd.f32 %v4669, %v5864
    %v6240 = vadd.f32 %v4670, %v5867
    %v6241 = vadd.f32 %v4671, %v5870
    %v6242 = vadd.f32 %v4672, %v5873
    %v6243 = vadd.f32 %v4673, %v5876
    %v6244 = vadd.f32 %v4674, %v5879
    %v6245 = vadd.f32 %v4675, %v5882
    %v6246 = vadd.f32 %v4676, %v5885
    %v6247 = vadd.f32 %v4677, %v5888
    %v6248 = vadd.f32 %v4678, %v5891
    %v6249 = vadd.f32 %v4679, %v5894
    %v6250 = vadd.f32 %v4680, %v5897
    %v6251 = vadd.f32 %v4681, %v5900
    %v6252 = vadd.f32 %v4682, %v5903
    %v6253 = vadd.f32 %v4683, %v5906
    %v6254 = vadd.f32 %v4684, %v5909
    %v6255 = vadd.f32 %v4685, %v5912
    %v6256 = vadd.f32 %v4686, %v5915
    %v6257 = vadd.f32 %v4687, %v5918
    %v6258 = vadd.f32 %v4688, %v5921
    %v6259 = vadd.f32 %v4689, %v5924
    %v6260 = vadd.f32 %v4690, %v5927
    %v6261 = vadd.f32 %v4691, %v5930
    %v6262 = vadd.f32 %v4692, %v5933
    %v6263 = vadd.f32 %v4693, %v5936
    %v6264 = vadd.f32 %v4694, %v5939
    %v6265 = vadd.f32 %v4695, %v5942
    %v6266 = vadd.f32 %v4696, %v5945
    %v6267 = vadd.f32 %v4697, %v5948
    %v6268 = vadd.f32 %v4698, %v5951
    %v6269 = vadd.f32 %v4699, %v5954
    %v6270 = vadd.f32 %v4700, %v5957
    %v6271 = vadd.f32 %v4701, %v5960
    %v6272 = vadd.f32 %v4702, %v5963
    %v6273 = vadd.f32 %v4703, %v5966
    %v6274 = vadd.f32 %v4704, %v5969
    %v6275 = vadd.f32 %v4705, %v5972
    %v6276 = vadd.f32 %v4706, %v5975
    %v6277 = vadd.f32 %v4707, %v5978
    %v6278 = vadd.f32 %v4708, %v5981
    %v6279 = vadd.f32 %v4709, %v5984
    %v6280 = vadd.f32 %v4710, %v5987
    %v6281 = vadd.f32 %v4711, %v5990
    %v6282 = vadd.f32 %v4712, %v5993
    %v6283 = vadd.f32 %v4713, %v5996
    %v6284 = vadd.f32 %v4714, %v5999
    %v6285 = vadd.f32 %v4715, %v6002
    %v6286 = vadd.f32 %v4716, %v6005
    %v6287 = vadd.f32 %v4717, %v6008
    %v6288 = vadd.f32 %v4718, %v6011
    %v6289 = vadd.f32 %v4719, %v6014
    %v6290 = vadd.f32 %v4720, %v6017
    %v6291 = vadd.f32 %v4721, %v6020
    %v6292 = vadd.f32 %v4722, %v6023
    %v6293 = vadd.f32 %v4723, %v6026
    %v6294 = vadd.f32 %v4724, %v6029
    %v6295 = vadd.f32 %v4725, %v6032
    %v6296 = vadd.f32 %v4726, %v6035
    %v6297 = vadd.f32 %v4727, %v6038
    %v6298 = vadd.f32 %v4728, %v6041
    %v6299 = vadd.f32 %v4729, %v6044
    %v6300 = vadd.f32 %v4730, %v6047
    %v6301 = vadd.f32 %v4731, %v6050
    %v6302 = vadd.f32 %v4732, %v6053
    %v6303 = vadd.f32 %v4733, %v6056
    %v6304 = vadd.f32 %v4734, %v6059
    %v6305 = vadd.f32 %v4735, %v6062
    %v6306 = vadd.f32 %v4736, %v6065
    %v6307 = vadd.f32 %v4737, %v6068
    %v6308 = vadd.f32 %v4738, %v6071
    %v6309 = vadd.f32 %v4739, %v6074
    %v6310 = vadd.f32 %v4740, %v6077
    %v6311 = vadd.f32 %v4741, %v6080
    %v6312 = vadd.f32 %v4742, %v6083
    %v6313 = vadd.f32 %v4743, %v6086
    %v6314 = vadd.f32 %v4744, %v6089
    %v6315 = vadd.f32 %v4745, %v6092
    %v6316 = vadd.f32 %v4746, %v6095
    %v6317 = vadd.f32 %v4747, %v6098
    %v6318 = vadd.f32 %v4748, %v6101
    %v6319 = vadd.f32 %v4749, %v6104
    %v6320 = vadd.f32 %v4750, %v6107
    %v6321 = vadd.f32 %v4751, %v6110
    %v6322 = vadd.f32 %v4752, %v6113
    %v6323 = vadd.f32 %v4753, %v6116
    %v6324 = vadd.f32 %v4754, %v6119
    %v6325 = vadd.f32 %v4755, %v6122
    %v6326 = vadd.f32 %v4756, %v6125
    %v6327 = vadd.f32 %v4757, %v6128
    %v6328 = vadd.f32 %v4758, %v6131
    %v6329 = vadd.f32 %v4759, %v6134
    %v6330 = vadd.f32 %v4760, %v6137
    %v6331 = vadd.f32 %v4761, %v6140
    %v6332 = vadd.f32 %v4762, %v6143
    %v6333 = vadd.f32 %v4763, %v6146
    %v6334 = vadd.f32 %v4764, %v6149
    %v6335 = vadd.f32 %v4765, %v6152
    %v6336 = vadd.f32 %v4766, %v6155
    %v6337 = vadd.f32 %v4767, %v6158
    %v6338 = vadd.f32 %v4768, %v6161
    %v6339 = vadd.f32 %v4769, %v6164
    %v6340 = vadd.f32 %v4770, %v6167
    %v6341 = vadd.f32 %v4771, %v6170
    %v6342 = vadd.f32 %v4772, %v6173
    %v6343 = vadd.f32 %v4773, %v6176
    %v6344 = vadd.f32 %v4774, %v6179
    %v6345 = vadd.f32 %v4775, %v6182
    %v6346 = vadd.f32 %v4776, %v6185
    %v6347 = vadd.f32 %v4777, %v6188
    %v6348 = vadd.f32 %v4778, %v6191
    %v6349 = vadd.f32 %v4779, %v6194
    %v6350 = vadd.f32 %v4780, %v6197
    %v6351 = vadd.f32 %v4781, %v6200
    %v6352 = vadd.f32 %v4782, %v6203
    %v6353 = vadd.f32 %v4783, %v6206
    %v6354 = vadd.f32 %v4784, %v6209
    %v6355 = vadd.f32 %v4785, %v6212
    %v6356 = vadd.f32 %v4786, %v6215
    %v6357 = vadd.f32 %v4787, %v6218
    %v6358 = vadd.f32 %v4788, %v6221
    %v6359 = vadd.f32 %v4789, %v6224
    %v6360 = vadd.f32 %v4790, %v6227
    %v6361 = vadd.f32 %v4791, %v6230
    %v6362 = vadd.f32 %v4792, %v6233
    %6363 = vst [vmem:[#allocation10] sm:$0xff] %v6235
    %6364 = vst [vmem:[#allocation10 + $0x8] sm:$0xff] %v6236
    %6365 = vst [vmem:[#allocation10 + $0x10] sm:$0xff] %v6237
    %6366 = vst [vmem:[#allocation10 + $0x18] sm:$0xff] %v6238
    %6367 = vst [vmem:[#allocation10 + $0x20] sm:$0xff] %v6239
    %6368 = vst [vmem:[#allocation10 + $0x28] sm:$0xff] %v6240
    %6369 = vst [vmem:[#allocation10 + $0x30] sm:$0xff] %v6241
    %6370 = vst [vmem:[#allocation10 + $0x38] sm:$0xff] %v6242
    %6371 = vst [vmem:[#allocation10 + $0x40] sm:$0xff] %v6243
    %6372 = vst [vmem:[#allocation10 + $0x48] sm:$0xff] %v6244
    %6373 = vst [vmem:[#allocation10 + $0x50] sm:$0xff] %v6245
    %6374 = vst [vmem:[#allocation10 + $0x58] sm:$0xff] %v6246
    %6375 = vst [vmem:[#allocation10 + $0x60] sm:$0xff] %v6247
    %6376 = vst [vmem:[#allocation10 + $0x68] sm:$0xff] %v6248
    %6377 = vst [vmem:[#allocation10 + $0x70] sm:$0xff] %v6249
    %6378 = vst [vmem:[#allocation10 + $0x78] sm:$0xff] %v6250
    %6379 = vst [vmem:[#allocation10 + $0x80] sm:$0xff] %v6251
    %6380 = vst [vmem:[#allocation10 + $0x88] sm:$0xff] %v6252
    %6381 = vst [vmem:[#allocation10 + $0x90] sm:$0xff] %v6253
    %6382 = vst [vmem:[#allocation10 + $0x98] sm:$0xff] %v6254
    %6383 = vst [vmem:[#allocation10 + $0xa0] sm:$0xff] %v6255
    %6384 = vst [vmem:[#allocation10 + $0xa8] sm:$0xff] %v6256
    %6385 = vst [vmem:[#allocation10 + $0xb0] sm:$0xff] %v6257
    %6386 = vst [vmem:[#allocation10 + $0xb8] sm:$0xff] %v6258
    %6387 = vst [vmem:[#allocation10 + $0xc0] sm:$0xff] %v6259
    %6388 = vst [vmem:[#allocation10 + $0xc8] sm:$0xff] %v6260
    %6389 = vst [vmem:[#allocation10 + $0xd0] sm:$0xff] %v6261
    %6390 = vst [vmem:[#allocation10 + $0xd8] sm:$0xff] %v6262
    %6391 = vst [vmem:[#allocation10 + $0xe0] sm:$0xff] %v6263
    %6392 = vst [vmem:[#allocation10 + $0xe8] sm:$0xff] %v6264
    %6393 = vst [vmem:[#allocation10 + $0xf0] sm:$0xff] %v6265
    %6394 = vst [vmem:[#allocation10 + $0xf8] sm:$0xff] %v6266
    %6395 = vst [vmem:[#allocation10 + $0x100] sm:$0xff] %v6267
    %6396 = vst [vmem:[#allocation10 + $0x108] sm:$0xff] %v6268
    %6397 = vst [vmem:[#allocation10 + $0x110] sm:$0xff] %v6269
    %6398 = vst [vmem:[#allocation10 + $0x118] sm:$0xff] %v6270
    %6399 = vst [vmem:[#allocation10 + $0x120] sm:$0xff] %v6271
    %6400 = vst [vmem:[#allocation10 + $0x128] sm:$0xff] %v6272
    %6401 = vst [vmem:[#allocation10 + $0x130] sm:$0xff] %v6273
    %6402 = vst [vmem:[#allocation10 + $0x138] sm:$0xff] %v6274
    %6403 = vst [vmem:[#allocation10 + $0x140] sm:$0xff] %v6275
    %6404 = vst [vmem:[#allocation10 + $0x148] sm:$0xff] %v6276
    %6405 = vst [vmem:[#allocation10 + $0x150] sm:$0xff] %v6277
    %6406 = vst [vmem:[#allocation10 + $0x158] sm:$0xff] %v6278
    %6407 = vst [vmem:[#allocation10 + $0x160] sm:$0xff] %v6279
    %6408 = vst [vmem:[#allocation10 + $0x168] sm:$0xff] %v6280
    %6409 = vst [vmem:[#allocation10 + $0x170] sm:$0xff] %v6281
    %6410 = vst [vmem:[#allocation10 + $0x178] sm:$0xff] %v6282
    %6411 = vst [vmem:[#allocation10 + $0x180] sm:$0xff] %v6283
    %6412 = vst [vmem:[#allocation10 + $0x188] sm:$0xff] %v6284
    %6413 = vst [vmem:[#allocation10 + $0x190] sm:$0xff] %v6285
    %6414 = vst [vmem:[#allocation10 + $0x198] sm:$0xff] %v6286
    %6415 = vst [vmem:[#allocation10 + $0x1a0] sm:$0xff] %v6287
    %6416 = vst [vmem:[#allocation10 + $0x1a8] sm:$0xff] %v6288
    %6417 = vst [vmem:[#allocation10 + $0x1b0] sm:$0xff] %v6289
    %6418 = vst [vmem:[#allocation10 + $0x1b8] sm:$0xff] %v6290
    %6419 = vst [vmem:[#allocation10 + $0x1c0] sm:$0xff] %v6291
    %6420 = vst [vmem:[#allocation10 + $0x1c8] sm:$0xff] %v6292
    %6421 = vst [vmem:[#allocation10 + $0x1d0] sm:$0xff] %v6293
    %6422 = vst [vmem:[#allocation10 + $0x1d8] sm:$0xff] %v6294
    %6423 = vst [vmem:[#allocation10 + $0x1e0] sm:$0xff] %v6295
    %6424 = vst [vmem:[#allocation10 + $0x1e8] sm:$0xff] %v6296
    %6425 = vst [vmem:[#allocation10 + $0x1f0] sm:$0xff] %v6297
    %6426 = vst [vmem:[#allocation10 + $0x1f8] sm:$0xff] %v6298
    %6427 = vst [vmem:[#allocation10 + $0x200] sm:$0xff] %v6299
    %6428 = vst [vmem:[#allocation10 + $0x208] sm:$0xff] %v6300
    %6429 = vst [vmem:[#allocation10 + $0x210] sm:$0xff] %v6301
    %6430 = vst [vmem:[#allocation10 + $0x218] sm:$0xff] %v6302
    %6431 = vst [vmem:[#allocation10 + $0x220] sm:$0xff] %v6303
    %6432 = vst [vmem:[#allocation10 + $0x228] sm:$0xff] %v6304
    %6433 = vst [vmem:[#allocation10 + $0x230] sm:$0xff] %v6305
    %6434 = vst [vmem:[#allocation10 + $0x238] sm:$0xff] %v6306
    %6435 = vst [vmem:[#allocation10 + $0x240] sm:$0xff] %v6307
    %6436 = vst [vmem:[#allocation10 + $0x248] sm:$0xff] %v6308
    %6437 = vst [vmem:[#allocation10 + $0x250] sm:$0xff] %v6309
    %6438 = vst [vmem:[#allocation10 + $0x258] sm:$0xff] %v6310
    %6439 = vst [vmem:[#allocation10 + $0x260] sm:$0xff] %v6311
    %6440 = vst [vmem:[#allocation10 + $0x268] sm:$0xff] %v6312
    %6441 = vst [vmem:[#allocation10 + $0x270] sm:$0xff] %v6313
    %6442 = vst [vmem:[#allocation10 + $0x278] sm:$0xff] %v6314
    %6443 = vst [vmem:[#allocation10 + $0x280] sm:$0xff] %v6315
    %6444 = vst [vmem:[#allocation10 + $0x288] sm:$0xff] %v6316
    %6445 = vst [vmem:[#allocation10 + $0x290] sm:$0xff] %v6317
    %6446 = vst [vmem:[#allocation10 + $0x298] sm:$0xff] %v6318
    %6447 = vst [vmem:[#allocation10 + $0x2a0] sm:$0xff] %v6319
    %6448 = vst [vmem:[#allocation10 + $0x2a8] sm:$0xff] %v6320
    %6449 = vst [vmem:[#allocation10 + $0x2b0] sm:$0xff] %v6321
    %6450 = vst [vmem:[#allocation10 + $0x2b8] sm:$0xff] %v6322
    %6451 = vst [vmem:[#allocation10 + $0x2c0] sm:$0xff] %v6323
    %6452 = vst [vmem:[#allocation10 + $0x2c8] sm:$0xff] %v6324
    %6453 = vst [vmem:[#allocation10 + $0x2d0] sm:$0xff] %v6325
    %6454 = vst [vmem:[#allocation10 + $0x2d8] sm:$0xff] %v6326
    %6455 = vst [vmem:[#allocation10 + $0x2e0] sm:$0xff] %v6327
    %6456 = vst [vmem:[#allocation10 + $0x2e8] sm:$0xff] %v6328
    %6457 = vst [vmem:[#allocation10 + $0x2f0] sm:$0xff] %v6329
    %6458 = vst [vmem:[#allocation10 + $0x2f8] sm:$0xff] %v6330
    %6459 = vst [vmem:[#allocation10 + $0x300] sm:$0xff] %v6331
    %6460 = vst [vmem:[#allocation10 + $0x308] sm:$0xff] %v6332
    %6461 = vst [vmem:[#allocation10 + $0x310] sm:$0xff] %v6333
    %6462 = vst [vmem:[#allocation10 + $0x318] sm:$0xff] %v6334
    %6463 = vst [vmem:[#allocation10 + $0x320] sm:$0xff] %v6335
    %6464 = vst [vmem:[#allocation10 + $0x328] sm:$0xff] %v6336
    %6465 = vst [vmem:[#allocation10 + $0x330] sm:$0xff] %v6337
    %6466 = vst [vmem:[#allocation10 + $0x338] sm:$0xff] %v6338
    %6467 = vst [vmem:[#allocation10 + $0x340] sm:$0xff] %v6339
    %6468 = vst [vmem:[#allocation10 + $0x348] sm:$0xff] %v6340
    %6469 = vst [vmem:[#allocation10 + $0x350] sm:$0xff] %v6341
    %6470 = vst [vmem:[#allocation10 + $0x358] sm:$0xff] %v6342
    %6471 = vst [vmem:[#allocation10 + $0x360] sm:$0xff] %v6343
    %6472 = vst [vmem:[#allocation10 + $0x368] sm:$0xff] %v6344
    %6473 = vst [vmem:[#allocation10 + $0x370] sm:$0xff] %v6345
    %6474 = vst [vmem:[#allocation10 + $0x378] sm:$0xff] %v6346
    %6475 = vst [vmem:[#allocation10 + $0x380] sm:$0xff] %v6347
    %6476 = vst [vmem:[#allocation10 + $0x388] sm:$0xff] %v6348
    %6477 = vst [vmem:[#allocation10 + $0x390] sm:$0xff] %v6349
    %6478 = vst [vmem:[#allocation10 + $0x398] sm:$0xff] %v6350
    %6479 = vst [vmem:[#allocation10 + $0x3a0] sm:$0xff] %v6351
    %6480 = vst [vmem:[#allocation10 + $0x3a8] sm:$0xff] %v6352
    %6481 = vst [vmem:[#allocation10 + $0x3b0] sm:$0xff] %v6353
    %6482 = vst [vmem:[#allocation10 + $0x3b8] sm:$0xff] %v6354
    %6483 = vst [vmem:[#allocation10 + $0x3c0] sm:$0xff] %v6355
    %6484 = vst [vmem:[#allocation10 + $0x3c8] sm:$0xff] %v6356
    %6485 = vst [vmem:[#allocation10 + $0x3d0] sm:$0xff] %v6357
    %6486 = vst [vmem:[#allocation10 + $0x3d8] sm:$0xff] %v6358
    %6487 = vst [vmem:[#allocation10 + $0x3e0] sm:$0xff] %v6359
    %6488 = vst [vmem:[#allocation10 + $0x3e8] sm:$0xff] %v6360
    %6489 = vst [vmem:[#allocation10 + $0x3f0] sm:$0xff] %v6361
    %6490 = vst [vmem:[#allocation10 + $0x3f8] sm:$0xff] %v6362
    // Predicated region
    $region70: #{tpu_custom_call.1} parent=1 // pred_check
      _
    $region71: #{tpu_custom_call.1} parent=1 // pred_check_branch
      %6492 = sbr.rel (0) target = $region73
    $region72: #{tpu_custom_call.1} parent=1 // pred_region
      %6494 = vsyncadd [#allocation4], 0
      %s6495 = sshll.u32 [#allocation10], 4
      %s6496 = int_to_ptr.vmem [resolvable:$true] %s6495
      %s6497 = sshll.u32 %s13, 4
      %s6498 = int_to_ptr.hbm [resolvable:$true] %s6497
      %6503 = dma.vmem_to_hbm [thread:$0]  %s6496, 16384, %s6498, [#allocation4], 128, 128, 8
    $region73: #{tpu_custom_call.1} parent=1 // pred_fallthru
      _
    // Predicated region
    $region74: #{tpu_custom_call.1} parent=1 // pred_check
      _
    $region75: #{tpu_custom_call.1} parent=1 // pred_check_branch
      %6505 = sbr.rel (0) target = $region77
    $region76: #{tpu_custom_call.1} parent=1 // pred_region
      %6507 = dma.done [#allocation4], 16384
    $region77: #{tpu_custom_call.1} parent=1 // pred_fallthru
      _
    %6508 = vsyncpa [#allocation3], 1
    %6509 = vsyncpa [#allocation6], 1
    %6510 = vsyncpa [#allocation9], 1
    %6511 = vsyncpa [#allocation4], 1

</llo_original>
